<compile_context>
chip_gen: v7x
topology: tpu7x:2x2x1
jax: 0.10.0
libtpu: 0.0.40
codegen_flags: <defaults>
</compile_context>

<pallas_src>
import functools

import jax
import jax.numpy as jnp
from jax import lax
from jax.experimental import pallas as pl
from jax.experimental.pallas import tpu as pltpu


def _round_up(x, m):
    return (x + m - 1) // m * m


def _strip_vmem_bytes(th, W, cin_p, cmid_p, cout_p, bpe):
    """Rough per-strip VMEM working-set estimate (bytes), used to size strips."""
    r1 = th + 2
    b = (th + 4) * (W + 2) * 2 * cin_p * bpe           # x / skip input slabs
    b += 6 * (th + 4) * W * cin_p * bpe                # kw-shifted slab copies
    b += 2 * r1 * W * 6 * cin_p * bpe                  # conv1 im2col (~2 kh live)
    b += r1 * W * cmid_p * (4 + bpe)                   # h1 (f32 + cast)
    b += 4 * r1 * (W + 2) * cmid_p * bpe               # padded h1 + kw slabs
    b += 2 * th * W * 3 * cmid_p * bpe                 # conv2 im2col (~2 kh live)
    b += th * W * cmid_p * (4 + bpe)                   # h2
    b += 3 * th * W * 4 * cout_p * 4                   # up-conv result + out bufs
    return b


def _pick_strip_rows(H, W, cin_p, cmid_p, cout_p, bpe, budget):
    """Largest divisor of H whose strip working set fits `budget` (>=2 strips preferred)."""
    divisors = [d for d in range(1, H + 1) if H % d == 0]
    aligned = [d for d in divisors if (d * W) % 8 == 0 or d == H]   # (8,128) rule
    fits = [d for d in aligned
            if _strip_vmem_bytes(d, W, cin_p, cmid_p, cout_p, bpe) <= budget]
    if fits:
        th = max(fits)
        if th == H and len(fits) > 1:
            th = max(d for d in fits if d < H)   # >=2 strips: megacore + pipelining
    else:
        th = min(aligned)   # TODO(synk): may still exceed budget for extreme W*C
    return th


# ----------------------------------------------------------------------------
# Fused decoder-block kernel; one grid step = (batch image, row strip).
# ----------------------------------------------------------------------------
def _fused_decoder_kernel(x_ref, skip_ref, w1_ref, s1_ref, t1_ref,
                          w2_ref, s2_ref, t2_ref, wup_ref, bup_ref, out_ref):
    # x_ref/skip_ref: (1, H+4, W+2, Cin_p)  zero-halo padded NHWC inputs
    # w1_ref        : (3, 6*Cin_p, Cmid_p)  conv1 weights, per-kh im2col layout
    # s*/t*_ref     : (1, Cmid_p)           folded conv-bias + BN scale / shift
    # w2_ref        : (3, 3*Cmid_p, Cmid_p) conv2 weights, per-kh im2col layout
    # wup_ref       : (Cmid_p, 4*Cout_p)    ConvTranspose, tap-major columns
    # bup_ref       : (1, 4*Cout_p)
    # out_ref       : (1, th*W, 4*Cout_p)   strip of tap-major up-conv output
    Hp, Wp, cin_p = x_ref.shape[1], x_ref.shape[2], x_ref.shape[3]
    H, W = Hp - 4, Wp - 2
    cmid_p = s1_ref.shape[1]
    th = out_ref.shape[1] // W
    cd = w1_ref.dtype                      # MXU operand dtype (bf16 or f32)

    r0 = pl.program_id(1) * th             # first output row of this strip

    # --- input slabs for this strip: rows [r0-2, r0+th+2) of the raw image -----
    xs = x_ref[0, pl.ds(r0, th + 4), :, :]          # (th+4, W+2, Cin_p)
    ss = skip_ref[0, pl.ds(r0, th + 4), :, :]

    def kw_slabs(v, width):                          # 3 sublane-shifted copies,
        return [v[:, kw:kw + width, :] for kw in range(3)]   # each reused 3x
    xsl, ssl = kw_slabs(xs, W), kw_slabs(ss, W)

    # --- Conv1 on cat(x, skip) + folded bias/BN + ReLU, th+2 rows (1-row halo) --
    r1 = th + 2
    h1 = jnp.zeros((r1 * W, cmid_p), jnp.float32)
    for kh in range(3):                              # accumulate over kh: K = 6*Cin_p
        cols = jnp.concatenate(
            [xsl[kw][kh:kh + r1] for kw in range(3)]
            + [ssl[kw][kh:kh + r1] for kw in range(3)], axis=-1
        ).reshape(r1 * W, 6 * cin_p)
        h1 = h1 + jnp.dot(cols, w1_ref[kh], preferred_element_type=jnp.float32)
    h1 = jnp.maximum(h1 * s1_ref[...] + t1_ref[...], 0.0)

    # halo rows outside the image act as conv2's zero padding
    h1 = h1.reshape(r1, W, cmid_p)
    row = lax.broadcasted_iota(jnp.int32, (r1, 1, 1), 0) + (r0 - 1)
    h1 = jnp.where((row >= 0) & (row < H), h1, 0.0).astype(cd)
    zc = jnp.zeros((r1, 1, cmid_p), cd)
    h1p = jnp.concatenate([zc, h1, zc], axis=1)      # (th+2, W+2, Cmid_p)
    hsl = kw_slabs(h1p, W)

    # --- Conv2 + folded bias/BN + ReLU, th rows ---------------------------------
    h2 = jnp.zeros((th * W, cmid_p), jnp.float32)
    for kh in range(3):                              # accumulate over kh: K = 3*Cmid_p
        cols = jnp.concatenate(
            [hsl[kw][kh:kh + th] for kw in range(3)], axis=-1
        ).reshape(th * W, 3 * cmid_p)
        h2 = h2 + jnp.dot(cols, w2_ref[kh], preferred_element_type=jnp.float32)
    h2 = jnp.maximum(h2 * s2_ref[...] + t2_ref[...], 0.0)

    # Dropout2d: identity in inference mode.

    # --- ConvTranspose2d k=2,s=2: ONE lane-dense matmul (4 taps fused into N) ---
    y = jnp.dot(h2.astype(cd), wup_ref[...],
                preferred_element_type=jnp.float32) + bup_ref[...]
    out_ref[0] = y.astype(out_ref.dtype)             # (th*W, 4*Cout_p)


# ----------------------------------------------------------------------------
# Full decoder block forward (NCHW in / NCHW out, like PyTorch)
# ----------------------------------------------------------------------------
def unet_decoder_block_forward(x, skip, p, eps=1e-5, compute_dtype=jnp.bfloat16):
    N, Cin, H, W = x.shape
    Cmid = p["conv1_w"].shape[0]          # = in_channels of the module
    Cout = p["up_w"].shape[1]
    cd = compute_dtype
    bpe = jnp.dtype(cd).itemsize

    # Lane/MXU-friendly channel padding (zero-filled -> numerically exact).
    Cin_p = _round_up(Cin, 128)
    Cmid_p = _round_up(Cmid, 128)
    Cout_p = _round_up(Cout, 32)          # 4*Cout_p is a multiple of 128

    # Activations: NCHW->NHWC, cast, zero halo (H +-2, W +-1) + channel pad.
    # XLA fuses the pad into this (mandatory) transpose copy.
    def prep(a):
        a = jnp.transpose(a, (0, 2, 3, 1)).astype(cd)
        return jnp.pad(a, ((0, 0), (2, 2), (1, 1), (0, Cin_p - Cin)))
    xp, sp = prep(x), prep(skip)

    # Fold conv bias + eval-mode BatchNorm into a single scale/shift (f32).
    def fold(bias, g, b, m, v):
        s = g / jnp.sqrt(v + eps)
        t = b + (bias - m) * s
        s = jnp.pad(s.astype(jnp.float32), (0, Cmid_p - Cmid))
        t = jnp.pad(t.astype(jnp.float32), (0, Cmid_p - Cmid))
        return s[None, :], t[None, :]
    s1, t1 = fold(p["conv1_b"], p["bn1_g"], p["bn1_b"], p["bn1_m"], p["bn1_v"])
    s2, t2 = fold(p["conv2_b"], p["bn2_g"], p["bn2_b"], p["bn2_m"], p["bn2_v"])

    # Conv weights -> per-kh im2col layout: rows ordered (kw major, ci inner).
    def prep_w3(w_khkwcico, ci_p, co_p):
        w = jnp.pad(w_khkwcico, ((0, 0), (0, 0),
                                 (0, ci_p - w_khkwcico.shape[2]),
                                 (0, co_p - w_khkwcico.shape[3])))
        return w.reshape(3, 3 * ci_p, co_p).astype(cd)

    wt = jnp.transpose(p["conv1_w"], (2, 3, 1, 0))            # (3,3,2Cin,Cmid)
    w1 = jnp.concatenate(                                      # [x taps | skip taps]
        [prep_w3(wt[:, :, :Cin, :], Cin_p, Cmid_p),
         prep_w3(wt[:, :, Cin:, :], Cin_p, Cmid_p)], axis=1)   # (3, 6*Cin_p, Cmid_p)
    w2 = prep_w3(jnp.transpose(p["conv2_w"], (2, 3, 1, 0)),
                 Cmid_p, Cmid_p)                               # (3, 3*Cmid_p, Cmid_p)

    # ConvTranspose weights (Cmid,Cout,2,2) -> ONE (Cmid_p, 4*Cout_p) matmul;
    # output column = (2*kh + kw) * Cout_p + co (tap-major, lane-dense).
    wu = jnp.transpose(p["up_w"], (0, 2, 3, 1))                # (Cmid,2,2,Cout)
    wu = jnp.pad(wu, ((0, Cmid_p - Cmid), (0, 0), (0, 0), (0, Cout_p - Cout)))
    wup = wu.reshape(Cmid_p, 4 * Cout_p).astype(cd)
    bup = jnp.tile(jnp.pad(p["up_b"].astype(jnp.float32), (0, Cout_p - Cout)), 4)[None, :]

    # Strip selection + explicit VMEM limit.
    VMEM_TARGET = 48 * 1024 * 1024
    resident = 2 * 2 * (H + 4) * (W + 2) * Cin_p * bpe              # x+skip, 2 buffers
    wbytes = 2 * bpe * (3 * 6 * Cin_p * Cmid_p + 3 * 3 * Cmid_p * Cmid_p
                        + Cmid_p * 4 * Cout_p)
    budget = max(VMEM_TARGET - resident - wbytes, 4 * 1024 * 1024)
    th = _pick_strip_rows(H, W, Cin_p, Cmid_p, Cout_p, bpe, budget)
    S = H // th
    vmem_limit = int(min(max(1.25 * (resident + wbytes +
                                     _strip_vmem_bytes(th, W, Cin_p, Cmid_p, Cout_p, bpe)),
                             32 * 1024 * 1024), 64 * 1024 * 1024))

    flops = 2 * N * H * W * (18 * Cin_p * Cmid_p + 9 * Cmid_p * Cmid_p
                             + 4 * Cmid_p * Cout_p)
    bytes_accessed = int((xp.size + sp.size + w1.size + w2.size + wup.size) * bpe
                         + (s1.size + t1.size + s2.size + t2.size + bup.size) * 4
                         + N * H * W * 4 * Cout_p * 4)

    o4 = pl.pallas_call(
        _fused_decoder_kernel,
        out_shape=jax.ShapeDtypeStruct((N, H * W, 4 * Cout_p), jnp.float32),
        grid=(N, S),
        in_specs=[
            pl.BlockSpec((1, H + 4, W + 2, Cin_p), lambda n, s: (n, 0, 0, 0)),  # x
            pl.BlockSpec((1, H + 4, W + 2, Cin_p), lambda n, s: (n, 0, 0, 0)),  # skip
            pl.BlockSpec((3, 6 * Cin_p, Cmid_p), lambda n, s: (0, 0, 0)),       # w1
            pl.BlockSpec((1, Cmid_p), lambda n, s: (0, 0)),                     # s1
            pl.BlockSpec((1, Cmid_p), lambda n, s: (0, 0)),                     # t1
            pl.BlockSpec((3, 3 * Cmid_p, Cmid_p), lambda n, s: (0, 0, 0)),      # w2
            pl.BlockSpec((1, Cmid_p), lambda n, s: (0, 0)),                     # s2
            pl.BlockSpec((1, Cmid_p), lambda n, s: (0, 0)),                     # t2
            pl.BlockSpec((Cmid_p, 4 * Cout_p), lambda n, s: (0, 0)),            # up w
            pl.BlockSpec((1, 4 * Cout_p), lambda n, s: (0, 0)),                 # up b
        ],
        out_specs=pl.BlockSpec((1, th * W, 4 * Cout_p), lambda n, s: (n, s, 0)),
        compiler_params=pltpu.CompilerParams(
            dimension_semantics=("parallel", "parallel"),
            vmem_limit_bytes=vmem_limit),
        cost_estimate=pl.CostEstimate(flops=flops, transcendentals=0,
                                      bytes_accessed=bytes_accessed),
    )(xp, sp, w1, s1, t1, w2, s2, t2, wup, bup)

    # Tap interleave + NHWC->NCHW, folded into the single output transpose:
    #   out[n, co, 2h+kh, 2w+kw] = o4[n, h*W+w, (2*kh+kw)*Cout_p + co]
    o = o4.reshape(N, H, W, 2, 2, Cout_p)[..., :Cout]
    return jnp.transpose(o, (0, 5, 1, 3, 2, 4)).reshape(N, Cout, 2 * H, 2 * W)


# ----------------------------------------------------------------------------
# Pure-JAX reference (for correctness check)
# ----------------------------------------------------------------------------
def _ref_forward(x, skip, p, eps=1e-5):
    xc = jnp.concatenate([x, skip], axis=1)
    h = jnp.transpose(xc, (0, 2, 3, 1))

    def cbr(h, w, b, g, bt, m, v):
        w_hwio = jnp.transpose(w, (2, 3, 1, 0))
        o = jax.lax.conv_general_dilated(
            h, w_hwio, (1, 1), "SAME",
            dimension_numbers=("NHWC", "HWIO", "NHWC"))
        o = o + b[None, None, None, :]
        o = (o - m) / jnp.sqrt(v + eps) * g + bt
        return jnp.maximum(o, 0.0)

    h = cbr(h, p["conv1_w"], p["conv1_b"], p["bn1_g"], p["bn1_b"], p["bn1_m"], p["bn1_v"])
    h = cbr(h, p["conv2_w"], p["conv2_b"], p["bn2_g"], p["bn2_b"], p["bn2_m"], p["bn2_v"])

    N, H, W, Ci = h.shape
    Co = p["up_w"].shape[1]
    y = jnp.einsum("nhwi,iokl->nhkwlo", h, p["up_w"]).reshape(N, 2 * H, 2 * W, Co)
    y = y + p["up_b"][None, None, None, :]
    return jnp.transpose(y, (0, 3, 1, 2))


if __name__ == "__main__":
    key = jax.random.PRNGKey(0)
    N, Cin, Cout, H, W = 2, 4, 4, 16, 16
    ks = jax.random.split(key, 16)

    x = jax.random.normal(ks[0], (N, Cin, H, W), jnp.float32)
    skip = jax.random.normal(ks[1], (N, Cin, H, W), jnp.float32)

    params = {
        # Conv1: (in*2 -> in)
        "conv1_w": jax.random.normal(ks[2], (Cin, 2 * Cin, 3, 3), jnp.float32) * 0.2,
        "conv1_b": jax.random.normal(ks[3], (Cin,), jnp.float32) * 0.1,
        "bn1_g": jax.random.uniform(ks[4], (Cin,), jnp.float32, 0.5, 1.5),
        "bn1_b": jax.random.normal(ks[5], (Cin,), jnp.float32) * 0.1,
        "bn1_m": jax.random.normal(ks[6], (Cin,), jnp.float32) * 0.1,
        "bn1_v": jax.random.uniform(ks[7], (Cin,), jnp.float32, 0.5, 1.5),
        # Conv2: (in -> in)
        "conv2_w": jax.random.normal(ks[8], (Cin, Cin, 3, 3), jnp.float32) * 0.2,
        "conv2_b": jax.random.normal(ks[9], (Cin,), jnp.float32) * 0.1,
        "bn2_g": jax.random.uniform(ks[10], (Cin,), jnp.float32, 0.5, 1.5),
        "bn2_b": jax.random.normal(ks[11], (Cin,), jnp.float32) * 0.1,
        "bn2_m": jax.random.normal(ks[12], (Cin,), jnp.float32) * 0.1,
        "bn2_v": jax.random.uniform(ks[13], (Cin,), jnp.float32, 0.5, 1.5),
        # ConvTranspose2d: weight (Cin, Cout, 2, 2)
        "up_w": jax.random.normal(ks[14], (Cin, Cout, 2, 2), jnp.float32) * 0.2,
        "up_b": jax.random.normal(ks[15], (Cout,), jnp.float32) * 0.1,
    }

    ref = jax.block_until_ready(_ref_forward(x, skip, params))

    # Exactness check: f32 MXU-operand path (same kernel, compute_dtype=f32).
    out_f32 = jax.block_until_ready(
        jax.jit(functools.partial(unet_decoder_block_forward,
                                  compute_dtype=jnp.float32))(x, skip, params))
    assert out_f32.shape == (N, Cout, 2 * H, 2 * W), out_f32.shape
    assert jnp.allclose(out_f32, ref, rtol=1e-4, atol=1e-4), \
        float(jnp.max(jnp.abs(out_f32 - ref)))

    # Performance path: bf16 MXU operands, f32 accumulation (looser tolerance).
    out_bf16 = jax.block_until_ready(
        jax.jit(functools.partial(unet_decoder_block_forward,
                                  compute_dtype=jnp.bfloat16))(x, skip, params))
    assert out_bf16.shape == (N, Cout, 2 * H, 2 * W), out_bf16.shape
    assert jnp.allclose(out_bf16, ref, rtol=5e-2, atol=8e-2), \
        float(jnp.max(jnp.abs(out_bf16 - ref)))

    print("KERNEL_OK")
</pallas_src>

<mosaic_0001>
module attributes {stable_mosaic.version = 11 : i64} {
  func.func @_fused_decoder_kernel(%arg0: i32, %arg1: i32, %arg2: memref<1x20x18x128xf32, #tpu.memory_space<vmem>>, %arg3: memref<1x20x18x128xf32, #tpu.memory_space<vmem>>, %arg4: memref<3x768x128xf32, #tpu.memory_space<vmem>>, %arg5: memref<1x128xf32, #tpu.memory_space<vmem>>, %arg6: memref<1x128xf32, #tpu.memory_space<vmem>>, %arg7: memref<3x384x128xf32, #tpu.memory_space<vmem>>, %arg8: memref<1x128xf32, #tpu.memory_space<vmem>>, %arg9: memref<1x128xf32, #tpu.memory_space<vmem>>, %arg10: memref<128x128xf32, #tpu.memory_space<vmem>>, %arg11: memref<1x128xf32, #tpu.memory_space<vmem>>, %arg12: memref<1x128x128xf32, #tpu.memory_space<vmem>>) attributes {dimension_semantics = [#tpu.dimension_semantics<parallel>, #tpu.dimension_semantics<parallel>], iteration_bounds = array<i64: 2, 2>, scalar_prefetch = 0 : i64, scratch_operands = 0 : i64, tpu.core_type = #tpu.core_type<tc>, window_params = [{transform_indices = @transform_0, window_bounds = array<i64: 1, 20, 18, 128>}, {transform_indices = @transform_1, window_bounds = array<i64: 1, 20, 18, 128>}, {pipeline_mode = #tpu.pipeline_mode<synchronous>, transform_indices = @transform_2, window_bounds = array<i64: 3, 768, 128>}, {pipeline_mode = #tpu.pipeline_mode<synchronous>, transform_indices = @transform_3, window_bounds = array<i64: 1, 128>}, {pipeline_mode = #tpu.pipeline_mode<synchronous>, transform_indices = @transform_4, window_bounds = array<i64: 1, 128>}, {pipeline_mode = #tpu.pipeline_mode<synchronous>, transform_indices = @transform_5, window_bounds = array<i64: 3, 384, 128>}, {pipeline_mode = #tpu.pipeline_mode<synchronous>, transform_indices = @transform_6, window_bounds = array<i64: 1, 128>}, {pipeline_mode = #tpu.pipeline_mode<synchronous>, transform_indices = @transform_7, window_bounds = array<i64: 1, 128>}, {pipeline_mode = #tpu.pipeline_mode<synchronous>, transform_indices = @transform_8, window_bounds = array<i64: 128, 128>}, {pipeline_mode = #tpu.pipeline_mode<synchronous>, transform_indices = @transform_9, window_bounds = array<i64: 1, 128>}, {transform_indices = @transform_10, window_bounds = array<i64: 1, 128, 128>}]} {
    %c8_i32 = arith.constant 8 : i32
    %0 = arith.muli %arg1, %c8_i32 : i32
    %c0 = arith.constant 0 : index
    %1 = arith.index_cast %0 : i32 to index
    %c0_0 = arith.constant 0 : index
    %c0_1 = arith.constant 0 : index
    %2 = vector.load %arg2[%c0, %1, %c0_0, %c0_1] : memref<1x20x18x128xf32, #tpu.memory_space<vmem>>, vector<1x12x18x128xf32>
    %3 = vector.shape_cast %2 : vector<1x12x18x128xf32> to vector<12x18x128xf32>
    %c0_2 = arith.constant 0 : index
    %4 = arith.index_cast %0 : i32 to index
    %c0_3 = arith.constant 0 : index
    %c0_4 = arith.constant 0 : index
    %5 = vector.load %arg3[%c0_2, %4, %c0_3, %c0_4] : memref<1x20x18x128xf32, #tpu.memory_space<vmem>>, vector<1x12x18x128xf32>
    %6 = vector.shape_cast %5 : vector<1x12x18x128xf32> to vector<12x18x128xf32>
    %7 = vector.extract_strided_slice %3 {offsets = [0, 0, 0], sizes = [12, 16, 128], strides = [1, 1, 1]} : vector<12x18x128xf32> to vector<12x16x128xf32>
    %8 = vector.extract_strided_slice %3 {offsets = [0, 1, 0], sizes = [12, 16, 128], strides = [1, 1, 1]} : vector<12x18x128xf32> to vector<12x16x128xf32>
    %9 = vector.extract_strided_slice %3 {offsets = [0, 2, 0], sizes = [12, 16, 128], strides = [1, 1, 1]} : vector<12x18x128xf32> to vector<12x16x128xf32>
    %10 = vector.extract_strided_slice %6 {offsets = [0, 0, 0], sizes = [12, 16, 128], strides = [1, 1, 1]} : vector<12x18x128xf32> to vector<12x16x128xf32>
    %11 = vector.extract_strided_slice %6 {offsets = [0, 1, 0], sizes = [12, 16, 128], strides = [1, 1, 1]} : vector<12x18x128xf32> to vector<12x16x128xf32>
    %12 = vector.extract_strided_slice %6 {offsets = [0, 2, 0], sizes = [12, 16, 128], strides = [1, 1, 1]} : vector<12x18x128xf32> to vector<12x16x128xf32>
    %cst = arith.constant 0.000000e+00 : f32
    %13 = vector.broadcast %cst : f32 to vector<160x128xf32>
    %14 = vector.extract_strided_slice %7 {offsets = [0, 0, 0], sizes = [10, 16, 128], strides = [1, 1, 1]} : vector<12x16x128xf32> to vector<10x16x128xf32>
    %15 = vector.extract_strided_slice %8 {offsets = [0, 0, 0], sizes = [10, 16, 128], strides = [1, 1, 1]} : vector<12x16x128xf32> to vector<10x16x128xf32>
    %16 = vector.extract_strided_slice %9 {offsets = [0, 0, 0], sizes = [10, 16, 128], strides = [1, 1, 1]} : vector<12x16x128xf32> to vector<10x16x128xf32>
    %17 = vector.extract_strided_slice %10 {offsets = [0, 0, 0], sizes = [10, 16, 128], strides = [1, 1, 1]} : vector<12x16x128xf32> to vector<10x16x128xf32>
    %18 = vector.extract_strided_slice %11 {offsets = [0, 0, 0], sizes = [10, 16, 128], strides = [1, 1, 1]} : vector<12x16x128xf32> to vector<10x16x128xf32>
    %19 = vector.extract_strided_slice %12 {offsets = [0, 0, 0], sizes = [10, 16, 128], strides = [1, 1, 1]} : vector<12x16x128xf32> to vector<10x16x128xf32>
    %20 = tpu.concatenate %14, %15, %16, %17, %18, %19 in 2 : vector<10x16x128xf32>, vector<10x16x128xf32>, vector<10x16x128xf32>, vector<10x16x128xf32>, vector<10x16x128xf32>, vector<10x16x128xf32> -> vector<10x16x768xf32>
    %21 = vector.shape_cast %20 : vector<10x16x768xf32> to vector<160x768xf32>
    %c0_5 = arith.constant 0 : index
    %c0_6 = arith.constant 0 : index
    %c0_7 = arith.constant 0 : index
    %22 = vector.load %arg4[%c0_5, %c0_6, %c0_7] : memref<3x768x128xf32, #tpu.memory_space<vmem>>, vector<1x768x128xf32>
    %23 = vector.shape_cast %22 : vector<1x768x128xf32> to vector<768x128xf32>
    %cst_8 = arith.constant dense<0.000000e+00> : vector<160x128xf32>
    %24 = tpu.matmul %21, %23, %cst_8 {dimension_numbers = #tpu.dot_dimension_numbers<[1], [0], [0], [1], [0, 0, 1, 1], [], []>} : vector<160x768xf32>, vector<768x128xf32>, vector<160x128xf32> -> vector<160x128xf32>
    %25 = arith.addf %13, %24 : vector<160x128xf32>
    %26 = vector.extract_strided_slice %7 {offsets = [1, 0, 0], sizes = [10, 16, 128], strides = [1, 1, 1]} : vector<12x16x128xf32> to vector<10x16x128xf32>
    %27 = vector.extract_strided_slice %8 {offsets = [1, 0, 0], sizes = [10, 16, 128], strides = [1, 1, 1]} : vector<12x16x128xf32> to vector<10x16x128xf32>
    %28 = vector.extract_strided_slice %9 {offsets = [1, 0, 0], sizes = [10, 16, 128], strides = [1, 1, 1]} : vector<12x16x128xf32> to vector<10x16x128xf32>
    %29 = vector.extract_strided_slice %10 {offsets = [1, 0, 0], sizes = [10, 16, 128], strides = [1, 1, 1]} : vector<12x16x128xf32> to vector<10x16x128xf32>
    %30 = vector.extract_strided_slice %11 {offsets = [1, 0, 0], sizes = [10, 16, 128], strides = [1, 1, 1]} : vector<12x16x128xf32> to vector<10x16x128xf32>
    %31 = vector.extract_strided_slice %12 {offsets = [1, 0, 0], sizes = [10, 16, 128], strides = [1, 1, 1]} : vector<12x16x128xf32> to vector<10x16x128xf32>
    %32 = tpu.concatenate %26, %27, %28, %29, %30, %31 in 2 : vector<10x16x128xf32>, vector<10x16x128xf32>, vector<10x16x128xf32>, vector<10x16x128xf32>, vector<10x16x128xf32>, vector<10x16x128xf32> -> vector<10x16x768xf32>
    %33 = vector.shape_cast %32 : vector<10x16x768xf32> to vector<160x768xf32>
    %c1 = arith.constant 1 : index
    %c0_9 = arith.constant 0 : index
    %c0_10 = arith.constant 0 : index
    %34 = vector.load %arg4[%c1, %c0_9, %c0_10] : memref<3x768x128xf32, #tpu.memory_space<vmem>>, vector<1x768x128xf32>
    %35 = vector.shape_cast %34 : vector<1x768x128xf32> to vector<768x128xf32>
    %cst_11 = arith.constant dense<0.000000e+00> : vector<160x128xf32>
    %36 = tpu.matmul %33, %35, %cst_11 {dimension_numbers = #tpu.dot_dimension_numbers<[1], [0], [0], [1], [0, 0, 1, 1], [], []>} : vector<160x768xf32>, vector<768x128xf32>, vector<160x128xf32> -> vector<160x128xf32>
    %37 = arith.addf %25, %36 : vector<160x128xf32>
    %38 = vector.extract_strided_slice %7 {offsets = [2, 0, 0], sizes = [10, 16, 128], strides = [1, 1, 1]} : vector<12x16x128xf32> to vector<10x16x128xf32>
    %39 = vector.extract_strided_slice %8 {offsets = [2, 0, 0], sizes = [10, 16, 128], strides = [1, 1, 1]} : vector<12x16x128xf32> to vector<10x16x128xf32>
    %40 = vector.extract_strided_slice %9 {offsets = [2, 0, 0], sizes = [10, 16, 128], strides = [1, 1, 1]} : vector<12x16x128xf32> to vector<10x16x128xf32>
    %41 = vector.extract_strided_slice %10 {offsets = [2, 0, 0], sizes = [10, 16, 128], strides = [1, 1, 1]} : vector<12x16x128xf32> to vector<10x16x128xf32>
    %42 = vector.extract_strided_slice %11 {offsets = [2, 0, 0], sizes = [10, 16, 128], strides = [1, 1, 1]} : vector<12x16x128xf32> to vector<10x16x128xf32>
    %43 = vector.extract_strided_slice %12 {offsets = [2, 0, 0], sizes = [10, 16, 128], strides = [1, 1, 1]} : vector<12x16x128xf32> to vector<10x16x128xf32>
    %44 = tpu.concatenate %38, %39, %40, %41, %42, %43 in 2 : vector<10x16x128xf32>, vector<10x16x128xf32>, vector<10x16x128xf32>, vector<10x16x128xf32>, vector<10x16x128xf32>, vector<10x16x128xf32> -> vector<10x16x768xf32>
    %45 = vector.shape_cast %44 : vector<10x16x768xf32> to vector<160x768xf32>
    %c2 = arith.constant 2 : index
    %c0_12 = arith.constant 0 : index
    %c0_13 = arith.constant 0 : index
    %46 = vector.load %arg4[%c2, %c0_12, %c0_13] : memref<3x768x128xf32, #tpu.memory_space<vmem>>, vector<1x768x128xf32>
    %47 = vector.shape_cast %46 : vector<1x768x128xf32> to vector<768x128xf32>
    %cst_14 = arith.constant dense<0.000000e+00> : vector<160x128xf32>
    %48 = tpu.matmul %45, %47, %cst_14 {dimension_numbers = #tpu.dot_dimension_numbers<[1], [0], [0], [1], [0, 0, 1, 1], [], []>} : vector<160x768xf32>, vector<768x128xf32>, vector<160x128xf32> -> vector<160x128xf32>
    %49 = arith.addf %37, %48 : vector<160x128xf32>
    %c0_15 = arith.constant 0 : index
    %c0_16 = arith.constant 0 : index
    %50 = vector.load %arg5[%c0_15, %c0_16] : memref<1x128xf32, #tpu.memory_space<vmem>>, vector<1x128xf32>
    %51 = vector.broadcast %50 : vector<1x128xf32> to vector<160x128xf32>
    %52 = arith.mulf %49, %51 : vector<160x128xf32>
    %c0_17 = arith.constant 0 : index
    %c0_18 = arith.constant 0 : index
    %53 = vector.load %arg6[%c0_17, %c0_18] : memref<1x128xf32, #tpu.memory_space<vmem>>, vector<1x128xf32>
    %54 = vector.broadcast %53 : vector<1x128xf32> to vector<160x128xf32>
    %55 = arith.addf %52, %54 : vector<160x128xf32>
    %cst_19 = arith.constant 0.000000e+00 : f32
    %56 = vector.broadcast %cst_19 : f32 to vector<160x128xf32>
    %57 = arith.maximumf %55, %56 : vector<160x128xf32>
    %58 = vector.shape_cast %57 : vector<160x128xf32> to vector<10x16x128xf32>
    %59 = tpu.iota {dimensions = array<i32: 0>} : vector<10x1x1xi32>
    %c1_i32 = arith.constant 1 : i32
    %60 = arith.subi %0, %c1_i32 : i32
    %61 = vector.broadcast %60 : i32 to vector<10x1x1xi32>
    %62 = arith.addi %59, %61 : vector<10x1x1xi32>
    %c0_i32 = arith.constant 0 : i32
    %63 = vector.broadcast %c0_i32 : i32 to vector<10x1x1xi32>
    %64 = arith.cmpi sge, %62, %63 : vector<10x1x1xi32>
    %c16_i32 = arith.constant 16 : i32
    %65 = vector.broadcast %c16_i32 : i32 to vector<10x1x1xi32>
    %66 = arith.cmpi slt, %62, %65 : vector<10x1x1xi32>
    %67 = arith.andi %64, %66 : vector<10x1x1xi1>
    %cst_20 = arith.constant 0.000000e+00 : f32
    %68 = vector.shape_cast %67 : vector<10x1x1xi1> to vector<10x1x1xi1>
    %69 = vector.broadcast %68 : vector<10x1x1xi1> to vector<10x16x128xi1>
    %70 = vector.broadcast %cst_20 : f32 to vector<10x16x128xf32>
    %71 = arith.select %69, %58, %70 : vector<10x16x128xi1>, vector<10x16x128xf32>
    %cst_21 = arith.constant 0.000000e+00 : f32
    %72 = vector.broadcast %cst_21 : f32 to vector<10x1x128xf32>
    %73 = tpu.concatenate %72, %71, %72 in 1 : vector<10x1x128xf32>, vector<10x16x128xf32>, vector<10x1x128xf32> -> vector<10x18x128xf32>
    %74 = vector.extract_strided_slice %73 {offsets = [0, 0, 0], sizes = [10, 16, 128], strides = [1, 1, 1]} : vector<10x18x128xf32> to vector<10x16x128xf32>
    %75 = vector.extract_strided_slice %73 {offsets = [0, 1, 0], sizes = [10, 16, 128], strides = [1, 1, 1]} : vector<10x18x128xf32> to vector<10x16x128xf32>
    %76 = vector.extract_strided_slice %73 {offsets = [0, 2, 0], sizes = [10, 16, 128], strides = [1, 1, 1]} : vector<10x18x128xf32> to vector<10x16x128xf32>
    %cst_22 = arith.constant 0.000000e+00 : f32
    %77 = vector.broadcast %cst_22 : f32 to vector<128x128xf32>
    %78 = vector.extract_strided_slice %74 {offsets = [0, 0, 0], sizes = [8, 16, 128], strides = [1, 1, 1]} : vector<10x16x128xf32> to vector<8x16x128xf32>
    %79 = vector.extract_strided_slice %75 {offsets = [0, 0, 0], sizes = [8, 16, 128], strides = [1, 1, 1]} : vector<10x16x128xf32> to vector<8x16x128xf32>
    %80 = vector.extract_strided_slice %76 {offsets = [0, 0, 0], sizes = [8, 16, 128], strides = [1, 1, 1]} : vector<10x16x128xf32> to vector<8x16x128xf32>
    %81 = tpu.concatenate %78, %79, %80 in 2 : vector<8x16x128xf32>, vector<8x16x128xf32>, vector<8x16x128xf32> -> vector<8x16x384xf32>
    %82 = vector.shape_cast %81 : vector<8x16x384xf32> to vector<128x384xf32>
    %c0_23 = arith.constant 0 : index
    %c0_24 = arith.constant 0 : index
    %c0_25 = arith.constant 0 : index
    %83 = vector.load %arg7[%c0_23, %c0_24, %c0_25] : memref<3x384x128xf32, #tpu.memory_space<vmem>>, vector<1x384x128xf32>
    %84 = vector.shape_cast %83 : vector<1x384x128xf32> to vector<384x128xf32>
    %cst_26 = arith.constant dense<0.000000e+00> : vector<128x128xf32>
    %85 = tpu.matmul %82, %84, %cst_26 {dimension_numbers = #tpu.dot_dimension_numbers<[1], [0], [0], [1], [0, 0, 1, 1], [], []>} : vector<128x384xf32>, vector<384x128xf32>, vector<128x128xf32> -> vector<128x128xf32>
    %86 = arith.addf %77, %85 : vector<128x128xf32>
    %87 = vector.extract_strided_slice %74 {offsets = [1, 0, 0], sizes = [8, 16, 128], strides = [1, 1, 1]} : vector<10x16x128xf32> to vector<8x16x128xf32>
    %88 = vector.extract_strided_slice %75 {offsets = [1, 0, 0], sizes = [8, 16, 128], strides = [1, 1, 1]} : vector<10x16x128xf32> to vector<8x16x128xf32>
    %89 = vector.extract_strided_slice %76 {offsets = [1, 0, 0], sizes = [8, 16, 128], strides = [1, 1, 1]} : vector<10x16x128xf32> to vector<8x16x128xf32>
    %90 = tpu.concatenate %87, %88, %89 in 2 : vector<8x16x128xf32>, vector<8x16x128xf32>, vector<8x16x128xf32> -> vector<8x16x384xf32>
    %91 = vector.shape_cast %90 : vector<8x16x384xf32> to vector<128x384xf32>
    %c1_27 = arith.constant 1 : index
    %c0_28 = arith.constant 0 : index
    %c0_29 = arith.constant 0 : index
    %92 = vector.load %arg7[%c1_27, %c0_28, %c0_29] : memref<3x384x128xf32, #tpu.memory_space<vmem>>, vector<1x384x128xf32>
    %93 = vector.shape_cast %92 : vector<1x384x128xf32> to vector<384x128xf32>
    %cst_30 = arith.constant dense<0.000000e+00> : vector<128x128xf32>
    %94 = tpu.matmul %91, %93, %cst_30 {dimension_numbers = #tpu.dot_dimension_numbers<[1], [0], [0], [1], [0, 0, 1, 1], [], []>} : vector<128x384xf32>, vector<384x128xf32>, vector<128x128xf32> -> vector<128x128xf32>
    %95 = arith.addf %86, %94 : vector<128x128xf32>
    %96 = vector.extract_strided_slice %74 {offsets = [2, 0, 0], sizes = [8, 16, 128], strides = [1, 1, 1]} : vector<10x16x128xf32> to vector<8x16x128xf32>
    %97 = vector.extract_strided_slice %75 {offsets = [2, 0, 0], sizes = [8, 16, 128], strides = [1, 1, 1]} : vector<10x16x128xf32> to vector<8x16x128xf32>
    %98 = vector.extract_strided_slice %76 {offsets = [2, 0, 0], sizes = [8, 16, 128], strides = [1, 1, 1]} : vector<10x16x128xf32> to vector<8x16x128xf32>
    %99 = tpu.concatenate %96, %97, %98 in 2 : vector<8x16x128xf32>, vector<8x16x128xf32>, vector<8x16x128xf32> -> vector<8x16x384xf32>
    %100 = vector.shape_cast %99 : vector<8x16x384xf32> to vector<128x384xf32>
    %c2_31 = arith.constant 2 : index
    %c0_32 = arith.constant 0 : index
    %c0_33 = arith.constant 0 : index
    %101 = vector.load %arg7[%c2_31, %c0_32, %c0_33] : memref<3x384x128xf32, #tpu.memory_space<vmem>>, vector<1x384x128xf32>
    %102 = vector.shape_cast %101 : vector<1x384x128xf32> to vector<384x128xf32>
    %cst_34 = arith.constant dense<0.000000e+00> : vector<128x128xf32>
    %103 = tpu.matmul %100, %102, %cst_34 {dimension_numbers = #tpu.dot_dimension_numbers<[1], [0], [0], [1], [0, 0, 1, 1], [], []>} : vector<128x384xf32>, vector<384x128xf32>, vector<128x128xf32> -> vector<128x128xf32>
    %104 = arith.addf %95, %103 : vector<128x128xf32>
    %c0_35 = arith.constant 0 : index
    %c0_36 = arith.constant 0 : index
    %105 = vector.load %arg8[%c0_35, %c0_36] : memref<1x128xf32, #tpu.memory_space<vmem>>, vector<1x128xf32>
    %106 = vector.broadcast %105 : vector<1x128xf32> to vector<128x128xf32>
    %107 = arith.mulf %104, %106 : vector<128x128xf32>
    %c0_37 = arith.constant 0 : index
    %c0_38 = arith.constant 0 : index
    %108 = vector.load %arg9[%c0_37, %c0_38] : memref<1x128xf32, #tpu.memory_space<vmem>>, vector<1x128xf32>
    %109 = vector.broadcast %108 : vector<1x128xf32> to vector<128x128xf32>
    %110 = arith.addf %107, %109 : vector<128x128xf32>
    %cst_39 = arith.constant 0.000000e+00 : f32
    %111 = vector.broadcast %cst_39 : f32 to vector<128x128xf32>
    %112 = arith.maximumf %110, %111 : vector<128x128xf32>
    %c0_40 = arith.constant 0 : index
    %c0_41 = arith.constant 0 : index
    %113 = vector.load %arg10[%c0_40, %c0_41] : memref<128x128xf32, #tpu.memory_space<vmem>>, vector<128x128xf32>
    %cst_42 = arith.constant dense<0.000000e+00> : vector<128x128xf32>
    %114 = tpu.matmul %112, %113, %cst_42 {dimension_numbers = #tpu.dot_dimension_numbers<[1], [0], [0], [1], [0, 0, 1, 1], [], []>} : vector<128x128xf32>, vector<128x128xf32>, vector<128x128xf32> -> vector<128x128xf32>
    %c0_43 = arith.constant 0 : index
    %c0_44 = arith.constant 0 : index
    %115 = vector.load %arg11[%c0_43, %c0_44] : memref<1x128xf32, #tpu.memory_space<vmem>>, vector<1x128xf32>
    %116 = vector.broadcast %115 : vector<1x128xf32> to vector<128x128xf32>
    %117 = arith.addf %114, %116 : vector<128x128xf32>
    %c0_45 = arith.constant 0 : index
    %c0_46 = arith.constant 0 : index
    %c0_47 = arith.constant 0 : index
    %118 = vector.load %arg12[%c0_45, %c0_46, %c0_47] : memref<1x128x128xf32, #tpu.memory_space<vmem>>, vector<1x128x128xf32>
    %119 = vector.shape_cast %118 : vector<1x128x128xf32> to vector<128x128xf32>
    %120 = vector.shape_cast %117 : vector<128x128xf32> to vector<1x128x128xf32>
    tpu.vector_store %arg12[%c0_45, %c0_46, %c0_47], %120 {strides = array<i32>} : memref<1x128x128xf32, #tpu.memory_space<vmem>>, vector<1x128x128xf32>,
    return
  }
  func.func @transform_0(%arg0: i32, %arg1: i32) -> (i32, i32, i32, i32) {
    %c0_i32 = arith.constant 0 : i32
    %c0_i32_0 = arith.constant 0 : i32
    %c0_i32_1 = arith.constant 0 : i32
    %c0_i32_2 = arith.constant 0 : i32
    return %arg0, %c0_i32, %c0_i32_0, %c0_i32_1 : i32, i32, i32, i32
  }
  func.func @transform_1(%arg0: i32, %arg1: i32) -> (i32, i32, i32, i32) {
    %c0_i32 = arith.constant 0 : i32
    %c0_i32_0 = arith.constant 0 : i32
    %c0_i32_1 = arith.constant 0 : i32
    %c0_i32_2 = arith.constant 0 : i32
    return %arg0, %c0_i32, %c0_i32_0, %c0_i32_1 : i32, i32, i32, i32
  }
  func.func @transform_2(%arg0: i32, %arg1: i32) -> (i32, i32, i32) {
    %c0_i32 = arith.constant 0 : i32
    %c0_i32_0 = arith.constant 0 : i32
    %c0_i32_1 = arith.constant 0 : i32
    %c0_i32_2 = arith.constant 0 : i32
    return %c0_i32, %c0_i32_0, %c0_i32_1 : i32, i32, i32
  }
  func.func @transform_3(%arg0: i32, %arg1: i32) -> (i32, i32) {
    %c0_i32 = arith.constant 0 : i32
    %c0_i32_0 = arith.constant 0 : i32
    %c0_i32_1 = arith.constant 0 : i32
    return %c0_i32, %c0_i32_0 : i32, i32
  }
  func.func @transform_4(%arg0: i32, %arg1: i32) -> (i32, i32) {
    %c0_i32 = arith.constant 0 : i32
    %c0_i32_0 = arith.constant 0 : i32
    %c0_i32_1 = arith.constant 0 : i32
    return %c0_i32, %c0_i32_0 : i32, i32
  }
  func.func @transform_5(%arg0: i32, %arg1: i32) -> (i32, i32, i32) {
    %c0_i32 = arith.constant 0 : i32
    %c0_i32_0 = arith.constant 0 : i32
    %c0_i32_1 = arith.constant 0 : i32
    %c0_i32_2 = arith.constant 0 : i32
    return %c0_i32, %c0_i32_0, %c0_i32_1 : i32, i32, i32
  }
  func.func @transform_6(%arg0: i32, %arg1: i32) -> (i32, i32) {
    %c0_i32 = arith.constant 0 : i32
    %c0_i32_0 = arith.constant 0 : i32
    %c0_i32_1 = arith.constant 0 : i32
    return %c0_i32, %c0_i32_0 : i32, i32
  }
  func.func @transform_7(%arg0: i32, %arg1: i32) -> (i32, i32) {
    %c0_i32 = arith.constant 0 : i32
    %c0_i32_0 = arith.constant 0 : i32
    %c0_i32_1 = arith.constant 0 : i32
    return %c0_i32, %c0_i32_0 : i32, i32
  }
  func.func @transform_8(%arg0: i32, %arg1: i32) -> (i32, i32) {
    %c0_i32 = arith.constant 0 : i32
    %c0_i32_0 = arith.constant 0 : i32
    %c0_i32_1 = arith.constant 0 : i32
    return %c0_i32, %c0_i32_0 : i32, i32
  }
  func.func @transform_9(%arg0: i32, %arg1: i32) -> (i32, i32) {
    %c0_i32 = arith.constant 0 : i32
    %c0_i32_0 = arith.constant 0 : i32
    %c0_i32_1 = arith.constant 0 : i32
    return %c0_i32, %c0_i32_0 : i32, i32
  }
  func.func @transform_10(%arg0: i32, %arg1: i32) -> (i32, i32, i32) {
    %c0_i32 = arith.constant 0 : i32
    %c0_i32_0 = arith.constant 0 : i32
    return %arg0, %arg1, %c0_i32 : i32, i32, i32
  }
}

</mosaic_0001>

<llo_original>
// kernel: tile.8
$region0: #{tile.8}
  #allocation0 [shape = 's32[1]{0}', space=sflag, size = 0x4, scoped, tag = 'scoped memory for tile.8']
  %s0 = inlined_call_operand.vmem [shape: f32[32], index: 0, kind: input, shape index: {}]
  %s1 = inlined_call_operand.vmem [shape: f32[4,32], index: 1, kind: output, shape index: {}]
  // Predicated region
  $region2: #{tile.8} parent=0 // pred_check
    _
  $region3: #{tile.8} parent=0 // pred_check_branch
    %3 = sbr.rel (0) target = $region5
  $region4: #{tile.8} parent=0 // pred_region
    _
  $region5: #{tile.8} parent=0 // pred_fallthru
    _
  %v4 = vld [vmem:[%s0] ss:$0 sm:$0xff]
  %5 = vst [vmem:[%s1] sm:$0xf] %v4

// kernel: tile.9
$region0: #{tile.9}
  %s0 = inlined_call_operand.vmem [shape: f32[4,32], index: 0, kind: input, shape index: {}]
  %s1 = inlined_call_operand.vmem [shape: f32[1,128], index: 1, kind: output, shape index: {}]
  $region1: #{tile.9} parent=0
    #allocation0 [shape = 'u8[4096]{0}', space=vmem, size = 0x1000, scoped, tag = 'scoped mem for output reshape']
    #allocation1 [shape = 'u8[4096]{0}', space=vmem, size = 0x1000, scoped, tag = 'scoped mem for input reshape']
    %s3 = sshllo.u32 0, 4
    %v4 = vld [vmem:[%s0] sm:%s3]
    %5 = vst [vmem:[#allocation1] sm:%s3] %v4
    %v6 = vld [vmem:[#allocation1] sm:$0x1]
    %vm7 = vcmask 261120
    %8 = vst.msk [vmem:[#allocation0] sm:$0x1] %vm7, %v6
    %s9 = scalar_lea.vmem [#allocation1], 3
    %v10 = vld [vmem:[%s9] sm:$0x1]
    %11 = vrot.lane.b32.xlu0 %v10, 96
    %v12 = vpop.permute.xlu0 %11
    %vm13 = vcmask 1048320
    %14 = vst.msk [vmem:[#allocation0] sm:$0x1] %vm13, %v12
    %s15 = scalar_lea.vmem [#allocation1], 2
    %v16 = vld [vmem:[%s15] sm:$0x1]
    %17 = vrot.lane.b32.xlu0 %v16, 64
    %v18 = vpop.permute.xlu0 %17
    %vm19 = vcmask 785920
    %20 = vst.msk [vmem:[#allocation0] sm:$0x1] %vm19, %v18
    %s21 = scalar_lea.vmem [#allocation1], 1
    %v22 = vld [vmem:[%s21] sm:$0x1]
    %23 = vrot.lane.b32.xlu0 %v22, 32
    %v24 = vpop.permute.xlu0 %23
    %vm25 = vcmask 523520
    %26 = vst.msk [vmem:[#allocation0] sm:$0x1] %vm25, %v24
    %s28 = sshllo.u32 0, 1
    %v30 = vld [vmem:[#allocation0] sm:%s28]
    %s31 = sshllo.u32 0, 1
    %32 = vst [vmem:[%s1] sm:%s31] %v30

// kernel: unet_decoder_block_forward.1
$region0: #{unet_decoder_block_forward.1}
  #allocation0 [shape = 'u32[]', space=smem, size = 0x4, offset = 0x4, fixed_abs, tag = 'smem constant byte address 0x4 - core index']
  #allocation1 [shape = 'u32[144,128]{1,0:T(1,128)}', space=vmem, size = 0x12000, scoped, tag = 'internal scratch']
  %s0 = inlined_call_operand.vmem [shape: f32[2,20,18,128], index: 0, kind: input, shape index: {}]
  %s1 = inlined_call_operand.vmem [shape: f32[2,20,18,128], index: 1, kind: input, shape index: {}]
  %s2 = inlined_call_operand.vmem [shape: f32[3,768,128], index: 2, kind: input, shape index: {}]
  %s3 = inlined_call_operand.vmem [shape: f32[1,128], index: 3, kind: input, shape index: {}]
  %s4 = inlined_call_operand.vmem [shape: f32[1,128], index: 4, kind: input, shape index: {}]
  %s5 = inlined_call_operand.vmem [shape: f32[3,384,128], index: 5, kind: input, shape index: {}]
  %s6 = inlined_call_operand.vmem [shape: f32[1,128], index: 6, kind: input, shape index: {}]
  %s7 = inlined_call_operand.vmem [shape: f32[1,128], index: 7, kind: input, shape index: {}]
  %s8 = inlined_call_operand.vmem [shape: f32[128,128], index: 8, kind: input, shape index: {}]
  %s9 = inlined_call_operand.vmem [shape: f32[1,128], index: 9, kind: input, shape index: {}]
  %s10 = inlined_call_operand.vmem [shape: f32[2,256,128], index: 10, kind: output, shape index: {}]
  %s11 = sld [smem:[#allocation0]]
  $region73: #{unet_decoder_block_forward.1} parent=0
    _
  %s13 = ssub.s32 1, %s11
  %s14 = scalar_select 0, %s13, %s11
  loop: start=0, step=1, limit=6
  $region2: #{unet_decoder_block_forward.1} parent=0 // loop_pre_header
    _
  $region3: #{unet_decoder_block_forward.1} parent=0 // loop_header
    %s16 = sphi 0, %s20
    %p17 = scmp.ge.s32.totalorder %s16, 6
    %s23 = sphi 0, %s35
    %s24 = sphi 0, %s31
    %s25 = sphi 0, %s23
    %s26 = sphi 0, %s24
    %s27 = sphi 0, %s25
    %s28 = sphi 0, %s26
    %s38 = sphi 0, %s40
    %s41 = sphi 0, %s38
    %s42 = sphi 0, %s41
    %s58 = sphi 0, %s42
    %s64 = sphi 0, %s66
    %s67 = sphi 0, %s64
    %s68 = sphi 0, %s67
    %s84 = sphi 0, %s68
    %s88 = sphi 0, %s88
    %s90 = sphi 0, %s88
    %s91 = sphi 0, %s90
    %s105 = sphi 0, %s91
    %s109 = sphi 0, %s109
    %s111 = sphi 0, %s109
    %s112 = sphi 0, %s111
    %s126 = sphi 0, %s112
    %s130 = sphi 0, %s130
    %s132 = sphi 0, %s130
    %s133 = sphi 0, %s132
    %s147 = sphi 0, %s133
    %s151 = sphi 0, %s151
    %s153 = sphi 0, %s151
    %s154 = sphi 0, %s153
    %s168 = sphi 0, %s154
    %s172 = sphi 0, %s172
    %s174 = sphi 0, %s172
    %s175 = sphi 0, %s174
    %s189 = sphi 0, %s175
    %s193 = sphi 0, %s193
    %s195 = sphi 0, %s193
    %s196 = sphi 0, %s195
    %s210 = sphi 0, %s196
    %s214 = sphi 0, %s214
    %s216 = sphi 0, %s214
    %s217 = sphi 0, %s216
    %s231 = sphi 0, %s217
    %s235 = sphi 0, %s235
    %s237 = sphi 0, %s235
    %s238 = sphi 0, %s237
    %s252 = sphi 0, %s238
    %s260 = sphi 0, %s262
    %s263 = sphi 0, %s260
    %s264 = sphi 0, %s263
    %s280 = sphi 0, %s264
  $region4: #{unet_decoder_block_forward.1} parent=0 // loop_header_branch
    %19 = sbr.rel (%p17) target = $region8
  $region5: #{unet_decoder_block_forward.1} parent=0 // loop_body
    %s21 = ssub.s32 %s16, 1
    %s22 = ssub.s32 %s16, 2
    %s29 = sadd.s32 1, %s24
    %p30 = scmp.ge.s32.totalorder %s29, 2
    %s31 = scalar_select %p30, 0, %s29
    %s32 = sadd.s32 1, %s23
    %s33 = scalar_select %p30, %s32, %s23
    %p34 = scmp.ge.s32.totalorder %s33, 2
    %s35 = scalar_select %p34, 0, %s33
    %s36 = ssub.s32 %s23, %s35
    %p37 = scmp.eq.s32.totalorder %s36, 0
    %s39 = sadd.s32 %s38, 1
    %s40 = scalar_select %p37, %s38, %s39
    %p43 = pneg %p37
    %p44 = scmp.eq.s32.totalorder %s16, 3
    %p45 = por %p43, %p44
    %p46 = scmp.ne.s32.totalorder %s38, %s41
    %p47 = scmp.eq.s32.totalorder %s16, 0
    %p48 = por %p46, %p47
    %p49 = scmp.ne.s32.totalorder %s38, %s41
    %p50 = scmp.eq.s32.totalorder %s21, 3
    %p51 = por %p49, %p50
    %p52 = scmp.ne.s32.totalorder %s41, %s42
    %p53 = scmp.eq.s32.totalorder %s21, 0
    %p54 = por %p52, %p53
    %p55 = scmp.ne.s32.totalorder %s41, %s42
    %p56 = scmp.eq.s32.totalorder %s22, 3
    %p57 = por %p55, %p56
    %p59 = scmp.ne.s32.totalorder %s42, %s58
    %p60 = scmp.eq.s32.totalorder %s22, 0
    %p61 = por %p59, %p60
    %s62 = ssub.s32 %s23, %s35
    %p63 = scmp.eq.s32.totalorder %s62, 0
    %s65 = sadd.s32 %s64, 1
    %s66 = scalar_select %p63, %s64, %s65
    %p69 = pneg %p63
    %p70 = scmp.eq.s32.totalorder %s16, 3
    %p71 = por %p69, %p70
    %p72 = scmp.ne.s32.totalorder %s64, %s67
    %p73 = scmp.eq.s32.totalorder %s16, 0
    %p74 = por %p72, %p73
    %p75 = scmp.ne.s32.totalorder %s64, %s67
    %p76 = scmp.eq.s32.totalorder %s21, 3
    %p77 = por %p75, %p76
    %p78 = scmp.ne.s32.totalorder %s67, %s68
    %p79 = scmp.eq.s32.totalorder %s21, 0
    %p80 = por %p78, %p79
    %p81 = scmp.ne.s32.totalorder %s67, %s68
    %p82 = scmp.eq.s32.totalorder %s22, 3
    %p83 = por %p81, %p82
    %p85 = scmp.ne.s32.totalorder %s68, %s84
    %p86 = scmp.eq.s32.totalorder %s22, 0
    %p87 = por %p85, %p86
    %s89 = sadd.s32 %s88, 1
    %p92 = scmp.eq.s32.totalorder %s16, 3
    %p93 = scmp.ne.s32.totalorder %s88, %s90
    %p94 = scmp.eq.s32.totalorder %s16, 0
    %p95 = por %p93, %p94
    %p96 = scmp.ne.s32.totalorder %s88, %s90
    %p97 = scmp.eq.s32.totalorder %s21, 3
    %p98 = por %p96, %p97
    %p99 = scmp.ne.s32.totalorder %s90, %s91
    %p100 = scmp.eq.s32.totalorder %s21, 0
    %p101 = por %p99, %p100
    %p102 = scmp.ne.s32.totalorder %s90, %s91
    %p103 = scmp.eq.s32.totalorder %s22, 3
    %p104 = por %p102, %p103
    %p106 = scmp.ne.s32.totalorder %s91, %s105
    %p107 = scmp.eq.s32.totalorder %s22, 0
    %p108 = por %p106, %p107
    %s110 = sadd.s32 %s109, 1
    %p113 = scmp.eq.s32.totalorder %s16, 3
    %p114 = scmp.ne.s32.totalorder %s109, %s111
    %p115 = scmp.eq.s32.totalorder %s16, 0
    %p116 = por %p114, %p115
    %p117 = scmp.ne.s32.totalorder %s109, %s111
    %p118 = scmp.eq.s32.totalorder %s21, 3
    %p119 = por %p117, %p118
    %p120 = scmp.ne.s32.totalorder %s111, %s112
    %p121 = scmp.eq.s32.totalorder %s21, 0
    %p122 = por %p120, %p121
    %p123 = scmp.ne.s32.totalorder %s111, %s112
    %p124 = scmp.eq.s32.totalorder %s22, 3
    %p125 = por %p123, %p124
    %p127 = scmp.ne.s32.totalorder %s112, %s126
    %p128 = scmp.eq.s32.totalorder %s22, 0
    %p129 = por %p127, %p128
    %s131 = sadd.s32 %s130, 1
    %p134 = scmp.eq.s32.totalorder %s16, 3
    %p135 = scmp.ne.s32.totalorder %s130, %s132
    %p136 = scmp.eq.s32.totalorder %s16, 0
    %p137 = por %p135, %p136
    %p138 = scmp.ne.s32.totalorder %s130, %s132
    %p139 = scmp.eq.s32.totalorder %s21, 3
    %p140 = por %p138, %p139
    %p141 = scmp.ne.s32.totalorder %s132, %s133
    %p142 = scmp.eq.s32.totalorder %s21, 0
    %p143 = por %p141, %p142
    %p144 = scmp.ne.s32.totalorder %s132, %s133
    %p145 = scmp.eq.s32.totalorder %s22, 3
    %p146 = por %p144, %p145
    %p148 = scmp.ne.s32.totalorder %s133, %s147
    %p149 = scmp.eq.s32.totalorder %s22, 0
    %p150 = por %p148, %p149
    %s152 = sadd.s32 %s151, 1
    %p155 = scmp.eq.s32.totalorder %s16, 3
    %p156 = scmp.ne.s32.totalorder %s151, %s153
    %p157 = scmp.eq.s32.totalorder %s16, 0
    %p158 = por %p156, %p157
    %p159 = scmp.ne.s32.totalorder %s151, %s153
    %p160 = scmp.eq.s32.totalorder %s21, 3
    %p161 = por %p159, %p160
    %p162 = scmp.ne.s32.totalorder %s153, %s154
    %p163 = scmp.eq.s32.totalorder %s21, 0
    %p164 = por %p162, %p163
    %p165 = scmp.ne.s32.totalorder %s153, %s154
    %p166 = scmp.eq.s32.totalorder %s22, 3
    %p167 = por %p165, %p166
    %p169 = scmp.ne.s32.totalorder %s154, %s168
    %p170 = scmp.eq.s32.totalorder %s22, 0
    %p171 = por %p169, %p170
    %s173 = sadd.s32 %s172, 1
    %p176 = scmp.eq.s32.totalorder %s16, 3
    %p177 = scmp.ne.s32.totalorder %s172, %s174
    %p178 = scmp.eq.s32.totalorder %s16, 0
    %p179 = por %p177, %p178
    %p180 = scmp.ne.s32.totalorder %s172, %s174
    %p181 = scmp.eq.s32.totalorder %s21, 3
    %p182 = por %p180, %p181
    %p183 = scmp.ne.s32.totalorder %s174, %s175
    %p184 = scmp.eq.s32.totalorder %s21, 0
    %p185 = por %p183, %p184
    %p186 = scmp.ne.s32.totalorder %s174, %s175
    %p187 = scmp.eq.s32.totalorder %s22, 3
    %p188 = por %p186, %p187
    %p190 = scmp.ne.s32.totalorder %s175, %s189
    %p191 = scmp.eq.s32.totalorder %s22, 0
    %p192 = por %p190, %p191
    %s194 = sadd.s32 %s193, 1
    %p197 = scmp.eq.s32.totalorder %s16, 3
    %p198 = scmp.ne.s32.totalorder %s193, %s195
    %p199 = scmp.eq.s32.totalorder %s16, 0
    %p200 = por %p198, %p199
    %p201 = scmp.ne.s32.totalorder %s193, %s195
    %p202 = scmp.eq.s32.totalorder %s21, 3
    %p203 = por %p201, %p202
    %p204 = scmp.ne.s32.totalorder %s195, %s196
    %p205 = scmp.eq.s32.totalorder %s21, 0
    %p206 = por %p204, %p205
    %p207 = scmp.ne.s32.totalorder %s195, %s196
    %p208 = scmp.eq.s32.totalorder %s22, 3
    %p209 = por %p207, %p208
    %p211 = scmp.ne.s32.totalorder %s196, %s210
    %p212 = scmp.eq.s32.totalorder %s22, 0
    %p213 = por %p211, %p212
    %s215 = sadd.s32 %s214, 1
    %p218 = scmp.eq.s32.totalorder %s16, 3
    %p219 = scmp.ne.s32.totalorder %s214, %s216
    %p220 = scmp.eq.s32.totalorder %s16, 0
    %p221 = por %p219, %p220
    %p222 = scmp.ne.s32.totalorder %s214, %s216
    %p223 = scmp.eq.s32.totalorder %s21, 3
    %p224 = por %p222, %p223
    %p225 = scmp.ne.s32.totalorder %s216, %s217
    %p226 = scmp.eq.s32.totalorder %s21, 0
    %p227 = por %p225, %p226
    %p228 = scmp.ne.s32.totalorder %s216, %s217
    %p229 = scmp.eq.s32.totalorder %s22, 3
    %p230 = por %p228, %p229
    %p232 = scmp.ne.s32.totalorder %s217, %s231
    %p233 = scmp.eq.s32.totalorder %s22, 0
    %p234 = por %p232, %p233
    %s236 = sadd.s32 %s235, 1
    %p239 = scmp.eq.s32.totalorder %s16, 3
    %p240 = scmp.ne.s32.totalorder %s235, %s237
    %p241 = scmp.eq.s32.totalorder %s16, 0
    %p242 = por %p240, %p241
    %p243 = scmp.ne.s32.totalorder %s235, %s237
    %p244 = scmp.eq.s32.totalorder %s21, 3
    %p245 = por %p243, %p244
    %p246 = scmp.ne.s32.totalorder %s237, %s238
    %p247 = scmp.eq.s32.totalorder %s21, 0
    %p248 = por %p246, %p247
    %p249 = scmp.ne.s32.totalorder %s237, %s238
    %p250 = scmp.eq.s32.totalorder %s22, 3
    %p251 = por %p249, %p250
    %p253 = scmp.ne.s32.totalorder %s238, %s252
    %p254 = scmp.eq.s32.totalorder %s22, 0
    %p255 = por %p253, %p254
    %s256 = ssub.s32 %s23, %s35
    %s257 = ssub.s32 %s24, %s31
    %s258 = sor.u32 %s256, %s257
    %p259 = scmp.eq.s32.totalorder %s258, 0
    %s261 = sadd.s32 %s260, 1
    %s262 = scalar_select %p259, %s260, %s261
    %p265 = pneg %p259
    %p266 = scmp.eq.s32.totalorder %s16, 3
    %p267 = por %p265, %p266
    %p268 = scmp.ne.s32.totalorder %s260, %s263
    %p269 = scmp.eq.s32.totalorder %s16, 0
    %p270 = por %p268, %p269
    %p271 = scmp.ne.s32.totalorder %s260, %s263
    %p272 = scmp.eq.s32.totalorder %s21, 3
    %p273 = por %p271, %p272
    %p274 = scmp.ne.s32.totalorder %s263, %s264
    %p275 = scmp.eq.s32.totalorder %s21, 0
    %p276 = por %p274, %p275
    %p277 = scmp.ne.s32.totalorder %s263, %s264
    %p278 = scmp.eq.s32.totalorder %s22, 3
    %p279 = por %p277, %p278
    %p281 = scmp.ne.s32.totalorder %s264, %s280
    %p282 = scmp.eq.s32.totalorder %s22, 0
    %p283 = por %p281, %p282
    %p284 = scmp.le.s32.totalorder 1, %s16
    %p285 = scmp.lt.s32.totalorder %s16, 5
    %p286 = pnand %p284, %p285
    %p287 = pneg %p286
    // Predicated region
    $region9: #{unet_decoder_block_forward.1} parent=5 // pred_check
      _
    $region10: #{unet_decoder_block_forward.1} parent=5 // pred_check_branch
      %289 = sbr.rel (%p286) target = $region12
    $region11: #{unet_decoder_block_forward.1} parent=5 // pred_region
      %s290 = ssub.s32 %s16, 1
      // Predicated region
      $region13: #{unet_decoder_block_forward.1} parent=11 // pred_check
        %p291 = pneg %p101
      $region14: #{unet_decoder_block_forward.1} parent=11 // pred_check_branch
        %293 = sbr.rel (%p291) target = $region16
      $region15: #{unet_decoder_block_forward.1} parent=11 // pred_region
        _
      $region16: #{unet_decoder_block_forward.1} parent=11 // pred_fallthru
        _
      // Predicated region
      $region17: #{unet_decoder_block_forward.1} parent=11 // pred_check
        %p294 = pneg %p122
      $region18: #{unet_decoder_block_forward.1} parent=11 // pred_check_branch
        %296 = sbr.rel (%p294) target = $region20
      $region19: #{unet_decoder_block_forward.1} parent=11 // pred_region
        _
      $region20: #{unet_decoder_block_forward.1} parent=11 // pred_fallthru
        _
      // Predicated region
      $region21: #{unet_decoder_block_forward.1} parent=11 // pred_check
        %p297 = pneg %p143
      $region22: #{unet_decoder_block_forward.1} parent=11 // pred_check_branch
        %299 = sbr.rel (%p297) target = $region24
      $region23: #{unet_decoder_block_forward.1} parent=11 // pred_region
        _
      $region24: #{unet_decoder_block_forward.1} parent=11 // pred_fallthru
        _
      // Predicated region
      $region25: #{unet_decoder_block_forward.1} parent=11 // pred_check
        %p300 = pneg %p164
      $region26: #{unet_decoder_block_forward.1} parent=11 // pred_check_branch
        %302 = sbr.rel (%p300) target = $region28
      $region27: #{unet_decoder_block_forward.1} parent=11 // pred_region
        _
      $region28: #{unet_decoder_block_forward.1} parent=11 // pred_fallthru
        _
      // Predicated region
      $region29: #{unet_decoder_block_forward.1} parent=11 // pred_check
        %p303 = pneg %p185
      $region30: #{unet_decoder_block_forward.1} parent=11 // pred_check_branch
        %305 = sbr.rel (%p303) target = $region32
      $region31: #{unet_decoder_block_forward.1} parent=11 // pred_region
        _
      $region32: #{unet_decoder_block_forward.1} parent=11 // pred_fallthru
        _
      // Predicated region
      $region33: #{unet_decoder_block_forward.1} parent=11 // pred_check
        %p306 = pneg %p206
      $region34: #{unet_decoder_block_forward.1} parent=11 // pred_check_branch
        %308 = sbr.rel (%p306) target = $region36
      $region35: #{unet_decoder_block_forward.1} parent=11 // pred_region
        _
      $region36: #{unet_decoder_block_forward.1} parent=11 // pred_fallthru
        _
      // Predicated region
      $region37: #{unet_decoder_block_forward.1} parent=11 // pred_check
        %p309 = pneg %p227
      $region38: #{unet_decoder_block_forward.1} parent=11 // pred_check_branch
        %311 = sbr.rel (%p309) target = $region40
      $region39: #{unet_decoder_block_forward.1} parent=11 // pred_region
        _
      $region40: #{unet_decoder_block_forward.1} parent=11 // pred_fallthru
        _
      // Predicated region
      $region41: #{unet_decoder_block_forward.1} parent=11 // pred_check
        %p312 = pneg %p248
      $region42: #{unet_decoder_block_forward.1} parent=11 // pred_check_branch
        %314 = sbr.rel (%p312) target = $region44
      $region43: #{unet_decoder_block_forward.1} parent=11 // pred_region
        _
      $region44: #{unet_decoder_block_forward.1} parent=11 // pred_fallthru
        _
    $region12: #{unet_decoder_block_forward.1} parent=5 // pred_fallthru
      _
    %p315 = scmp.lt.s32.totalorder %s16, 4
    // Predicated region
    $region45: #{unet_decoder_block_forward.1} parent=5 // pred_check
      %p316 = pneg %p315
    $region46: #{unet_decoder_block_forward.1} parent=5 // pred_check_branch
      %318 = sbr.rel (%p316) target = $region48
    $region47: #{unet_decoder_block_forward.1} parent=5 // pred_region
      // Predicated region
      $region49: #{unet_decoder_block_forward.1} parent=47 // pred_check
        %p319 = pneg %p48
      $region50: #{unet_decoder_block_forward.1} parent=47 // pred_check_branch
        %321 = sbr.rel (%p319) target = $region52
      $region51: #{unet_decoder_block_forward.1} parent=47 // pred_region
        %p322 = scmp.lt.s32.totalorder %s23, 1
        %s323 = scalar_select %p322, %s23, 1
        %s324 = smul.addr %s323, 60
        %s325 = smul.addr %s324, 8
        %s326 = scalar_lea.vmem %s0, %s325
      $region52: #{unet_decoder_block_forward.1} parent=47 // pred_fallthru
        _
      // Predicated region
      $region53: #{unet_decoder_block_forward.1} parent=47 // pred_check
        %p327 = pneg %p74
      $region54: #{unet_decoder_block_forward.1} parent=47 // pred_check_branch
        %329 = sbr.rel (%p327) target = $region56
      $region55: #{unet_decoder_block_forward.1} parent=47 // pred_region
        %p330 = scmp.lt.s32.totalorder %s23, 1
        %s331 = scalar_select %p330, %s23, 1
        %s332 = smul.addr %s331, 60
        %s333 = smul.addr %s332, 8
        %s334 = scalar_lea.vmem %s1, %s333
      $region56: #{unet_decoder_block_forward.1} parent=47 // pred_fallthru
        _
    $region48: #{unet_decoder_block_forward.1} parent=5 // pred_fallthru
      _
    %p335 = scmp.le.s32.totalorder 1, %s16
    %p336 = scmp.lt.s32.totalorder %s16, 5
    %p337 = pnand %p335, %p336
    %p338 = pneg %p337
    // Predicated region
    $region57: #{unet_decoder_block_forward.1} parent=5 // pred_check
      _
    $region58: #{unet_decoder_block_forward.1} parent=5 // pred_check_branch
      %340 = sbr.rel (%p337) target = $region60
    $region59: #{unet_decoder_block_forward.1} parent=5 // pred_region
      %s341 = ssub.s32 %s16, 1
      %p342 = scmp.lt.s32.totalorder %s25, 1
      %s343 = scalar_select %p342, %s25, 1
      %s344 = smul.addr %s343, 60
      %s345 = smul.addr %s344, 8
      %s346 = scalar_lea.vmem %s0, %s345
      %p347 = pneg %p54
      %p348 = pneg %p51
      %p349 = scmp.lt.s32.totalorder %s25, 1
      %s350 = scalar_select %p349, %s25, 1
      %s351 = smul.addr %s350, 60
      %s352 = smul.addr %s351, 8
      %s353 = scalar_lea.vmem %s1, %s352
      %p354 = pneg %p80
      %p355 = pneg %p77
      %p356 = pneg %p101
      %p357 = pneg %p98
      %p358 = pneg %p122
      %p359 = pneg %p119
      %p360 = pneg %p143
      %p361 = pneg %p140
      %p362 = pneg %p164
      %p363 = pneg %p161
      %p364 = pneg %p185
      %p365 = pneg %p182
      %p366 = pneg %p206
      %p367 = pneg %p203
      %p368 = pneg %p227
      %p369 = pneg %p224
      %p370 = pneg %p248
      %p371 = pneg %p245
      %p372 = pneg %p276
      %p373 = pneg %p273
      %s374 = smul.u32 16, %s26
      %p375 = scmp.lt.s32.totalorder %s25, 1
      %s376 = scalar_select %p375, %s25, 1
      %p377 = scmp.lt.s32.totalorder %s374, 31
      %s378 = scalar_select %p377, %s374, 31
      %s379 = smul.addr %s376, 32
      %s380 = sadd.s32 %s378, %s379
      %s381 = smul.addr %s380, 8
      %s382 = scalar_lea.vmem %s10, %s381
      %p383 = scmp.lt.s32.totalorder %s25, 1
      %s384 = scalar_select %p383, %s25, 1
      %s385 = smul.addr %s384, 60
      %s386 = smul.addr %s385, 8
      %s387 = scalar_lea.vmem %s0, %s386
      %p388 = scmp.lt.s32.totalorder %s25, 1
      %s389 = scalar_select %p388, %s25, 1
      %s390 = smul.addr %s389, 60
      %s391 = smul.addr %s390, 8
      %s392 = scalar_lea.vmem %s1, %s391
      %s393 = smul.u32 16, %s26
      %p394 = scmp.lt.s32.totalorder %s25, 1
      %s395 = scalar_select %p394, %s25, 1
      %p396 = scmp.lt.s32.totalorder %s393, 31
      %s397 = scalar_select %p396, %s393, 31
      %s398 = smul.addr %s395, 32
      %s399 = sadd.s32 %s397, %s398
      %s400 = smul.addr %s399, 8
      %s401 = scalar_lea.vmem %s10, %s400
      %s402 = smul.u32 16, %s26
      %s403 = smul.u32 %s26, 8
      %s404 = smul.u32 %s403, 24
      %s405 = scalar_lea.vmem %s387, %s404
      %v406 = vld [vmem:[%s405] sm:$0xff]
      %v407 = vld [vmem:[%s405 + $0x8] sm:$0xff]
      %v408 = vld [vmem:[%s405 + $0x10] sm:$0x3]
      %v409 = vld [vmem:[%s405 + $0x18] sm:$0xff]
      %v410 = vld [vmem:[%s405 + $0x20] sm:$0xff]
      %v411 = vld [vmem:[%s405 + $0x28] sm:$0x3]
      %v412 = vld [vmem:[%s405 + $0x30] sm:$0xff]
      %v413 = vld [vmem:[%s405 + $0x38] sm:$0xff]
      %v414 = vld [vmem:[%s405 + $0x40] sm:$0x3]
      %v415 = vld [vmem:[%s405 + $0x48] sm:$0xff]
      %v416 = vld [vmem:[%s405 + $0x50] sm:$0xff]
      %v417 = vld [vmem:[%s405 + $0x58] sm:$0x3]
      %v418 = vld [vmem:[%s405 + $0x60] sm:$0xff]
      %v419 = vld [vmem:[%s405 + $0x68] sm:$0xff]
      %v420 = vld [vmem:[%s405 + $0x70] sm:$0x3]
      %v421 = vld [vmem:[%s405 + $0x78] sm:$0xff]
      %v422 = vld [vmem:[%s405 + $0x80] sm:$0xff]
      %v423 = vld [vmem:[%s405 + $0x88] sm:$0x3]
      %v424 = vld [vmem:[%s405 + $0x90] sm:$0xff]
      %v425 = vld [vmem:[%s405 + $0x98] sm:$0xff]
      %v426 = vld [vmem:[%s405 + $0xa0] sm:$0x3]
      %v427 = vld [vmem:[%s405 + $0xa8] sm:$0xff]
      %v428 = vld [vmem:[%s405 + $0xb0] sm:$0xff]
      %v429 = vld [vmem:[%s405 + $0xb8] sm:$0x3]
      %v430 = vld [vmem:[%s405 + $0xc0] sm:$0xff]
      %v431 = vld [vmem:[%s405 + $0xc8] sm:$0xff]
      %v432 = vld [vmem:[%s405 + $0xd0] sm:$0x3]
      %v433 = vld [vmem:[%s405 + $0xd8] sm:$0xff]
      %v434 = vld [vmem:[%s405 + $0xe0] sm:$0xff]
      %v435 = vld [vmem:[%s405 + $0xe8] sm:$0x3]
      %v436 = vld [vmem:[%s405 + $0xf0] sm:$0xff]
      %v437 = vld [vmem:[%s405 + $0xf8] sm:$0xff]
      %v438 = vld [vmem:[%s405 + $0x100] sm:$0x3]
      %v439 = vld [vmem:[%s405 + $0x108] sm:$0xff]
      %v440 = vld [vmem:[%s405 + $0x110] sm:$0xff]
      %v441 = vld [vmem:[%s405 + $0x118] sm:$0x3]
      %s442 = scalar_lea.vmem %s392, %s404
      %v443 = vld [vmem:[%s442] sm:$0xff]
      %v444 = vld [vmem:[%s442 + $0x8] sm:$0xff]
      %v445 = vld [vmem:[%s442 + $0x10] sm:$0x3]
      %v446 = vld [vmem:[%s442 + $0x18] sm:$0xff]
      %v447 = vld [vmem:[%s442 + $0x20] sm:$0xff]
      %v448 = vld [vmem:[%s442 + $0x28] sm:$0x3]
      %v449 = vld [vmem:[%s442 + $0x30] sm:$0xff]
      %v450 = vld [vmem:[%s442 + $0x38] sm:$0xff]
      %v451 = vld [vmem:[%s442 + $0x40] sm:$0x3]
      %v452 = vld [vmem:[%s442 + $0x48] sm:$0xff]
      %v453 = vld [vmem:[%s442 + $0x50] sm:$0xff]
      %v454 = vld [vmem:[%s442 + $0x58] sm:$0x3]
      %v455 = vld [vmem:[%s442 + $0x60] sm:$0xff]
      %v456 = vld [vmem:[%s442 + $0x68] sm:$0xff]
      %v457 = vld [vmem:[%s442 + $0x70] sm:$0x3]
      %v458 = vld [vmem:[%s442 + $0x78] sm:$0xff]
      %v459 = vld [vmem:[%s442 + $0x80] sm:$0xff]
      %v460 = vld [vmem:[%s442 + $0x88] sm:$0x3]
      %v461 = vld [vmem:[%s442 + $0x90] sm:$0xff]
      %v462 = vld [vmem:[%s442 + $0x98] sm:$0xff]
      %v463 = vld [vmem:[%s442 + $0xa0] sm:$0x3]
      %v464 = vld [vmem:[%s442 + $0xa8] sm:$0xff]
      %v465 = vld [vmem:[%s442 + $0xb0] sm:$0xff]
      %v466 = vld [vmem:[%s442 + $0xb8] sm:$0x3]
      %v467 = vld [vmem:[%s442 + $0xc0] sm:$0xff]
      %v468 = vld [vmem:[%s442 + $0xc8] sm:$0xff]
      %v469 = vld [vmem:[%s442 + $0xd0] sm:$0x3]
      %v470 = vld [vmem:[%s442 + $0xd8] sm:$0xff]
      %v471 = vld [vmem:[%s442 + $0xe0] sm:$0xff]
      %v472 = vld [vmem:[%s442 + $0xe8] sm:$0x3]
      %v473 = vld [vmem:[%s442 + $0xf0] sm:$0xff]
      %v474 = vld [vmem:[%s442 + $0xf8] sm:$0xff]
      %v475 = vld [vmem:[%s442 + $0x100] sm:$0x3]
      %v476 = vld [vmem:[%s442 + $0x108] sm:$0xff]
      %v477 = vld [vmem:[%s442 + $0x110] sm:$0xff]
      %v478 = vld [vmem:[%s442 + $0x118] sm:$0x3]
      %vm509 = vcmask 1046528
      %v510 = vrot.slane %v406, 1
      %v511 = vrot.slane %v407, 1
      %v512 = vsel %vm509, %v510, %v511
      %v513 = vrot.slane %v408, 1
      %v514 = vsel %vm509, %v511, %v513
      %v515 = vrot.slane %v409, 1
      %v516 = vrot.slane %v410, 1
      %v517 = vsel %vm509, %v515, %v516
      %v518 = vrot.slane %v411, 1
      %v519 = vsel %vm509, %v516, %v518
      %v520 = vrot.slane %v412, 1
      %v521 = vrot.slane %v413, 1
      %v522 = vsel %vm509, %v520, %v521
      %v523 = vrot.slane %v414, 1
      %v524 = vsel %vm509, %v521, %v523
      %v525 = vrot.slane %v415, 1
      %v526 = vrot.slane %v416, 1
      %v527 = vsel %vm509, %v525, %v526
      %v528 = vrot.slane %v417, 1
      %v529 = vsel %vm509, %v526, %v528
      %v530 = vrot.slane %v418, 1
      %v531 = vrot.slane %v419, 1
      %v532 = vsel %vm509, %v530, %v531
      %v533 = vrot.slane %v420, 1
      %v534 = vsel %vm509, %v531, %v533
      %v535 = vrot.slane %v421, 1
      %v536 = vrot.slane %v422, 1
      %v537 = vsel %vm509, %v535, %v536
      %v538 = vrot.slane %v423, 1
      %v539 = vsel %vm509, %v536, %v538
      %v540 = vrot.slane %v424, 1
      %v541 = vrot.slane %v425, 1
      %v542 = vsel %vm509, %v540, %v541
      %v543 = vrot.slane %v426, 1
      %v544 = vsel %vm509, %v541, %v543
      %v545 = vrot.slane %v427, 1
      %v546 = vrot.slane %v428, 1
      %v547 = vsel %vm509, %v545, %v546
      %v548 = vrot.slane %v429, 1
      %v549 = vsel %vm509, %v546, %v548
      %v550 = vrot.slane %v430, 1
      %v551 = vrot.slane %v431, 1
      %v552 = vsel %vm509, %v550, %v551
      %v553 = vrot.slane %v432, 1
      %v554 = vsel %vm509, %v551, %v553
      %v555 = vrot.slane %v433, 1
      %v556 = vrot.slane %v434, 1
      %v557 = vsel %vm509, %v555, %v556
      %v558 = vrot.slane %v435, 1
      %v559 = vsel %vm509, %v556, %v558
      %vm580 = vcmask 1045504
      %v581 = vrot.slane %v406, 2
      %v582 = vrot.slane %v407, 2
      %v583 = vsel %vm580, %v581, %v582
      %v584 = vrot.slane %v408, 2
      %v585 = vsel %vm580, %v582, %v584
      %v586 = vrot.slane %v409, 2
      %v587 = vrot.slane %v410, 2
      %v588 = vsel %vm580, %v586, %v587
      %v589 = vrot.slane %v411, 2
      %v590 = vsel %vm580, %v587, %v589
      %v591 = vrot.slane %v412, 2
      %v592 = vrot.slane %v413, 2
      %v593 = vsel %vm580, %v591, %v592
      %v594 = vrot.slane %v414, 2
      %v595 = vsel %vm580, %v592, %v594
      %v596 = vrot.slane %v415, 2
      %v597 = vrot.slane %v416, 2
      %v598 = vsel %vm580, %v596, %v597
      %v599 = vrot.slane %v417, 2
      %v600 = vsel %vm580, %v597, %v599
      %v601 = vrot.slane %v418, 2
      %v602 = vrot.slane %v419, 2
      %v603 = vsel %vm580, %v601, %v602
      %v604 = vrot.slane %v420, 2
      %v605 = vsel %vm580, %v602, %v604
      %v606 = vrot.slane %v421, 2
      %v607 = vrot.slane %v422, 2
      %v608 = vsel %vm580, %v606, %v607
      %v609 = vrot.slane %v423, 2
      %v610 = vsel %vm580, %v607, %v609
      %v611 = vrot.slane %v424, 2
      %v612 = vrot.slane %v425, 2
      %v613 = vsel %vm580, %v611, %v612
      %v614 = vrot.slane %v426, 2
      %v615 = vsel %vm580, %v612, %v614
      %v616 = vrot.slane %v427, 2
      %v617 = vrot.slane %v428, 2
      %v618 = vsel %vm580, %v616, %v617
      %v619 = vrot.slane %v429, 2
      %v620 = vsel %vm580, %v617, %v619
      %v621 = vrot.slane %v430, 2
      %v622 = vrot.slane %v431, 2
      %v623 = vsel %vm580, %v621, %v622
      %v624 = vrot.slane %v432, 2
      %v625 = vsel %vm580, %v622, %v624
      %v626 = vrot.slane %v433, 2
      %v627 = vrot.slane %v434, 2
      %v628 = vsel %vm580, %v626, %v627
      %v629 = vrot.slane %v435, 2
      %v630 = vsel %vm580, %v627, %v629
      %v681 = vrot.slane %v443, 1
      %v682 = vrot.slane %v444, 1
      %v683 = vsel %vm509, %v681, %v682
      %v684 = vrot.slane %v445, 1
      %v685 = vsel %vm509, %v682, %v684
      %v686 = vrot.slane %v446, 1
      %v687 = vrot.slane %v447, 1
      %v688 = vsel %vm509, %v686, %v687
      %v689 = vrot.slane %v448, 1
      %v690 = vsel %vm509, %v687, %v689
      %v691 = vrot.slane %v449, 1
      %v692 = vrot.slane %v450, 1
      %v693 = vsel %vm509, %v691, %v692
      %v694 = vrot.slane %v451, 1
      %v695 = vsel %vm509, %v692, %v694
      %v696 = vrot.slane %v452, 1
      %v697 = vrot.slane %v453, 1
      %v698 = vsel %vm509, %v696, %v697
      %v699 = vrot.slane %v454, 1
      %v700 = vsel %vm509, %v697, %v699
      %v701 = vrot.slane %v455, 1
      %v702 = vrot.slane %v456, 1
      %v703 = vsel %vm509, %v701, %v702
      %v704 = vrot.slane %v457, 1
      %v705 = vsel %vm509, %v702, %v704
      %v706 = vrot.slane %v458, 1
      %v707 = vrot.slane %v459, 1
      %v708 = vsel %vm509, %v706, %v707
      %v709 = vrot.slane %v460, 1
      %v710 = vsel %vm509, %v707, %v709
      %v711 = vrot.slane %v461, 1
      %v712 = vrot.slane %v462, 1
      %v713 = vsel %vm509, %v711, %v712
      %v714 = vrot.slane %v463, 1
      %v715 = vsel %vm509, %v712, %v714
      %v716 = vrot.slane %v464, 1
      %v717 = vrot.slane %v465, 1
      %v718 = vsel %vm509, %v716, %v717
      %v719 = vrot.slane %v466, 1
      %v720 = vsel %vm509, %v717, %v719
      %v721 = vrot.slane %v467, 1
      %v722 = vrot.slane %v468, 1
      %v723 = vsel %vm509, %v721, %v722
      %v724 = vrot.slane %v469, 1
      %v725 = vsel %vm509, %v722, %v724
      %v726 = vrot.slane %v470, 1
      %v727 = vrot.slane %v471, 1
      %v728 = vsel %vm509, %v726, %v727
      %v729 = vrot.slane %v472, 1
      %v730 = vsel %vm509, %v727, %v729
      %v751 = vrot.slane %v443, 2
      %v752 = vrot.slane %v444, 2
      %v753 = vsel %vm580, %v751, %v752
      %v754 = vrot.slane %v445, 2
      %v755 = vsel %vm580, %v752, %v754
      %v756 = vrot.slane %v446, 2
      %v757 = vrot.slane %v447, 2
      %v758 = vsel %vm580, %v756, %v757
      %v759 = vrot.slane %v448, 2
      %v760 = vsel %vm580, %v757, %v759
      %v761 = vrot.slane %v449, 2
      %v762 = vrot.slane %v450, 2
      %v763 = vsel %vm580, %v761, %v762
      %v764 = vrot.slane %v451, 2
      %v765 = vsel %vm580, %v762, %v764
      %v766 = vrot.slane %v452, 2
      %v767 = vrot.slane %v453, 2
      %v768 = vsel %vm580, %v766, %v767
      %v769 = vrot.slane %v454, 2
      %v770 = vsel %vm580, %v767, %v769
      %v771 = vrot.slane %v455, 2
      %v772 = vrot.slane %v456, 2
      %v773 = vsel %vm580, %v771, %v772
      %v774 = vrot.slane %v457, 2
      %v775 = vsel %vm580, %v772, %v774
      %v776 = vrot.slane %v458, 2
      %v777 = vrot.slane %v459, 2
      %v778 = vsel %vm580, %v776, %v777
      %v779 = vrot.slane %v460, 2
      %v780 = vsel %vm580, %v777, %v779
      %v781 = vrot.slane %v461, 2
      %v782 = vrot.slane %v462, 2
      %v783 = vsel %vm580, %v781, %v782
      %v784 = vrot.slane %v463, 2
      %v785 = vsel %vm580, %v782, %v784
      %v786 = vrot.slane %v464, 2
      %v787 = vrot.slane %v465, 2
      %v788 = vsel %vm580, %v786, %v787
      %v789 = vrot.slane %v466, 2
      %v790 = vsel %vm580, %v787, %v789
      %v791 = vrot.slane %v467, 2
      %v792 = vrot.slane %v468, 2
      %v793 = vsel %vm580, %v791, %v792
      %v794 = vrot.slane %v469, 2
      %v795 = vsel %vm580, %v792, %v794
      %v796 = vrot.slane %v470, 2
      %v797 = vrot.slane %v471, 2
      %v798 = vsel %vm580, %v796, %v797
      %v799 = vrot.slane %v472, 2
      %v800 = vsel %vm580, %v797, %v799
      %v821 = vld [vmem:[%s2] sm:$0xff]
      %v822 = vld [vmem:[%s2 + $0x8] sm:$0xff]
      %v823 = vld [vmem:[%s2 + $0x10] sm:$0xff]
      %v824 = vld [vmem:[%s2 + $0x18] sm:$0xff]
      %v825 = vld [vmem:[%s2 + $0x20] sm:$0xff]
      %v826 = vld [vmem:[%s2 + $0x28] sm:$0xff]
      %v827 = vld [vmem:[%s2 + $0x30] sm:$0xff]
      %v828 = vld [vmem:[%s2 + $0x38] sm:$0xff]
      %v829 = vld [vmem:[%s2 + $0x40] sm:$0xff]
      %v830 = vld [vmem:[%s2 + $0x48] sm:$0xff]
      %v831 = vld [vmem:[%s2 + $0x50] sm:$0xff]
      %v832 = vld [vmem:[%s2 + $0x58] sm:$0xff]
      %v833 = vld [vmem:[%s2 + $0x60] sm:$0xff]
      %v834 = vld [vmem:[%s2 + $0x68] sm:$0xff]
      %v835 = vld [vmem:[%s2 + $0x70] sm:$0xff]
      %v836 = vld [vmem:[%s2 + $0x78] sm:$0xff]
      %v837 = vld [vmem:[%s2 + $0x80] sm:$0xff]
      %v838 = vld [vmem:[%s2 + $0x88] sm:$0xff]
      %v839 = vld [vmem:[%s2 + $0x90] sm:$0xff]
      %v840 = vld [vmem:[%s2 + $0x98] sm:$0xff]
      %v841 = vld [vmem:[%s2 + $0xa0] sm:$0xff]
      %v842 = vld [vmem:[%s2 + $0xa8] sm:$0xff]
      %v843 = vld [vmem:[%s2 + $0xb0] sm:$0xff]
      %v844 = vld [vmem:[%s2 + $0xb8] sm:$0xff]
      %v845 = vld [vmem:[%s2 + $0xc0] sm:$0xff]
      %v846 = vld [vmem:[%s2 + $0xc8] sm:$0xff]
      %v847 = vld [vmem:[%s2 + $0xd0] sm:$0xff]
      %v848 = vld [vmem:[%s2 + $0xd8] sm:$0xff]
      %v849 = vld [vmem:[%s2 + $0xe0] sm:$0xff]
      %v850 = vld [vmem:[%s2 + $0xe8] sm:$0xff]
      %v851 = vld [vmem:[%s2 + $0xf0] sm:$0xff]
      %v852 = vld [vmem:[%s2 + $0xf8] sm:$0xff]
      %v853 = vld [vmem:[%s2 + $0x100] sm:$0xff]
      %v854 = vld [vmem:[%s2 + $0x108] sm:$0xff]
      %v855 = vld [vmem:[%s2 + $0x110] sm:$0xff]
      %v856 = vld [vmem:[%s2 + $0x118] sm:$0xff]
      %v857 = vld [vmem:[%s2 + $0x120] sm:$0xff]
      %v858 = vld [vmem:[%s2 + $0x128] sm:$0xff]
      %v859 = vld [vmem:[%s2 + $0x130] sm:$0xff]
      %v860 = vld [vmem:[%s2 + $0x138] sm:$0xff]
      %v861 = vld [vmem:[%s2 + $0x140] sm:$0xff]
      %v862 = vld [vmem:[%s2 + $0x148] sm:$0xff]
      %v863 = vld [vmem:[%s2 + $0x150] sm:$0xff]
      %v864 = vld [vmem:[%s2 + $0x158] sm:$0xff]
      %v865 = vld [vmem:[%s2 + $0x160] sm:$0xff]
      %v866 = vld [vmem:[%s2 + $0x168] sm:$0xff]
      %v867 = vld [vmem:[%s2 + $0x170] sm:$0xff]
      %v868 = vld [vmem:[%s2 + $0x178] sm:$0xff]
      %v869 = vld [vmem:[%s2 + $0x180] sm:$0xff]
      %v870 = vld [vmem:[%s2 + $0x188] sm:$0xff]
      %v871 = vld [vmem:[%s2 + $0x190] sm:$0xff]
      %v872 = vld [vmem:[%s2 + $0x198] sm:$0xff]
      %v873 = vld [vmem:[%s2 + $0x1a0] sm:$0xff]
      %v874 = vld [vmem:[%s2 + $0x1a8] sm:$0xff]
      %v875 = vld [vmem:[%s2 + $0x1b0] sm:$0xff]
      %v876 = vld [vmem:[%s2 + $0x1b8] sm:$0xff]
      %v877 = vld [vmem:[%s2 + $0x1c0] sm:$0xff]
      %v878 = vld [vmem:[%s2 + $0x1c8] sm:$0xff]
      %v879 = vld [vmem:[%s2 + $0x1d0] sm:$0xff]
      %v880 = vld [vmem:[%s2 + $0x1d8] sm:$0xff]
      %v881 = vld [vmem:[%s2 + $0x1e0] sm:$0xff]
      %v882 = vld [vmem:[%s2 + $0x1e8] sm:$0xff]
      %v883 = vld [vmem:[%s2 + $0x1f0] sm:$0xff]
      %v884 = vld [vmem:[%s2 + $0x1f8] sm:$0xff]
      %v885 = vld [vmem:[%s2 + $0x200] sm:$0xff]
      %v886 = vld [vmem:[%s2 + $0x208] sm:$0xff]
      %v887 = vld [vmem:[%s2 + $0x210] sm:$0xff]
      %v888 = vld [vmem:[%s2 + $0x218] sm:$0xff]
      %v889 = vld [vmem:[%s2 + $0x220] sm:$0xff]
      %v890 = vld [vmem:[%s2 + $0x228] sm:$0xff]
      %v891 = vld [vmem:[%s2 + $0x230] sm:$0xff]
      %v892 = vld [vmem:[%s2 + $0x238] sm:$0xff]
      %v893 = vld [vmem:[%s2 + $0x240] sm:$0xff]
      %v894 = vld [vmem:[%s2 + $0x248] sm:$0xff]
      %v895 = vld [vmem:[%s2 + $0x250] sm:$0xff]
      %v896 = vld [vmem:[%s2 + $0x258] sm:$0xff]
      %v897 = vld [vmem:[%s2 + $0x260] sm:$0xff]
      %v898 = vld [vmem:[%s2 + $0x268] sm:$0xff]
      %v899 = vld [vmem:[%s2 + $0x270] sm:$0xff]
      %v900 = vld [vmem:[%s2 + $0x278] sm:$0xff]
      %v901 = vld [vmem:[%s2 + $0x280] sm:$0xff]
      %v902 = vld [vmem:[%s2 + $0x288] sm:$0xff]
      %v903 = vld [vmem:[%s2 + $0x290] sm:$0xff]
      %v904 = vld [vmem:[%s2 + $0x298] sm:$0xff]
      %v905 = vld [vmem:[%s2 + $0x2a0] sm:$0xff]
      %v906 = vld [vmem:[%s2 + $0x2a8] sm:$0xff]
      %v907 = vld [vmem:[%s2 + $0x2b0] sm:$0xff]
      %v908 = vld [vmem:[%s2 + $0x2b8] sm:$0xff]
      %v909 = vld [vmem:[%s2 + $0x2c0] sm:$0xff]
      %v910 = vld [vmem:[%s2 + $0x2c8] sm:$0xff]
      %v911 = vld [vmem:[%s2 + $0x2d0] sm:$0xff]
      %v912 = vld [vmem:[%s2 + $0x2d8] sm:$0xff]
      %v913 = vld [vmem:[%s2 + $0x2e0] sm:$0xff]
      %v914 = vld [vmem:[%s2 + $0x2e8] sm:$0xff]
      %v915 = vld [vmem:[%s2 + $0x2f0] sm:$0xff]
      %v916 = vld [vmem:[%s2 + $0x2f8] sm:$0xff]
      %v920 = vrot.slane %v436, 1
      %v921 = vrot.slane %v437, 1
      %v922 = vsel %vm509, %v920, %v921
      %v923 = vrot.slane %v438, 1
      %v924 = vsel %vm509, %v921, %v923
      %v927 = vrot.slane %v436, 2
      %v928 = vrot.slane %v437, 2
      %v929 = vsel %vm580, %v927, %v928
      %v930 = vrot.slane %v438, 2
      %v931 = vsel %vm580, %v928, %v930
      %v937 = vrot.slane %v473, 1
      %v938 = vrot.slane %v474, 1
      %v939 = vsel %vm509, %v937, %v938
      %v940 = vrot.slane %v475, 1
      %v941 = vsel %vm509, %v938, %v940
      %v944 = vrot.slane %v473, 2
      %v945 = vrot.slane %v474, 2
      %v946 = vsel %vm580, %v944, %v945
      %v947 = vrot.slane %v475, 2
      %v948 = vsel %vm580, %v945, %v947
      %s951 = scalar_lea.vmem %s2, 768
      %v952 = vld [vmem:[%s951] sm:$0xff]
      %v953 = vld [vmem:[%s951 + $0x8] sm:$0xff]
      %v954 = vld [vmem:[%s951 + $0x10] sm:$0xff]
      %v955 = vld [vmem:[%s951 + $0x18] sm:$0xff]
      %v956 = vld [vmem:[%s951 + $0x20] sm:$0xff]
      %v957 = vld [vmem:[%s951 + $0x28] sm:$0xff]
      %v958 = vld [vmem:[%s951 + $0x30] sm:$0xff]
      %v959 = vld [vmem:[%s951 + $0x38] sm:$0xff]
      %v960 = vld [vmem:[%s951 + $0x40] sm:$0xff]
      %v961 = vld [vmem:[%s951 + $0x48] sm:$0xff]
      %v962 = vld [vmem:[%s951 + $0x50] sm:$0xff]
      %v963 = vld [vmem:[%s951 + $0x58] sm:$0xff]
      %v964 = vld [vmem:[%s951 + $0x60] sm:$0xff]
      %v965 = vld [vmem:[%s951 + $0x68] sm:$0xff]
      %v966 = vld [vmem:[%s951 + $0x70] sm:$0xff]
      %v967 = vld [vmem:[%s951 + $0x78] sm:$0xff]
      %v968 = vld [vmem:[%s951 + $0x80] sm:$0xff]
      %v969 = vld [vmem:[%s951 + $0x88] sm:$0xff]
      %v970 = vld [vmem:[%s951 + $0x90] sm:$0xff]
      %v971 = vld [vmem:[%s951 + $0x98] sm:$0xff]
      %v972 = vld [vmem:[%s951 + $0xa0] sm:$0xff]
      %v973 = vld [vmem:[%s951 + $0xa8] sm:$0xff]
      %v974 = vld [vmem:[%s951 + $0xb0] sm:$0xff]
      %v975 = vld [vmem:[%s951 + $0xb8] sm:$0xff]
      %v976 = vld [vmem:[%s951 + $0xc0] sm:$0xff]
      %v977 = vld [vmem:[%s951 + $0xc8] sm:$0xff]
      %v978 = vld [vmem:[%s951 + $0xd0] sm:$0xff]
      %v979 = vld [vmem:[%s951 + $0xd8] sm:$0xff]
      %v980 = vld [vmem:[%s951 + $0xe0] sm:$0xff]
      %v981 = vld [vmem:[%s951 + $0xe8] sm:$0xff]
      %v982 = vld [vmem:[%s951 + $0xf0] sm:$0xff]
      %v983 = vld [vmem:[%s951 + $0xf8] sm:$0xff]
      %v984 = vld [vmem:[%s951 + $0x100] sm:$0xff]
      %v985 = vld [vmem:[%s951 + $0x108] sm:$0xff]
      %v986 = vld [vmem:[%s951 + $0x110] sm:$0xff]
      %v987 = vld [vmem:[%s951 + $0x118] sm:$0xff]
      %v988 = vld [vmem:[%s951 + $0x120] sm:$0xff]
      %v989 = vld [vmem:[%s951 + $0x128] sm:$0xff]
      %v990 = vld [vmem:[%s951 + $0x130] sm:$0xff]
      %v991 = vld [vmem:[%s951 + $0x138] sm:$0xff]
      %v992 = vld [vmem:[%s951 + $0x140] sm:$0xff]
      %v993 = vld [vmem:[%s951 + $0x148] sm:$0xff]
      %v994 = vld [vmem:[%s951 + $0x150] sm:$0xff]
      %v995 = vld [vmem:[%s951 + $0x158] sm:$0xff]
      %v996 = vld [vmem:[%s951 + $0x160] sm:$0xff]
      %v997 = vld [vmem:[%s951 + $0x168] sm:$0xff]
      %v998 = vld [vmem:[%s951 + $0x170] sm:$0xff]
      %v999 = vld [vmem:[%s951 + $0x178] sm:$0xff]
      %v1000 = vld [vmem:[%s951 + $0x180] sm:$0xff]
      %v1001 = vld [vmem:[%s951 + $0x188] sm:$0xff]
      %v1002 = vld [vmem:[%s951 + $0x190] sm:$0xff]
      %v1003 = vld [vmem:[%s951 + $0x198] sm:$0xff]
      %v1004 = vld [vmem:[%s951 + $0x1a0] sm:$0xff]
      %v1005 = vld [vmem:[%s951 + $0x1a8] sm:$0xff]
      %v1006 = vld [vmem:[%s951 + $0x1b0] sm:$0xff]
      %v1007 = vld [vmem:[%s951 + $0x1b8] sm:$0xff]
      %v1008 = vld [vmem:[%s951 + $0x1c0] sm:$0xff]
      %v1009 = vld [vmem:[%s951 + $0x1c8] sm:$0xff]
      %v1010 = vld [vmem:[%s951 + $0x1d0] sm:$0xff]
      %v1011 = vld [vmem:[%s951 + $0x1d8] sm:$0xff]
      %v1012 = vld [vmem:[%s951 + $0x1e0] sm:$0xff]
      %v1013 = vld [vmem:[%s951 + $0x1e8] sm:$0xff]
      %v1014 = vld [vmem:[%s951 + $0x1f0] sm:$0xff]
      %v1015 = vld [vmem:[%s951 + $0x1f8] sm:$0xff]
      %v1016 = vld [vmem:[%s951 + $0x200] sm:$0xff]
      %v1017 = vld [vmem:[%s951 + $0x208] sm:$0xff]
      %v1018 = vld [vmem:[%s951 + $0x210] sm:$0xff]
      %v1019 = vld [vmem:[%s951 + $0x218] sm:$0xff]
      %v1020 = vld [vmem:[%s951 + $0x220] sm:$0xff]
      %v1021 = vld [vmem:[%s951 + $0x228] sm:$0xff]
      %v1022 = vld [vmem:[%s951 + $0x230] sm:$0xff]
      %v1023 = vld [vmem:[%s951 + $0x238] sm:$0xff]
      %v1024 = vld [vmem:[%s951 + $0x240] sm:$0xff]
      %v1025 = vld [vmem:[%s951 + $0x248] sm:$0xff]
      %v1026 = vld [vmem:[%s951 + $0x250] sm:$0xff]
      %v1027 = vld [vmem:[%s951 + $0x258] sm:$0xff]
      %v1028 = vld [vmem:[%s951 + $0x260] sm:$0xff]
      %v1029 = vld [vmem:[%s951 + $0x268] sm:$0xff]
      %v1030 = vld [vmem:[%s951 + $0x270] sm:$0xff]
      %v1031 = vld [vmem:[%s951 + $0x278] sm:$0xff]
      %v1032 = vld [vmem:[%s951 + $0x280] sm:$0xff]
      %v1033 = vld [vmem:[%s951 + $0x288] sm:$0xff]
      %v1034 = vld [vmem:[%s951 + $0x290] sm:$0xff]
      %v1035 = vld [vmem:[%s951 + $0x298] sm:$0xff]
      %v1036 = vld [vmem:[%s951 + $0x2a0] sm:$0xff]
      %v1037 = vld [vmem:[%s951 + $0x2a8] sm:$0xff]
      %v1038 = vld [vmem:[%s951 + $0x2b0] sm:$0xff]
      %v1039 = vld [vmem:[%s951 + $0x2b8] sm:$0xff]
      %v1040 = vld [vmem:[%s951 + $0x2c0] sm:$0xff]
      %v1041 = vld [vmem:[%s951 + $0x2c8] sm:$0xff]
      %v1042 = vld [vmem:[%s951 + $0x2d0] sm:$0xff]
      %v1043 = vld [vmem:[%s951 + $0x2d8] sm:$0xff]
      %v1044 = vld [vmem:[%s951 + $0x2e0] sm:$0xff]
      %v1045 = vld [vmem:[%s951 + $0x2e8] sm:$0xff]
      %v1046 = vld [vmem:[%s951 + $0x2f0] sm:$0xff]
      %v1047 = vld [vmem:[%s951 + $0x2f8] sm:$0xff]
      %1048 = vmatprep.subr.mxu0 0.0
      %1049 = vmatpush1.msra.mxu0 %v952
      %1050 = vmatprep.subr.mxu0 0.0
      %1051 = vmatpush1.msra.mxu0 %v953
      %1052 = vmatprep.subr.mxu0 0.0
      %1053 = vmatpush1.msra.mxu0 %v954
      %1054 = vmatprep.subr.mxu0 0.0
      %1055 = vmatpush1.msra.mxu0 %v955
      %1056 = vmatprep.subr.mxu0 0.0
      %1057 = vmatpush1.msra.mxu0 %v956
      %1058 = vmatprep.subr.mxu0 0.0
      %1059 = vmatpush1.msra.mxu0 %v957
      %1060 = vmatprep.subr.mxu0 0.0
      %1061 = vmatpush1.msra.mxu0 %v958
      %1062 = vmatprep.subr.mxu0 0.0
      %1063 = vmatpush1.msra.mxu0 %v959
      %1064 = vmatprep.subr.mxu0 0.0
      %1065 = vmatpush1.msra.mxu0 %v960
      %1066 = vmatprep.subr.mxu0 0.0
      %1067 = vmatpush1.msra.mxu0 %v961
      %1068 = vmatprep.subr.mxu0 0.0
      %1069 = vmatpush1.msra.mxu0 %v962
      %1070 = vmatprep.subr.mxu0 0.0
      %1071 = vmatpush1.msra.mxu0 %v963
      %1072 = vmatprep.subr.mxu0 0.0
      %1073 = vmatpush1.msra.mxu0 %v964
      %1074 = vmatprep.subr.mxu0 0.0
      %1075 = vmatpush1.msra.mxu0 %v965
      %1076 = vmatprep.subr.mxu0 0.0
      %1077 = vmatpush1.msra.mxu0 %v966
      %1078 = vmatprep.subr.mxu0 0.0
      %1079 = vmatpush1.msra.mxu0 %v967
      %1080 = vmatprep.subr.mxu0 0.0
      %1081 = vmatpush1.msra.mxu0 %v968
      %1082 = vmatprep.subr.mxu0 0.0
      %1083 = vmatpush1.msra.mxu0 %v969
      %1084 = vmatprep.subr.mxu0 0.0
      %1085 = vmatpush1.msra.mxu0 %v970
      %1086 = vmatprep.subr.mxu0 0.0
      %1087 = vmatpush1.msra.mxu0 %v971
      %1088 = vmatprep.subr.mxu0 0.0
      %1089 = vmatpush1.msra.mxu0 %v972
      %1090 = vmatprep.subr.mxu0 0.0
      %1091 = vmatpush1.msra.mxu0 %v973
      %1092 = vmatprep.subr.mxu0 0.0
      %1093 = vmatpush1.msra.mxu0 %v974
      %1094 = vmatprep.subr.mxu0 0.0
      %1095 = vmatpush1.msra.mxu0 %v975
      %1096 = vmatprep.subr.mxu0 0.0
      %1097 = vmatpush1.msra.mxu0 %v976
      %1098 = vmatprep.subr.mxu0 0.0
      %1099 = vmatpush1.msra.mxu0 %v977
      %1100 = vmatprep.subr.mxu0 0.0
      %1101 = vmatpush1.msra.mxu0 %v978
      %1102 = vmatprep.subr.mxu0 0.0
      %1103 = vmatpush1.msra.mxu0 %v979
      %1104 = vmatprep.subr.mxu0 0.0
      %1105 = vmatpush1.msra.mxu0 %v980
      %1106 = vmatprep.subr.mxu0 0.0
      %1107 = vmatpush1.msra.mxu0 %v981
      %1108 = vmatprep.subr.mxu0 0.0
      %1109 = vmatpush1.msra.mxu0 %v982
      %1110 = vmatprep.subr.mxu0 0.0
      %1111 = vmatpush1.msra.mxu0 %v983
      %1112 = vmatprep.mubr.f32.mxu0 %v517
      %1113 = vmatmul.mubr.f32.gmra.mrb[0].mxu0 %v409
      %v1114 = vpop.f32.mrb[0].mxu0
      %v1115 = vadd.f32 0.0, %v1114
      %v1116 = vpop.f32.mrb[0].mxu0
      %1117 = vmatprep.mubr.f32.mxu0 %v519
      %1118 = vmatmul.mubr.f32.gmra.mrb[0].mxu0 %v410
      %v1119 = vpop.f32.mrb[0].mxu0
      %v1120 = vadd.f32 0.0, %v1119
      %v1121 = vpop.f32.mrb[0].mxu0
      %1122 = vmatprep.mubr.f32.mxu0 %v522
      %1123 = vmatmul.mubr.f32.gmra.mrb[0].mxu0 %v412
      %v1124 = vpop.f32.mrb[0].mxu0
      %v1125 = vadd.f32 0.0, %v1124
      %v1126 = vpop.f32.mrb[0].mxu0
      %1127 = vmatprep.mubr.f32.mxu0 %v524
      %1128 = vmatmul.mubr.f32.gmra.mrb[0].mxu0 %v413
      %v1129 = vpop.f32.mrb[0].mxu0
      %v1130 = vadd.f32 0.0, %v1129
      %v1131 = vpop.f32.mrb[0].mxu0
      %1132 = vmatprep.mubr.f32.mxu0 %v527
      %1133 = vmatmul.mubr.f32.gmra.mrb[0].mxu0 %v415
      %v1134 = vpop.f32.mrb[0].mxu0
      %v1135 = vadd.f32 0.0, %v1134
      %v1136 = vpop.f32.mrb[0].mxu0
      %1137 = vmatprep.mubr.f32.mxu0 %v529
      %1138 = vmatmul.mubr.f32.gmra.mrb[0].mxu0 %v416
      %v1139 = vpop.f32.mrb[0].mxu0
      %v1140 = vadd.f32 0.0, %v1139
      %v1141 = vpop.f32.mrb[0].mxu0
      %1142 = vmatprep.mubr.f32.mxu0 %v532
      %1143 = vmatmul.mubr.f32.gmra.mrb[0].mxu0 %v418
      %v1144 = vpop.f32.mrb[0].mxu0
      %v1145 = vadd.f32 0.0, %v1144
      %v1146 = vpop.f32.mrb[0].mxu0
      %1147 = vmatprep.mubr.f32.mxu0 %v534
      %1148 = vmatmul.mubr.f32.gmra.mrb[0].mxu0 %v419
      %v1149 = vpop.f32.mrb[0].mxu0
      %v1150 = vadd.f32 0.0, %v1149
      %v1151 = vpop.f32.mrb[0].mxu0
      %1152 = vmatprep.mubr.f32.mxu0 %v537
      %1153 = vmatmul.mubr.f32.gmra.mrb[0].mxu0 %v421
      %v1154 = vpop.f32.mrb[0].mxu0
      %v1155 = vadd.f32 0.0, %v1154
      %v1156 = vpop.f32.mrb[0].mxu0
      %1157 = vmatprep.mubr.f32.mxu0 %v539
      %1158 = vmatmul.mubr.f32.gmra.mrb[0].mxu0 %v422
      %v1159 = vpop.f32.mrb[0].mxu0
      %v1160 = vadd.f32 0.0, %v1159
      %v1161 = vpop.f32.mrb[0].mxu0
      %1162 = vmatprep.mubr.f32.mxu0 %v542
      %1163 = vmatmul.mubr.f32.gmra.mrb[0].mxu0 %v424
      %v1164 = vpop.f32.mrb[0].mxu0
      %v1165 = vadd.f32 0.0, %v1164
      %v1166 = vpop.f32.mrb[0].mxu0
      %1167 = vmatprep.mubr.f32.mxu0 %v544
      %1168 = vmatmul.mubr.f32.gmra.mrb[0].mxu0 %v425
      %v1169 = vpop.f32.mrb[0].mxu0
      %v1170 = vadd.f32 0.0, %v1169
      %v1171 = vpop.f32.mrb[0].mxu0
      %1172 = vmatprep.mubr.f32.mxu0 %v547
      %1173 = vmatmul.mubr.f32.gmra.mrb[0].mxu0 %v427
      %v1174 = vpop.f32.mrb[0].mxu0
      %v1175 = vadd.f32 0.0, %v1174
      %v1176 = vpop.f32.mrb[0].mxu0
      %1177 = vmatprep.mubr.f32.mxu0 %v549
      %1178 = vmatmul.mubr.f32.gmra.mrb[0].mxu0 %v428
      %v1179 = vpop.f32.mrb[0].mxu0
      %v1180 = vadd.f32 0.0, %v1179
      %v1181 = vpop.f32.mrb[0].mxu0
      %1182 = vmatprep.mubr.f32.mxu0 %v552
      %1183 = vmatmul.mubr.f32.gmra.mrb[0].mxu0 %v430
      %v1184 = vpop.f32.mrb[0].mxu0
      %v1185 = vadd.f32 0.0, %v1184
      %v1186 = vpop.f32.mrb[0].mxu0
      %1187 = vmatprep.mubr.f32.mxu0 %v554
      %1188 = vmatmul.mubr.f32.gmra.mrb[0].mxu0 %v431
      %v1189 = vpop.f32.mrb[0].mxu0
      %v1190 = vadd.f32 0.0, %v1189
      %v1191 = vpop.f32.mrb[0].mxu0
      %1192 = vmatprep.mubr.f32.mxu0 %v557
      %1193 = vmatmul.mubr.f32.gmra.mrb[0].mxu0 %v433
      %v1194 = vpop.f32.mrb[0].mxu0
      %v1195 = vadd.f32 0.0, %v1194
      %v1196 = vpop.f32.mrb[0].mxu0
      %1197 = vmatprep.mubr.f32.mxu0 %v559
      %1198 = vmatmul.mubr.f32.gmra.mrb[0].mxu0 %v434
      %v1199 = vpop.f32.mrb[0].mxu0
      %v1200 = vadd.f32 0.0, %v1199
      %v1201 = vpop.f32.mrb[0].mxu0
      %1202 = vmatprep.mubr.f32.mxu0 %v922
      %1203 = vmatmul.mubr.f32.gmra.mrb[0].mxu0 %v436
      %v1204 = vpop.f32.mrb[0].mxu0
      %v1205 = vadd.f32 0.0, %v1204
      %v1206 = vpop.f32.mrb[0].mxu0
      %1207 = vmatprep.mubr.f32.mxu0 %v924
      %1208 = vmatmul.mubr.f32.gmra.mrb[0].mxu0 %v437
      %v1209 = vpop.f32.mrb[0].mxu0
      %v1210 = vadd.f32 0.0, %v1209
      %v1211 = vpop.f32.mrb[0].mxu0
      %1212 = vdwg.mxu0
      %1213 = vmatprep.subr.mxu0 0.0
      %1214 = vmatpush1.msra.mxu0 %v984
      %1215 = vmatprep.subr.mxu0 0.0
      %1216 = vmatpush1.msra.mxu0 %v985
      %1217 = vmatprep.subr.mxu0 0.0
      %1218 = vmatpush1.msra.mxu0 %v986
      %1219 = vmatprep.subr.mxu0 0.0
      %1220 = vmatpush1.msra.mxu0 %v987
      %1221 = vmatprep.subr.mxu0 0.0
      %1222 = vmatpush1.msra.mxu0 %v988
      %1223 = vmatprep.subr.mxu0 0.0
      %1224 = vmatpush1.msra.mxu0 %v989
      %1225 = vmatprep.subr.mxu0 0.0
      %1226 = vmatpush1.msra.mxu0 %v990
      %1227 = vmatprep.subr.mxu0 0.0
      %1228 = vmatpush1.msra.mxu0 %v991
      %1229 = vmatprep.subr.mxu0 0.0
      %1230 = vmatpush1.msra.mxu0 %v992
      %1231 = vmatprep.subr.mxu0 0.0
      %1232 = vmatpush1.msra.mxu0 %v993
      %1233 = vmatprep.subr.mxu0 0.0
      %1234 = vmatpush1.msra.mxu0 %v994
      %1235 = vmatprep.subr.mxu0 0.0
      %1236 = vmatpush1.msra.mxu0 %v995
      %1237 = vmatprep.subr.mxu0 0.0
      %1238 = vmatpush1.msra.mxu0 %v996
      %1239 = vmatprep.subr.mxu0 0.0
      %1240 = vmatpush1.msra.mxu0 %v997
      %1241 = vmatprep.subr.mxu0 0.0
      %1242 = vmatpush1.msra.mxu0 %v998
      %1243 = vmatprep.subr.mxu0 0.0
      %1244 = vmatpush1.msra.mxu0 %v999
      %1245 = vmatprep.subr.mxu0 0.0
      %1246 = vmatpush1.msra.mxu0 %v1000
      %1247 = vmatprep.subr.mxu0 0.0
      %1248 = vmatpush1.msra.mxu0 %v1001
      %1249 = vmatprep.subr.mxu0 0.0
      %1250 = vmatpush1.msra.mxu0 %v1002
      %1251 = vmatprep.subr.mxu0 0.0
      %1252 = vmatpush1.msra.mxu0 %v1003
      %1253 = vmatprep.subr.mxu0 0.0
      %1254 = vmatpush1.msra.mxu0 %v1004
      %1255 = vmatprep.subr.mxu0 0.0
      %1256 = vmatpush1.msra.mxu0 %v1005
      %1257 = vmatprep.subr.mxu0 0.0
      %1258 = vmatpush1.msra.mxu0 %v1006
      %1259 = vmatprep.subr.mxu0 0.0
      %1260 = vmatpush1.msra.mxu0 %v1007
      %1261 = vmatprep.subr.mxu0 0.0
      %1262 = vmatpush1.msra.mxu0 %v1008
      %1263 = vmatprep.subr.mxu0 0.0
      %1264 = vmatpush1.msra.mxu0 %v1009
      %1265 = vmatprep.subr.mxu0 0.0
      %1266 = vmatpush1.msra.mxu0 %v1010
      %1267 = vmatprep.subr.mxu0 0.0
      %1268 = vmatpush1.msra.mxu0 %v1011
      %1269 = vmatprep.subr.mxu0 0.0
      %1270 = vmatpush1.msra.mxu0 %v1012
      %1271 = vmatprep.subr.mxu0 0.0
      %1272 = vmatpush1.msra.mxu0 %v1013
      %1273 = vmatprep.subr.mxu0 0.0
      %1274 = vmatpush1.msra.mxu0 %v1014
      %1275 = vmatprep.subr.mxu0 0.0
      %1276 = vmatpush1.msra.mxu0 %v1015
      %1277 = vmatprep.mubr.f32.mxu0 %v446
      %1278 = vmatmul.mubr.f32.gmra.mrb[0].mxu0 %v588
      %v1279 = vpop.f32.mrb[0].mxu0
      %v1280 = vadd.f32 %v1115, %v1279
      %v1281 = vpop.f32.mrb[0].mxu0
      %1282 = vmatprep.mubr.f32.mxu0 %v447
      %1283 = vmatmul.mubr.f32.gmra.mrb[0].mxu0 %v590
      %v1284 = vpop.f32.mrb[0].mxu0
      %v1285 = vadd.f32 %v1120, %v1284
      %v1286 = vpop.f32.mrb[0].mxu0
      %1287 = vmatprep.mubr.f32.mxu0 %v449
      %1288 = vmatmul.mubr.f32.gmra.mrb[0].mxu0 %v593
      %v1289 = vpop.f32.mrb[0].mxu0
      %v1290 = vadd.f32 %v1125, %v1289
      %v1291 = vpop.f32.mrb[0].mxu0
      %1292 = vmatprep.mubr.f32.mxu0 %v450
      %1293 = vmatmul.mubr.f32.gmra.mrb[0].mxu0 %v595
      %v1294 = vpop.f32.mrb[0].mxu0
      %v1295 = vadd.f32 %v1130, %v1294
      %v1296 = vpop.f32.mrb[0].mxu0
      %1297 = vmatprep.mubr.f32.mxu0 %v452
      %1298 = vmatmul.mubr.f32.gmra.mrb[0].mxu0 %v598
      %v1299 = vpop.f32.mrb[0].mxu0
      %v1300 = vadd.f32 %v1135, %v1299
      %v1301 = vpop.f32.mrb[0].mxu0
      %1302 = vmatprep.mubr.f32.mxu0 %v453
      %1303 = vmatmul.mubr.f32.gmra.mrb[0].mxu0 %v600
      %v1304 = vpop.f32.mrb[0].mxu0
      %v1305 = vadd.f32 %v1140, %v1304
      %v1306 = vpop.f32.mrb[0].mxu0
      %1307 = vmatprep.mubr.f32.mxu0 %v455
      %1308 = vmatmul.mubr.f32.gmra.mrb[0].mxu0 %v603
      %v1309 = vpop.f32.mrb[0].mxu0
      %v1310 = vadd.f32 %v1145, %v1309
      %v1311 = vpop.f32.mrb[0].mxu0
      %1312 = vmatprep.mubr.f32.mxu0 %v456
      %1313 = vmatmul.mubr.f32.gmra.mrb[0].mxu0 %v605
      %v1314 = vpop.f32.mrb[0].mxu0
      %v1315 = vadd.f32 %v1150, %v1314
      %v1316 = vpop.f32.mrb[0].mxu0
      %1317 = vmatprep.mubr.f32.mxu0 %v458
      %1318 = vmatmul.mubr.f32.gmra.mrb[0].mxu0 %v608
      %v1319 = vpop.f32.mrb[0].mxu0
      %v1320 = vadd.f32 %v1155, %v1319
      %v1321 = vpop.f32.mrb[0].mxu0
      %1322 = vmatprep.mubr.f32.mxu0 %v459
      %1323 = vmatmul.mubr.f32.gmra.mrb[0].mxu0 %v610
      %v1324 = vpop.f32.mrb[0].mxu0
      %v1325 = vadd.f32 %v1160, %v1324
      %v1326 = vpop.f32.mrb[0].mxu0
      %1327 = vmatprep.mubr.f32.mxu0 %v461
      %1328 = vmatmul.mubr.f32.gmra.mrb[0].mxu0 %v613
      %v1329 = vpop.f32.mrb[0].mxu0
      %v1330 = vadd.f32 %v1165, %v1329
      %v1331 = vpop.f32.mrb[0].mxu0
      %1332 = vmatprep.mubr.f32.mxu0 %v462
      %1333 = vmatmul.mubr.f32.gmra.mrb[0].mxu0 %v615
      %v1334 = vpop.f32.mrb[0].mxu0
      %v1335 = vadd.f32 %v1170, %v1334
      %v1336 = vpop.f32.mrb[0].mxu0
      %1337 = vmatprep.mubr.f32.mxu0 %v464
      %1338 = vmatmul.mubr.f32.gmra.mrb[0].mxu0 %v618
      %v1339 = vpop.f32.mrb[0].mxu0
      %v1340 = vadd.f32 %v1175, %v1339
      %v1341 = vpop.f32.mrb[0].mxu0
      %1342 = vmatprep.mubr.f32.mxu0 %v465
      %1343 = vmatmul.mubr.f32.gmra.mrb[0].mxu0 %v620
      %v1344 = vpop.f32.mrb[0].mxu0
      %v1345 = vadd.f32 %v1180, %v1344
      %v1346 = vpop.f32.mrb[0].mxu0
      %1347 = vmatprep.mubr.f32.mxu0 %v467
      %1348 = vmatmul.mubr.f32.gmra.mrb[0].mxu0 %v623
      %v1349 = vpop.f32.mrb[0].mxu0
      %v1350 = vadd.f32 %v1185, %v1349
      %v1351 = vpop.f32.mrb[0].mxu0
      %1352 = vmatprep.mubr.f32.mxu0 %v468
      %1353 = vmatmul.mubr.f32.gmra.mrb[0].mxu0 %v625
      %v1354 = vpop.f32.mrb[0].mxu0
      %v1355 = vadd.f32 %v1190, %v1354
      %v1356 = vpop.f32.mrb[0].mxu0
      %1357 = vmatprep.mubr.f32.mxu0 %v470
      %1358 = vmatmul.mubr.f32.gmra.mrb[0].mxu0 %v628
      %v1359 = vpop.f32.mrb[0].mxu0
      %v1360 = vadd.f32 %v1195, %v1359
      %v1361 = vpop.f32.mrb[0].mxu0
      %1362 = vmatprep.mubr.f32.mxu0 %v471
      %1363 = vmatmul.mubr.f32.gmra.mrb[0].mxu0 %v630
      %v1364 = vpop.f32.mrb[0].mxu0
      %v1365 = vadd.f32 %v1200, %v1364
      %v1366 = vpop.f32.mrb[0].mxu0
      %1367 = vmatprep.mubr.f32.mxu0 %v473
      %1368 = vmatmul.mubr.f32.gmra.mrb[0].mxu0 %v929
      %v1369 = vpop.f32.mrb[0].mxu0
      %v1370 = vadd.f32 %v1205, %v1369
      %v1371 = vpop.f32.mrb[0].mxu0
      %1372 = vmatprep.mubr.f32.mxu0 %v474
      %1373 = vmatmul.mubr.f32.gmra.mrb[0].mxu0 %v931
      %v1374 = vpop.f32.mrb[0].mxu0
      %v1375 = vadd.f32 %v1210, %v1374
      %v1376 = vpop.f32.mrb[0].mxu0
      %1377 = vdwg.mxu0
      %1378 = vmatprep.subr.mxu0 0.0
      %1379 = vmatpush1.msra.mxu0 %v1016
      %1380 = vmatprep.subr.mxu0 0.0
      %1381 = vmatpush1.msra.mxu0 %v1017
      %1382 = vmatprep.subr.mxu0 0.0
      %1383 = vmatpush1.msra.mxu0 %v1018
      %1384 = vmatprep.subr.mxu0 0.0
      %1385 = vmatpush1.msra.mxu0 %v1019
      %1386 = vmatprep.subr.mxu0 0.0
      %1387 = vmatpush1.msra.mxu0 %v1020
      %1388 = vmatprep.subr.mxu0 0.0
      %1389 = vmatpush1.msra.mxu0 %v1021
      %1390 = vmatprep.subr.mxu0 0.0
      %1391 = vmatpush1.msra.mxu0 %v1022
      %1392 = vmatprep.subr.mxu0 0.0
      %1393 = vmatpush1.msra.mxu0 %v1023
      %1394 = vmatprep.subr.mxu0 0.0
      %1395 = vmatpush1.msra.mxu0 %v1024
      %1396 = vmatprep.subr.mxu0 0.0
      %1397 = vmatpush1.msra.mxu0 %v1025
      %1398 = vmatprep.subr.mxu0 0.0
      %1399 = vmatpush1.msra.mxu0 %v1026
      %1400 = vmatprep.subr.mxu0 0.0
      %1401 = vmatpush1.msra.mxu0 %v1027
      %1402 = vmatprep.subr.mxu0 0.0
      %1403 = vmatpush1.msra.mxu0 %v1028
      %1404 = vmatprep.subr.mxu0 0.0
      %1405 = vmatpush1.msra.mxu0 %v1029
      %1406 = vmatprep.subr.mxu0 0.0
      %1407 = vmatpush1.msra.mxu0 %v1030
      %1408 = vmatprep.subr.mxu0 0.0
      %1409 = vmatpush1.msra.mxu0 %v1031
      %1410 = vmatprep.subr.mxu0 0.0
      %1411 = vmatpush1.msra.mxu0 %v1032
      %1412 = vmatprep.subr.mxu0 0.0
      %1413 = vmatpush1.msra.mxu0 %v1033
      %1414 = vmatprep.subr.mxu0 0.0
      %1415 = vmatpush1.msra.mxu0 %v1034
      %1416 = vmatprep.subr.mxu0 0.0
      %1417 = vmatpush1.msra.mxu0 %v1035
      %1418 = vmatprep.subr.mxu0 0.0
      %1419 = vmatpush1.msra.mxu0 %v1036
      %1420 = vmatprep.subr.mxu0 0.0
      %1421 = vmatpush1.msra.mxu0 %v1037
      %1422 = vmatprep.subr.mxu0 0.0
      %1423 = vmatpush1.msra.mxu0 %v1038
      %1424 = vmatprep.subr.mxu0 0.0
      %1425 = vmatpush1.msra.mxu0 %v1039
      %1426 = vmatprep.subr.mxu0 0.0
      %1427 = vmatpush1.msra.mxu0 %v1040
      %1428 = vmatprep.subr.mxu0 0.0
      %1429 = vmatpush1.msra.mxu0 %v1041
      %1430 = vmatprep.subr.mxu0 0.0
      %1431 = vmatpush1.msra.mxu0 %v1042
      %1432 = vmatprep.subr.mxu0 0.0
      %1433 = vmatpush1.msra.mxu0 %v1043
      %1434 = vmatprep.subr.mxu0 0.0
      %1435 = vmatpush1.msra.mxu0 %v1044
      %1436 = vmatprep.subr.mxu0 0.0
      %1437 = vmatpush1.msra.mxu0 %v1045
      %1438 = vmatprep.subr.mxu0 0.0
      %1439 = vmatpush1.msra.mxu0 %v1046
      %1440 = vmatprep.subr.mxu0 0.0
      %1441 = vmatpush1.msra.mxu0 %v1047
      %1442 = vmatprep.mubr.f32.mxu0 %v758
      %1443 = vmatmul.mubr.f32.gmra.mrb[0].mxu0 %v688
      %v1444 = vpop.f32.mrb[0].mxu0
      %v1445 = vadd.f32 %v1280, %v1444
      %v1446 = vpop.f32.mrb[0].mxu0
      %1447 = vmatprep.mubr.f32.mxu0 %v760
      %1448 = vmatmul.mubr.f32.gmra.mrb[0].mxu0 %v690
      %v1449 = vpop.f32.mrb[0].mxu0
      %v1450 = vadd.f32 %v1285, %v1449
      %v1451 = vpop.f32.mrb[0].mxu0
      %1452 = vmatprep.mubr.f32.mxu0 %v763
      %1453 = vmatmul.mubr.f32.gmra.mrb[0].mxu0 %v693
      %v1454 = vpop.f32.mrb[0].mxu0
      %v1455 = vadd.f32 %v1290, %v1454
      %v1456 = vpop.f32.mrb[0].mxu0
      %1457 = vmatprep.mubr.f32.mxu0 %v765
      %1458 = vmatmul.mubr.f32.gmra.mrb[0].mxu0 %v695
      %v1459 = vpop.f32.mrb[0].mxu0
      %v1460 = vadd.f32 %v1295, %v1459
      %v1461 = vpop.f32.mrb[0].mxu0
      %1462 = vmatprep.mubr.f32.mxu0 %v768
      %1463 = vmatmul.mubr.f32.gmra.mrb[0].mxu0 %v698
      %v1464 = vpop.f32.mrb[0].mxu0
      %v1465 = vadd.f32 %v1300, %v1464
      %v1466 = vpop.f32.mrb[0].mxu0
      %1467 = vmatprep.mubr.f32.mxu0 %v770
      %1468 = vmatmul.mubr.f32.gmra.mrb[0].mxu0 %v700
      %v1469 = vpop.f32.mrb[0].mxu0
      %v1470 = vadd.f32 %v1305, %v1469
      %v1471 = vpop.f32.mrb[0].mxu0
      %1472 = vmatprep.mubr.f32.mxu0 %v773
      %1473 = vmatmul.mubr.f32.gmra.mrb[0].mxu0 %v703
      %v1474 = vpop.f32.mrb[0].mxu0
      %v1475 = vadd.f32 %v1310, %v1474
      %v1476 = vpop.f32.mrb[0].mxu0
      %1477 = vmatprep.mubr.f32.mxu0 %v775
      %1478 = vmatmul.mubr.f32.gmra.mrb[0].mxu0 %v705
      %v1479 = vpop.f32.mrb[0].mxu0
      %v1480 = vadd.f32 %v1315, %v1479
      %v1481 = vpop.f32.mrb[0].mxu0
      %1482 = vmatprep.mubr.f32.mxu0 %v778
      %1483 = vmatmul.mubr.f32.gmra.mrb[0].mxu0 %v708
      %v1484 = vpop.f32.mrb[0].mxu0
      %v1485 = vadd.f32 %v1320, %v1484
      %v1486 = vpop.f32.mrb[0].mxu0
      %1487 = vmatprep.mubr.f32.mxu0 %v780
      %1488 = vmatmul.mubr.f32.gmra.mrb[0].mxu0 %v710
      %v1489 = vpop.f32.mrb[0].mxu0
      %v1490 = vadd.f32 %v1325, %v1489
      %v1491 = vpop.f32.mrb[0].mxu0
      %1492 = vmatprep.mubr.f32.mxu0 %v783
      %1493 = vmatmul.mubr.f32.gmra.mrb[0].mxu0 %v713
      %v1494 = vpop.f32.mrb[0].mxu0
      %v1495 = vadd.f32 %v1330, %v1494
      %v1496 = vpop.f32.mrb[0].mxu0
      %1497 = vmatprep.mubr.f32.mxu0 %v785
      %1498 = vmatmul.mubr.f32.gmra.mrb[0].mxu0 %v715
      %v1499 = vpop.f32.mrb[0].mxu0
      %v1500 = vadd.f32 %v1335, %v1499
      %v1501 = vpop.f32.mrb[0].mxu0
      %1502 = vmatprep.mubr.f32.mxu0 %v788
      %1503 = vmatmul.mubr.f32.gmra.mrb[0].mxu0 %v718
      %v1504 = vpop.f32.mrb[0].mxu0
      %v1505 = vadd.f32 %v1340, %v1504
      %v1506 = vpop.f32.mrb[0].mxu0
      %1507 = vmatprep.mubr.f32.mxu0 %v790
      %1508 = vmatmul.mubr.f32.gmra.mrb[0].mxu0 %v720
      %v1509 = vpop.f32.mrb[0].mxu0
      %v1510 = vadd.f32 %v1345, %v1509
      %v1511 = vpop.f32.mrb[0].mxu0
      %1512 = vmatprep.mubr.f32.mxu0 %v793
      %1513 = vmatmul.mubr.f32.gmra.mrb[0].mxu0 %v723
      %v1514 = vpop.f32.mrb[0].mxu0
      %v1515 = vadd.f32 %v1350, %v1514
      %v1516 = vpop.f32.mrb[0].mxu0
      %1517 = vmatprep.mubr.f32.mxu0 %v795
      %1518 = vmatmul.mubr.f32.gmra.mrb[0].mxu0 %v725
      %v1519 = vpop.f32.mrb[0].mxu0
      %v1520 = vadd.f32 %v1355, %v1519
      %v1521 = vpop.f32.mrb[0].mxu0
      %1522 = vmatprep.mubr.f32.mxu0 %v798
      %1523 = vmatmul.mubr.f32.gmra.mrb[0].mxu0 %v728
      %v1524 = vpop.f32.mrb[0].mxu0
      %v1525 = vadd.f32 %v1360, %v1524
      %v1526 = vpop.f32.mrb[0].mxu0
      %1527 = vmatprep.mubr.f32.mxu0 %v800
      %1528 = vmatmul.mubr.f32.gmra.mrb[0].mxu0 %v730
      %v1529 = vpop.f32.mrb[0].mxu0
      %v1530 = vadd.f32 %v1365, %v1529
      %v1531 = vpop.f32.mrb[0].mxu0
      %1532 = vmatprep.mubr.f32.mxu0 %v946
      %1533 = vmatmul.mubr.f32.gmra.mrb[0].mxu0 %v939
      %v1534 = vpop.f32.mrb[0].mxu0
      %v1535 = vadd.f32 %v1370, %v1534
      %v1536 = vpop.f32.mrb[0].mxu0
      %1537 = vmatprep.mubr.f32.mxu0 %v948
      %1538 = vmatmul.mubr.f32.gmra.mrb[0].mxu0 %v941
      %v1539 = vpop.f32.mrb[0].mxu0
      %v1540 = vadd.f32 %v1375, %v1539
      %v1541 = vpop.f32.mrb[0].mxu0
      %1542 = vdwg.mxu0
      %1543 = vmatprep.subr.mxu0 0.0
      %1544 = vmatpush1.msra.mxu0 %v821
      %1545 = vmatprep.subr.mxu0 0.0
      %1546 = vmatpush1.msra.mxu0 %v822
      %1547 = vmatprep.subr.mxu0 0.0
      %1548 = vmatpush1.msra.mxu0 %v823
      %1549 = vmatprep.subr.mxu0 0.0
      %1550 = vmatpush1.msra.mxu0 %v824
      %1551 = vmatprep.subr.mxu0 0.0
      %1552 = vmatpush1.msra.mxu0 %v825
      %1553 = vmatprep.subr.mxu0 0.0
      %1554 = vmatpush1.msra.mxu0 %v826
      %1555 = vmatprep.subr.mxu0 0.0
      %1556 = vmatpush1.msra.mxu0 %v827
      %1557 = vmatprep.subr.mxu0 0.0
      %1558 = vmatpush1.msra.mxu0 %v828
      %1559 = vmatprep.subr.mxu0 0.0
      %1560 = vmatpush1.msra.mxu0 %v829
      %1561 = vmatprep.subr.mxu0 0.0
      %1562 = vmatpush1.msra.mxu0 %v830
      %1563 = vmatprep.subr.mxu0 0.0
      %1564 = vmatpush1.msra.mxu0 %v831
      %1565 = vmatprep.subr.mxu0 0.0
      %1566 = vmatpush1.msra.mxu0 %v832
      %1567 = vmatprep.subr.mxu0 0.0
      %1568 = vmatpush1.msra.mxu0 %v833
      %1569 = vmatprep.subr.mxu0 0.0
      %1570 = vmatpush1.msra.mxu0 %v834
      %1571 = vmatprep.subr.mxu0 0.0
      %1572 = vmatpush1.msra.mxu0 %v835
      %1573 = vmatprep.subr.mxu0 0.0
      %1574 = vmatpush1.msra.mxu0 %v836
      %1575 = vmatprep.subr.mxu0 0.0
      %1576 = vmatpush1.msra.mxu0 %v837
      %1577 = vmatprep.subr.mxu0 0.0
      %1578 = vmatpush1.msra.mxu0 %v838
      %1579 = vmatprep.subr.mxu0 0.0
      %1580 = vmatpush1.msra.mxu0 %v839
      %1581 = vmatprep.subr.mxu0 0.0
      %1582 = vmatpush1.msra.mxu0 %v840
      %1583 = vmatprep.subr.mxu0 0.0
      %1584 = vmatpush1.msra.mxu0 %v841
      %1585 = vmatprep.subr.mxu0 0.0
      %1586 = vmatpush1.msra.mxu0 %v842
      %1587 = vmatprep.subr.mxu0 0.0
      %1588 = vmatpush1.msra.mxu0 %v843
      %1589 = vmatprep.subr.mxu0 0.0
      %1590 = vmatpush1.msra.mxu0 %v844
      %1591 = vmatprep.subr.mxu0 0.0
      %1592 = vmatpush1.msra.mxu0 %v845
      %1593 = vmatprep.subr.mxu0 0.0
      %1594 = vmatpush1.msra.mxu0 %v846
      %1595 = vmatprep.subr.mxu0 0.0
      %1596 = vmatpush1.msra.mxu0 %v847
      %1597 = vmatprep.subr.mxu0 0.0
      %1598 = vmatpush1.msra.mxu0 %v848
      %1599 = vmatprep.subr.mxu0 0.0
      %1600 = vmatpush1.msra.mxu0 %v849
      %1601 = vmatprep.subr.mxu0 0.0
      %1602 = vmatpush1.msra.mxu0 %v850
      %1603 = vmatprep.subr.mxu0 0.0
      %1604 = vmatpush1.msra.mxu0 %v851
      %1605 = vmatprep.subr.mxu0 0.0
      %1606 = vmatpush1.msra.mxu0 %v852
      %1607 = vmatprep.mubr.f32.mxu0 %v512
      %1608 = vmatmul.mubr.f32.gmra.mrb[0].mxu0 %v406
      %v1609 = vpop.f32.mrb[0].mxu0
      %v1610 = vadd.f32 %v1445, %v1609
      %v1611 = vpop.f32.mrb[0].mxu0
      %1612 = vmatprep.mubr.f32.mxu0 %v514
      %1613 = vmatmul.mubr.f32.gmra.mrb[0].mxu0 %v407
      %v1614 = vpop.f32.mrb[0].mxu0
      %v1615 = vadd.f32 %v1450, %v1614
      %v1616 = vpop.f32.mrb[0].mxu0
      %1617 = vmatprep.mubr.f32.mxu0 %v517
      %1618 = vmatmul.mubr.f32.gmra.mrb[0].mxu0 %v409
      %v1619 = vpop.f32.mrb[0].mxu0
      %v1620 = vadd.f32 %v1455, %v1619
      %v1621 = vpop.f32.mrb[0].mxu0
      %1622 = vmatprep.mubr.f32.mxu0 %v519
      %1623 = vmatmul.mubr.f32.gmra.mrb[0].mxu0 %v410
      %v1624 = vpop.f32.mrb[0].mxu0
      %v1625 = vadd.f32 %v1460, %v1624
      %v1626 = vpop.f32.mrb[0].mxu0
      %1627 = vmatprep.mubr.f32.mxu0 %v522
      %1628 = vmatmul.mubr.f32.gmra.mrb[0].mxu0 %v412
      %v1629 = vpop.f32.mrb[0].mxu0
      %v1630 = vadd.f32 %v1465, %v1629
      %v1631 = vpop.f32.mrb[0].mxu0
      %1632 = vmatprep.mubr.f32.mxu0 %v524
      %1633 = vmatmul.mubr.f32.gmra.mrb[0].mxu0 %v413
      %v1634 = vpop.f32.mrb[0].mxu0
      %v1635 = vadd.f32 %v1470, %v1634
      %v1636 = vpop.f32.mrb[0].mxu0
      %1637 = vmatprep.mubr.f32.mxu0 %v527
      %1638 = vmatmul.mubr.f32.gmra.mrb[0].mxu0 %v415
      %v1639 = vpop.f32.mrb[0].mxu0
      %v1640 = vadd.f32 %v1475, %v1639
      %v1641 = vpop.f32.mrb[0].mxu0
      %1642 = vmatprep.mubr.f32.mxu0 %v529
      %1643 = vmatmul.mubr.f32.gmra.mrb[0].mxu0 %v416
      %v1644 = vpop.f32.mrb[0].mxu0
      %v1645 = vadd.f32 %v1480, %v1644
      %v1646 = vpop.f32.mrb[0].mxu0
      %1647 = vmatprep.mubr.f32.mxu0 %v532
      %1648 = vmatmul.mubr.f32.gmra.mrb[0].mxu0 %v418
      %v1649 = vpop.f32.mrb[0].mxu0
      %v1650 = vadd.f32 %v1485, %v1649
      %v1651 = vpop.f32.mrb[0].mxu0
      %1652 = vmatprep.mubr.f32.mxu0 %v534
      %1653 = vmatmul.mubr.f32.gmra.mrb[0].mxu0 %v419
      %v1654 = vpop.f32.mrb[0].mxu0
      %v1655 = vadd.f32 %v1490, %v1654
      %v1656 = vpop.f32.mrb[0].mxu0
      %1657 = vmatprep.mubr.f32.mxu0 %v537
      %1658 = vmatmul.mubr.f32.gmra.mrb[0].mxu0 %v421
      %v1659 = vpop.f32.mrb[0].mxu0
      %v1660 = vadd.f32 %v1495, %v1659
      %v1661 = vpop.f32.mrb[0].mxu0
      %1662 = vmatprep.mubr.f32.mxu0 %v539
      %1663 = vmatmul.mubr.f32.gmra.mrb[0].mxu0 %v422
      %v1664 = vpop.f32.mrb[0].mxu0
      %v1665 = vadd.f32 %v1500, %v1664
      %v1666 = vpop.f32.mrb[0].mxu0
      %1667 = vmatprep.mubr.f32.mxu0 %v542
      %1668 = vmatmul.mubr.f32.gmra.mrb[0].mxu0 %v424
      %v1669 = vpop.f32.mrb[0].mxu0
      %v1670 = vadd.f32 %v1505, %v1669
      %v1671 = vpop.f32.mrb[0].mxu0
      %1672 = vmatprep.mubr.f32.mxu0 %v544
      %1673 = vmatmul.mubr.f32.gmra.mrb[0].mxu0 %v425
      %v1674 = vpop.f32.mrb[0].mxu0
      %v1675 = vadd.f32 %v1510, %v1674
      %v1676 = vpop.f32.mrb[0].mxu0
      %1677 = vmatprep.mubr.f32.mxu0 %v547
      %1678 = vmatmul.mubr.f32.gmra.mrb[0].mxu0 %v427
      %v1679 = vpop.f32.mrb[0].mxu0
      %v1680 = vadd.f32 %v1515, %v1679
      %v1681 = vpop.f32.mrb[0].mxu0
      %1682 = vmatprep.mubr.f32.mxu0 %v549
      %1683 = vmatmul.mubr.f32.gmra.mrb[0].mxu0 %v428
      %v1684 = vpop.f32.mrb[0].mxu0
      %v1685 = vadd.f32 %v1520, %v1684
      %v1686 = vpop.f32.mrb[0].mxu0
      %1687 = vmatprep.mubr.f32.mxu0 %v552
      %1688 = vmatmul.mubr.f32.gmra.mrb[0].mxu0 %v430
      %v1689 = vpop.f32.mrb[0].mxu0
      %v1690 = vadd.f32 %v1525, %v1689
      %v1691 = vpop.f32.mrb[0].mxu0
      %1692 = vmatprep.mubr.f32.mxu0 %v554
      %1693 = vmatmul.mubr.f32.gmra.mrb[0].mxu0 %v431
      %v1694 = vpop.f32.mrb[0].mxu0
      %v1695 = vadd.f32 %v1530, %v1694
      %v1696 = vpop.f32.mrb[0].mxu0
      %1697 = vmatprep.mubr.f32.mxu0 %v557
      %1698 = vmatmul.mubr.f32.gmra.mrb[0].mxu0 %v433
      %v1699 = vpop.f32.mrb[0].mxu0
      %v1700 = vadd.f32 %v1535, %v1699
      %v1701 = vpop.f32.mrb[0].mxu0
      %1702 = vmatprep.mubr.f32.mxu0 %v559
      %1703 = vmatmul.mubr.f32.gmra.mrb[0].mxu0 %v434
      %v1704 = vpop.f32.mrb[0].mxu0
      %v1705 = vadd.f32 %v1540, %v1704
      %v1706 = vpop.f32.mrb[0].mxu0
      %1707 = vdwg.mxu0
      %1708 = vmatprep.subr.mxu0 0.0
      %1709 = vmatpush1.msra.mxu0 %v853
      %1710 = vmatprep.subr.mxu0 0.0
      %1711 = vmatpush1.msra.mxu0 %v854
      %1712 = vmatprep.subr.mxu0 0.0
      %1713 = vmatpush1.msra.mxu0 %v855
      %1714 = vmatprep.subr.mxu0 0.0
      %1715 = vmatpush1.msra.mxu0 %v856
      %1716 = vmatprep.subr.mxu0 0.0
      %1717 = vmatpush1.msra.mxu0 %v857
      %1718 = vmatprep.subr.mxu0 0.0
      %1719 = vmatpush1.msra.mxu0 %v858
      %1720 = vmatprep.subr.mxu0 0.0
      %1721 = vmatpush1.msra.mxu0 %v859
      %1722 = vmatprep.subr.mxu0 0.0
      %1723 = vmatpush1.msra.mxu0 %v860
      %1724 = vmatprep.subr.mxu0 0.0
      %1725 = vmatpush1.msra.mxu0 %v861
      %1726 = vmatprep.subr.mxu0 0.0
      %1727 = vmatpush1.msra.mxu0 %v862
      %1728 = vmatprep.subr.mxu0 0.0
      %1729 = vmatpush1.msra.mxu0 %v863
      %1730 = vmatprep.subr.mxu0 0.0
      %1731 = vmatpush1.msra.mxu0 %v864
      %1732 = vmatprep.subr.mxu0 0.0
      %1733 = vmatpush1.msra.mxu0 %v865
      %1734 = vmatprep.subr.mxu0 0.0
      %1735 = vmatpush1.msra.mxu0 %v866
      %1736 = vmatprep.subr.mxu0 0.0
      %1737 = vmatpush1.msra.mxu0 %v867
      %1738 = vmatprep.subr.mxu0 0.0
      %1739 = vmatpush1.msra.mxu0 %v868
      %1740 = vmatprep.subr.mxu0 0.0
      %1741 = vmatpush1.msra.mxu0 %v869
      %1742 = vmatprep.subr.mxu0 0.0
      %1743 = vmatpush1.msra.mxu0 %v870
      %1744 = vmatprep.subr.mxu0 0.0
      %1745 = vmatpush1.msra.mxu0 %v871
      %1746 = vmatprep.subr.mxu0 0.0
      %1747 = vmatpush1.msra.mxu0 %v872
      %1748 = vmatprep.subr.mxu0 0.0
      %1749 = vmatpush1.msra.mxu0 %v873
      %1750 = vmatprep.subr.mxu0 0.0
      %1751 = vmatpush1.msra.mxu0 %v874
      %1752 = vmatprep.subr.mxu0 0.0
      %1753 = vmatpush1.msra.mxu0 %v875
      %1754 = vmatprep.subr.mxu0 0.0
      %1755 = vmatpush1.msra.mxu0 %v876
      %1756 = vmatprep.subr.mxu0 0.0
      %1757 = vmatpush1.msra.mxu0 %v877
      %1758 = vmatprep.subr.mxu0 0.0
      %1759 = vmatpush1.msra.mxu0 %v878
      %1760 = vmatprep.subr.mxu0 0.0
      %1761 = vmatpush1.msra.mxu0 %v879
      %1762 = vmatprep.subr.mxu0 0.0
      %1763 = vmatpush1.msra.mxu0 %v880
      %1764 = vmatprep.subr.mxu0 0.0
      %1765 = vmatpush1.msra.mxu0 %v881
      %1766 = vmatprep.subr.mxu0 0.0
      %1767 = vmatpush1.msra.mxu0 %v882
      %1768 = vmatprep.subr.mxu0 0.0
      %1769 = vmatpush1.msra.mxu0 %v883
      %1770 = vmatprep.subr.mxu0 0.0
      %1771 = vmatpush1.msra.mxu0 %v884
      %1772 = vmatprep.mubr.f32.mxu0 %v443
      %1773 = vmatmul.mubr.f32.gmra.mrb[0].mxu0 %v583
      %v1774 = vpop.f32.mrb[0].mxu0
      %v1775 = vadd.f32 %v1610, %v1774
      %v1776 = vpop.f32.mrb[0].mxu0
      %1777 = vmatprep.mubr.f32.mxu0 %v444
      %1778 = vmatmul.mubr.f32.gmra.mrb[0].mxu0 %v585
      %v1779 = vpop.f32.mrb[0].mxu0
      %v1780 = vadd.f32 %v1615, %v1779
      %v1781 = vpop.f32.mrb[0].mxu0
      %1782 = vmatprep.mubr.f32.mxu0 %v446
      %1783 = vmatmul.mubr.f32.gmra.mrb[0].mxu0 %v588
      %v1784 = vpop.f32.mrb[0].mxu0
      %v1785 = vadd.f32 %v1620, %v1784
      %v1786 = vpop.f32.mrb[0].mxu0
      %1787 = vmatprep.mubr.f32.mxu0 %v447
      %1788 = vmatmul.mubr.f32.gmra.mrb[0].mxu0 %v590
      %v1789 = vpop.f32.mrb[0].mxu0
      %v1790 = vadd.f32 %v1625, %v1789
      %v1791 = vpop.f32.mrb[0].mxu0
      %1792 = vmatprep.mubr.f32.mxu0 %v449
      %1793 = vmatmul.mubr.f32.gmra.mrb[0].mxu0 %v593
      %v1794 = vpop.f32.mrb[0].mxu0
      %v1795 = vadd.f32 %v1630, %v1794
      %v1796 = vpop.f32.mrb[0].mxu0
      %1797 = vmatprep.mubr.f32.mxu0 %v450
      %1798 = vmatmul.mubr.f32.gmra.mrb[0].mxu0 %v595
      %v1799 = vpop.f32.mrb[0].mxu0
      %v1800 = vadd.f32 %v1635, %v1799
      %v1801 = vpop.f32.mrb[0].mxu0
      %1802 = vmatprep.mubr.f32.mxu0 %v452
      %1803 = vmatmul.mubr.f32.gmra.mrb[0].mxu0 %v598
      %v1804 = vpop.f32.mrb[0].mxu0
      %v1805 = vadd.f32 %v1640, %v1804
      %v1806 = vpop.f32.mrb[0].mxu0
      %1807 = vmatprep.mubr.f32.mxu0 %v453
      %1808 = vmatmul.mubr.f32.gmra.mrb[0].mxu0 %v600
      %v1809 = vpop.f32.mrb[0].mxu0
      %v1810 = vadd.f32 %v1645, %v1809
      %v1811 = vpop.f32.mrb[0].mxu0
      %1812 = vmatprep.mubr.f32.mxu0 %v455
      %1813 = vmatmul.mubr.f32.gmra.mrb[0].mxu0 %v603
      %v1814 = vpop.f32.mrb[0].mxu0
      %v1815 = vadd.f32 %v1650, %v1814
      %v1816 = vpop.f32.mrb[0].mxu0
      %1817 = vmatprep.mubr.f32.mxu0 %v456
      %1818 = vmatmul.mubr.f32.gmra.mrb[0].mxu0 %v605
      %v1819 = vpop.f32.mrb[0].mxu0
      %v1820 = vadd.f32 %v1655, %v1819
      %v1821 = vpop.f32.mrb[0].mxu0
      %1822 = vmatprep.mubr.f32.mxu0 %v458
      %1823 = vmatmul.mubr.f32.gmra.mrb[0].mxu0 %v608
      %v1824 = vpop.f32.mrb[0].mxu0
      %v1825 = vadd.f32 %v1660, %v1824
      %v1826 = vpop.f32.mrb[0].mxu0
      %1827 = vmatprep.mubr.f32.mxu0 %v459
      %1828 = vmatmul.mubr.f32.gmra.mrb[0].mxu0 %v610
      %v1829 = vpop.f32.mrb[0].mxu0
      %v1830 = vadd.f32 %v1665, %v1829
      %v1831 = vpop.f32.mrb[0].mxu0
      %1832 = vmatprep.mubr.f32.mxu0 %v461
      %1833 = vmatmul.mubr.f32.gmra.mrb[0].mxu0 %v613
      %v1834 = vpop.f32.mrb[0].mxu0
      %v1835 = vadd.f32 %v1670, %v1834
      %v1836 = vpop.f32.mrb[0].mxu0
      %1837 = vmatprep.mubr.f32.mxu0 %v462
      %1838 = vmatmul.mubr.f32.gmra.mrb[0].mxu0 %v615
      %v1839 = vpop.f32.mrb[0].mxu0
      %v1840 = vadd.f32 %v1675, %v1839
      %v1841 = vpop.f32.mrb[0].mxu0
      %1842 = vmatprep.mubr.f32.mxu0 %v464
      %1843 = vmatmul.mubr.f32.gmra.mrb[0].mxu0 %v618
      %v1844 = vpop.f32.mrb[0].mxu0
      %v1845 = vadd.f32 %v1680, %v1844
      %v1846 = vpop.f32.mrb[0].mxu0
      %1847 = vmatprep.mubr.f32.mxu0 %v465
      %1848 = vmatmul.mubr.f32.gmra.mrb[0].mxu0 %v620
      %v1849 = vpop.f32.mrb[0].mxu0
      %v1850 = vadd.f32 %v1685, %v1849
      %v1851 = vpop.f32.mrb[0].mxu0
      %1852 = vmatprep.mubr.f32.mxu0 %v467
      %1853 = vmatmul.mubr.f32.gmra.mrb[0].mxu0 %v623
      %v1854 = vpop.f32.mrb[0].mxu0
      %v1855 = vadd.f32 %v1690, %v1854
      %v1856 = vpop.f32.mrb[0].mxu0
      %1857 = vmatprep.mubr.f32.mxu0 %v468
      %1858 = vmatmul.mubr.f32.gmra.mrb[0].mxu0 %v625
      %v1859 = vpop.f32.mrb[0].mxu0
      %v1860 = vadd.f32 %v1695, %v1859
      %v1861 = vpop.f32.mrb[0].mxu0
      %1862 = vmatprep.mubr.f32.mxu0 %v470
      %1863 = vmatmul.mubr.f32.gmra.mrb[0].mxu0 %v628
      %v1864 = vpop.f32.mrb[0].mxu0
      %v1865 = vadd.f32 %v1700, %v1864
      %v1866 = vpop.f32.mrb[0].mxu0
      %1867 = vmatprep.mubr.f32.mxu0 %v471
      %1868 = vmatmul.mubr.f32.gmra.mrb[0].mxu0 %v630
      %v1869 = vpop.f32.mrb[0].mxu0
      %v1870 = vadd.f32 %v1705, %v1869
      %v1871 = vpop.f32.mrb[0].mxu0
      %1872 = vdwg.mxu0
      %1873 = vmatprep.subr.mxu0 0.0
      %1874 = vmatpush1.msra.mxu0 %v885
      %1875 = vmatprep.subr.mxu0 0.0
      %1876 = vmatpush1.msra.mxu0 %v886
      %1877 = vmatprep.subr.mxu0 0.0
      %1878 = vmatpush1.msra.mxu0 %v887
      %1879 = vmatprep.subr.mxu0 0.0
      %1880 = vmatpush1.msra.mxu0 %v888
      %1881 = vmatprep.subr.mxu0 0.0
      %1882 = vmatpush1.msra.mxu0 %v889
      %1883 = vmatprep.subr.mxu0 0.0
      %1884 = vmatpush1.msra.mxu0 %v890
      %1885 = vmatprep.subr.mxu0 0.0
      %1886 = vmatpush1.msra.mxu0 %v891
      %1887 = vmatprep.subr.mxu0 0.0
      %1888 = vmatpush1.msra.mxu0 %v892
      %1889 = vmatprep.subr.mxu0 0.0
      %1890 = vmatpush1.msra.mxu0 %v893
      %1891 = vmatprep.subr.mxu0 0.0
      %1892 = vmatpush1.msra.mxu0 %v894
      %1893 = vmatprep.subr.mxu0 0.0
      %1894 = vmatpush1.msra.mxu0 %v895
      %1895 = vmatprep.subr.mxu0 0.0
      %1896 = vmatpush1.msra.mxu0 %v896
      %1897 = vmatprep.subr.mxu0 0.0
      %1898 = vmatpush1.msra.mxu0 %v897
      %1899 = vmatprep.subr.mxu0 0.0
      %1900 = vmatpush1.msra.mxu0 %v898
      %1901 = vmatprep.subr.mxu0 0.0
      %1902 = vmatpush1.msra.mxu0 %v899
      %1903 = vmatprep.subr.mxu0 0.0
      %1904 = vmatpush1.msra.mxu0 %v900
      %1905 = vmatprep.subr.mxu0 0.0
      %1906 = vmatpush1.msra.mxu0 %v901
      %1907 = vmatprep.subr.mxu0 0.0
      %1908 = vmatpush1.msra.mxu0 %v902
      %1909 = vmatprep.subr.mxu0 0.0
      %1910 = vmatpush1.msra.mxu0 %v903
      %1911 = vmatprep.subr.mxu0 0.0
      %1912 = vmatpush1.msra.mxu0 %v904
      %1913 = vmatprep.subr.mxu0 0.0
      %1914 = vmatpush1.msra.mxu0 %v905
      %1915 = vmatprep.subr.mxu0 0.0
      %1916 = vmatpush1.msra.mxu0 %v906
      %1917 = vmatprep.subr.mxu0 0.0
      %1918 = vmatpush1.msra.mxu0 %v907
      %1919 = vmatprep.subr.mxu0 0.0
      %1920 = vmatpush1.msra.mxu0 %v908
      %1921 = vmatprep.subr.mxu0 0.0
      %1922 = vmatpush1.msra.mxu0 %v909
      %1923 = vmatprep.subr.mxu0 0.0
      %1924 = vmatpush1.msra.mxu0 %v910
      %1925 = vmatprep.subr.mxu0 0.0
      %1926 = vmatpush1.msra.mxu0 %v911
      %1927 = vmatprep.subr.mxu0 0.0
      %1928 = vmatpush1.msra.mxu0 %v912
      %1929 = vmatprep.subr.mxu0 0.0
      %1930 = vmatpush1.msra.mxu0 %v913
      %1931 = vmatprep.subr.mxu0 0.0
      %1932 = vmatpush1.msra.mxu0 %v914
      %1933 = vmatprep.subr.mxu0 0.0
      %1934 = vmatpush1.msra.mxu0 %v915
      %1935 = vmatprep.subr.mxu0 0.0
      %1936 = vmatpush1.msra.mxu0 %v916
      %1937 = vmatprep.mubr.f32.mxu0 %v753
      %1938 = vmatmul.mubr.f32.gmra.mrb[0].mxu0 %v683
      %v1939 = vpop.f32.mrb[0].mxu0
      %v1940 = vadd.f32 %v1775, %v1939
      %v1941 = vpop.f32.mrb[0].mxu0
      %1942 = vmatprep.mubr.f32.mxu0 %v755
      %1943 = vmatmul.mubr.f32.gmra.mrb[0].mxu0 %v685
      %v1944 = vpop.f32.mrb[0].mxu0
      %v1945 = vadd.f32 %v1780, %v1944
      %v1946 = vpop.f32.mrb[0].mxu0
      %1947 = vmatprep.mubr.f32.mxu0 %v758
      %1948 = vmatmul.mubr.f32.gmra.mrb[0].mxu0 %v688
      %v1949 = vpop.f32.mrb[0].mxu0
      %v1950 = vadd.f32 %v1785, %v1949
      %v1951 = vpop.f32.mrb[0].mxu0
      %1952 = vmatprep.mubr.f32.mxu0 %v760
      %1953 = vmatmul.mubr.f32.gmra.mrb[0].mxu0 %v690
      %v1954 = vpop.f32.mrb[0].mxu0
      %v1955 = vadd.f32 %v1790, %v1954
      %v1956 = vpop.f32.mrb[0].mxu0
      %1957 = vmatprep.mubr.f32.mxu0 %v763
      %1958 = vmatmul.mubr.f32.gmra.mrb[0].mxu0 %v693
      %v1959 = vpop.f32.mrb[0].mxu0
      %v1960 = vadd.f32 %v1795, %v1959
      %v1961 = vpop.f32.mrb[0].mxu0
      %1962 = vmatprep.mubr.f32.mxu0 %v765
      %1963 = vmatmul.mubr.f32.gmra.mrb[0].mxu0 %v695
      %v1964 = vpop.f32.mrb[0].mxu0
      %v1965 = vadd.f32 %v1800, %v1964
      %v1966 = vpop.f32.mrb[0].mxu0
      %1967 = vmatprep.mubr.f32.mxu0 %v768
      %1968 = vmatmul.mubr.f32.gmra.mrb[0].mxu0 %v698
      %v1969 = vpop.f32.mrb[0].mxu0
      %v1970 = vadd.f32 %v1805, %v1969
      %v1971 = vpop.f32.mrb[0].mxu0
      %1972 = vmatprep.mubr.f32.mxu0 %v770
      %1973 = vmatmul.mubr.f32.gmra.mrb[0].mxu0 %v700
      %v1974 = vpop.f32.mrb[0].mxu0
      %v1975 = vadd.f32 %v1810, %v1974
      %v1976 = vpop.f32.mrb[0].mxu0
      %1977 = vmatprep.mubr.f32.mxu0 %v773
      %1978 = vmatmul.mubr.f32.gmra.mrb[0].mxu0 %v703
      %v1979 = vpop.f32.mrb[0].mxu0
      %v1980 = vadd.f32 %v1815, %v1979
      %v1981 = vpop.f32.mrb[0].mxu0
      %1982 = vmatprep.mubr.f32.mxu0 %v775
      %1983 = vmatmul.mubr.f32.gmra.mrb[0].mxu0 %v705
      %v1984 = vpop.f32.mrb[0].mxu0
      %v1985 = vadd.f32 %v1820, %v1984
      %v1986 = vpop.f32.mrb[0].mxu0
      %1987 = vmatprep.mubr.f32.mxu0 %v778
      %1988 = vmatmul.mubr.f32.gmra.mrb[0].mxu0 %v708
      %v1989 = vpop.f32.mrb[0].mxu0
      %v1990 = vadd.f32 %v1825, %v1989
      %v1991 = vpop.f32.mrb[0].mxu0
      %1992 = vmatprep.mubr.f32.mxu0 %v780
      %1993 = vmatmul.mubr.f32.gmra.mrb[0].mxu0 %v710
      %v1994 = vpop.f32.mrb[0].mxu0
      %v1995 = vadd.f32 %v1830, %v1994
      %v1996 = vpop.f32.mrb[0].mxu0
      %1997 = vmatprep.mubr.f32.mxu0 %v783
      %1998 = vmatmul.mubr.f32.gmra.mrb[0].mxu0 %v713
      %v1999 = vpop.f32.mrb[0].mxu0
      %v2000 = vadd.f32 %v1835, %v1999
      %v2001 = vpop.f32.mrb[0].mxu0
      %2002 = vmatprep.mubr.f32.mxu0 %v785
      %2003 = vmatmul.mubr.f32.gmra.mrb[0].mxu0 %v715
      %v2004 = vpop.f32.mrb[0].mxu0
      %v2005 = vadd.f32 %v1840, %v2004
      %v2006 = vpop.f32.mrb[0].mxu0
      %2007 = vmatprep.mubr.f32.mxu0 %v788
      %2008 = vmatmul.mubr.f32.gmra.mrb[0].mxu0 %v718
      %v2009 = vpop.f32.mrb[0].mxu0
      %v2010 = vadd.f32 %v1845, %v2009
      %v2011 = vpop.f32.mrb[0].mxu0
      %2012 = vmatprep.mubr.f32.mxu0 %v790
      %2013 = vmatmul.mubr.f32.gmra.mrb[0].mxu0 %v720
      %v2014 = vpop.f32.mrb[0].mxu0
      %v2015 = vadd.f32 %v1850, %v2014
      %v2016 = vpop.f32.mrb[0].mxu0
      %2017 = vmatprep.mubr.f32.mxu0 %v793
      %2018 = vmatmul.mubr.f32.gmra.mrb[0].mxu0 %v723
      %v2019 = vpop.f32.mrb[0].mxu0
      %v2020 = vadd.f32 %v1855, %v2019
      %v2021 = vpop.f32.mrb[0].mxu0
      %2022 = vmatprep.mubr.f32.mxu0 %v795
      %2023 = vmatmul.mubr.f32.gmra.mrb[0].mxu0 %v725
      %v2024 = vpop.f32.mrb[0].mxu0
      %v2025 = vadd.f32 %v1860, %v2024
      %v2026 = vpop.f32.mrb[0].mxu0
      %2027 = vmatprep.mubr.f32.mxu0 %v798
      %2028 = vmatmul.mubr.f32.gmra.mrb[0].mxu0 %v728
      %v2029 = vpop.f32.mrb[0].mxu0
      %v2030 = vadd.f32 %v1865, %v2029
      %v2031 = vpop.f32.mrb[0].mxu0
      %2032 = vmatprep.mubr.f32.mxu0 %v800
      %2033 = vmatmul.mubr.f32.gmra.mrb[0].mxu0 %v730
      %v2034 = vpop.f32.mrb[0].mxu0
      %v2035 = vadd.f32 %v1870, %v2034
      %v2036 = vpop.f32.mrb[0].mxu0
      %2037 = vdwg.mxu0
      %v2041 = vrot.slane %v439, 1
      %v2042 = vrot.slane %v440, 1
      %v2043 = vsel %vm509, %v2041, %v2042
      %v2044 = vrot.slane %v441, 1
      %v2045 = vsel %vm509, %v2042, %v2044
      %v2048 = vrot.slane %v439, 2
      %v2049 = vrot.slane %v440, 2
      %v2050 = vsel %vm580, %v2048, %v2049
      %v2051 = vrot.slane %v441, 2
      %v2052 = vsel %vm580, %v2049, %v2051
      %v2058 = vrot.slane %v476, 1
      %v2059 = vrot.slane %v477, 1
      %v2060 = vsel %vm509, %v2058, %v2059
      %v2061 = vrot.slane %v478, 1
      %v2062 = vsel %vm509, %v2059, %v2061
      %v2065 = vrot.slane %v476, 2
      %v2066 = vrot.slane %v477, 2
      %v2067 = vsel %vm580, %v2065, %v2066
      %v2068 = vrot.slane %v478, 2
      %v2069 = vsel %vm580, %v2066, %v2068
      %s2072 = scalar_lea.vmem %s2, 1536
      %v2073 = vld [vmem:[%s2072] sm:$0xff]
      %v2074 = vld [vmem:[%s2072 + $0x8] sm:$0xff]
      %v2075 = vld [vmem:[%s2072 + $0x10] sm:$0xff]
      %v2076 = vld [vmem:[%s2072 + $0x18] sm:$0xff]
      %v2077 = vld [vmem:[%s2072 + $0x20] sm:$0xff]
      %v2078 = vld [vmem:[%s2072 + $0x28] sm:$0xff]
      %v2079 = vld [vmem:[%s2072 + $0x30] sm:$0xff]
      %v2080 = vld [vmem:[%s2072 + $0x38] sm:$0xff]
      %v2081 = vld [vmem:[%s2072 + $0x40] sm:$0xff]
      %v2082 = vld [vmem:[%s2072 + $0x48] sm:$0xff]
      %v2083 = vld [vmem:[%s2072 + $0x50] sm:$0xff]
      %v2084 = vld [vmem:[%s2072 + $0x58] sm:$0xff]
      %v2085 = vld [vmem:[%s2072 + $0x60] sm:$0xff]
      %v2086 = vld [vmem:[%s2072 + $0x68] sm:$0xff]
      %v2087 = vld [vmem:[%s2072 + $0x70] sm:$0xff]
      %v2088 = vld [vmem:[%s2072 + $0x78] sm:$0xff]
      %v2089 = vld [vmem:[%s2072 + $0x80] sm:$0xff]
      %v2090 = vld [vmem:[%s2072 + $0x88] sm:$0xff]
      %v2091 = vld [vmem:[%s2072 + $0x90] sm:$0xff]
      %v2092 = vld [vmem:[%s2072 + $0x98] sm:$0xff]
      %v2093 = vld [vmem:[%s2072 + $0xa0] sm:$0xff]
      %v2094 = vld [vmem:[%s2072 + $0xa8] sm:$0xff]
      %v2095 = vld [vmem:[%s2072 + $0xb0] sm:$0xff]
      %v2096 = vld [vmem:[%s2072 + $0xb8] sm:$0xff]
      %v2097 = vld [vmem:[%s2072 + $0xc0] sm:$0xff]
      %v2098 = vld [vmem:[%s2072 + $0xc8] sm:$0xff]
      %v2099 = vld [vmem:[%s2072 + $0xd0] sm:$0xff]
      %v2100 = vld [vmem:[%s2072 + $0xd8] sm:$0xff]
      %v2101 = vld [vmem:[%s2072 + $0xe0] sm:$0xff]
      %v2102 = vld [vmem:[%s2072 + $0xe8] sm:$0xff]
      %v2103 = vld [vmem:[%s2072 + $0xf0] sm:$0xff]
      %v2104 = vld [vmem:[%s2072 + $0xf8] sm:$0xff]
      %v2105 = vld [vmem:[%s2072 + $0x100] sm:$0xff]
      %v2106 = vld [vmem:[%s2072 + $0x108] sm:$0xff]
      %v2107 = vld [vmem:[%s2072 + $0x110] sm:$0xff]
      %v2108 = vld [vmem:[%s2072 + $0x118] sm:$0xff]
      %v2109 = vld [vmem:[%s2072 + $0x120] sm:$0xff]
      %v2110 = vld [vmem:[%s2072 + $0x128] sm:$0xff]
      %v2111 = vld [vmem:[%s2072 + $0x130] sm:$0xff]
      %v2112 = vld [vmem:[%s2072 + $0x138] sm:$0xff]
      %v2113 = vld [vmem:[%s2072 + $0x140] sm:$0xff]
      %v2114 = vld [vmem:[%s2072 + $0x148] sm:$0xff]
      %v2115 = vld [vmem:[%s2072 + $0x150] sm:$0xff]
      %v2116 = vld [vmem:[%s2072 + $0x158] sm:$0xff]
      %v2117 = vld [vmem:[%s2072 + $0x160] sm:$0xff]
      %v2118 = vld [vmem:[%s2072 + $0x168] sm:$0xff]
      %v2119 = vld [vmem:[%s2072 + $0x170] sm:$0xff]
      %v2120 = vld [vmem:[%s2072 + $0x178] sm:$0xff]
      %v2121 = vld [vmem:[%s2072 + $0x180] sm:$0xff]
      %v2122 = vld [vmem:[%s2072 + $0x188] sm:$0xff]
      %v2123 = vld [vmem:[%s2072 + $0x190] sm:$0xff]
      %v2124 = vld [vmem:[%s2072 + $0x198] sm:$0xff]
      %v2125 = vld [vmem:[%s2072 + $0x1a0] sm:$0xff]
      %v2126 = vld [vmem:[%s2072 + $0x1a8] sm:$0xff]
      %v2127 = vld [vmem:[%s2072 + $0x1b0] sm:$0xff]
      %v2128 = vld [vmem:[%s2072 + $0x1b8] sm:$0xff]
      %v2129 = vld [vmem:[%s2072 + $0x1c0] sm:$0xff]
      %v2130 = vld [vmem:[%s2072 + $0x1c8] sm:$0xff]
      %v2131 = vld [vmem:[%s2072 + $0x1d0] sm:$0xff]
      %v2132 = vld [vmem:[%s2072 + $0x1d8] sm:$0xff]
      %v2133 = vld [vmem:[%s2072 + $0x1e0] sm:$0xff]
      %v2134 = vld [vmem:[%s2072 + $0x1e8] sm:$0xff]
      %v2135 = vld [vmem:[%s2072 + $0x1f0] sm:$0xff]
      %v2136 = vld [vmem:[%s2072 + $0x1f8] sm:$0xff]
      %v2137 = vld [vmem:[%s2072 + $0x200] sm:$0xff]
      %v2138 = vld [vmem:[%s2072 + $0x208] sm:$0xff]
      %v2139 = vld [vmem:[%s2072 + $0x210] sm:$0xff]
      %v2140 = vld [vmem:[%s2072 + $0x218] sm:$0xff]
      %v2141 = vld [vmem:[%s2072 + $0x220] sm:$0xff]
      %v2142 = vld [vmem:[%s2072 + $0x228] sm:$0xff]
      %v2143 = vld [vmem:[%s2072 + $0x230] sm:$0xff]
      %v2144 = vld [vmem:[%s2072 + $0x238] sm:$0xff]
      %v2145 = vld [vmem:[%s2072 + $0x240] sm:$0xff]
      %v2146 = vld [vmem:[%s2072 + $0x248] sm:$0xff]
      %v2147 = vld [vmem:[%s2072 + $0x250] sm:$0xff]
      %v2148 = vld [vmem:[%s2072 + $0x258] sm:$0xff]
      %v2149 = vld [vmem:[%s2072 + $0x260] sm:$0xff]
      %v2150 = vld [vmem:[%s2072 + $0x268] sm:$0xff]
      %v2151 = vld [vmem:[%s2072 + $0x270] sm:$0xff]
      %v2152 = vld [vmem:[%s2072 + $0x278] sm:$0xff]
      %v2153 = vld [vmem:[%s2072 + $0x280] sm:$0xff]
      %v2154 = vld [vmem:[%s2072 + $0x288] sm:$0xff]
      %v2155 = vld [vmem:[%s2072 + $0x290] sm:$0xff]
      %v2156 = vld [vmem:[%s2072 + $0x298] sm:$0xff]
      %v2157 = vld [vmem:[%s2072 + $0x2a0] sm:$0xff]
      %v2158 = vld [vmem:[%s2072 + $0x2a8] sm:$0xff]
      %v2159 = vld [vmem:[%s2072 + $0x2b0] sm:$0xff]
      %v2160 = vld [vmem:[%s2072 + $0x2b8] sm:$0xff]
      %v2161 = vld [vmem:[%s2072 + $0x2c0] sm:$0xff]
      %v2162 = vld [vmem:[%s2072 + $0x2c8] sm:$0xff]
      %v2163 = vld [vmem:[%s2072 + $0x2d0] sm:$0xff]
      %v2164 = vld [vmem:[%s2072 + $0x2d8] sm:$0xff]
      %v2165 = vld [vmem:[%s2072 + $0x2e0] sm:$0xff]
      %v2166 = vld [vmem:[%s2072 + $0x2e8] sm:$0xff]
      %v2167 = vld [vmem:[%s2072 + $0x2f0] sm:$0xff]
      %v2168 = vld [vmem:[%s2072 + $0x2f8] sm:$0xff]
      %2169 = vmatprep.subr.mxu0 0.0
      %2170 = vmatpush1.msra.mxu0 %v2073
      %2171 = vmatprep.subr.mxu0 0.0
      %2172 = vmatpush1.msra.mxu0 %v2074
      %2173 = vmatprep.subr.mxu0 0.0
      %2174 = vmatpush1.msra.mxu0 %v2075
      %2175 = vmatprep.subr.mxu0 0.0
      %2176 = vmatpush1.msra.mxu0 %v2076
      %2177 = vmatprep.subr.mxu0 0.0
      %2178 = vmatpush1.msra.mxu0 %v2077
      %2179 = vmatprep.subr.mxu0 0.0
      %2180 = vmatpush1.msra.mxu0 %v2078
      %2181 = vmatprep.subr.mxu0 0.0
      %2182 = vmatpush1.msra.mxu0 %v2079
      %2183 = vmatprep.subr.mxu0 0.0
      %2184 = vmatpush1.msra.mxu0 %v2080
      %2185 = vmatprep.subr.mxu0 0.0
      %2186 = vmatpush1.msra.mxu0 %v2081
      %2187 = vmatprep.subr.mxu0 0.0
      %2188 = vmatpush1.msra.mxu0 %v2082
      %2189 = vmatprep.subr.mxu0 0.0
      %2190 = vmatpush1.msra.mxu0 %v2083
      %2191 = vmatprep.subr.mxu0 0.0
      %2192 = vmatpush1.msra.mxu0 %v2084
      %2193 = vmatprep.subr.mxu0 0.0
      %2194 = vmatpush1.msra.mxu0 %v2085
      %2195 = vmatprep.subr.mxu0 0.0
      %2196 = vmatpush1.msra.mxu0 %v2086
      %2197 = vmatprep.subr.mxu0 0.0
      %2198 = vmatpush1.msra.mxu0 %v2087
      %2199 = vmatprep.subr.mxu0 0.0
      %2200 = vmatpush1.msra.mxu0 %v2088
      %2201 = vmatprep.subr.mxu0 0.0
      %2202 = vmatpush1.msra.mxu0 %v2089
      %2203 = vmatprep.subr.mxu0 0.0
      %2204 = vmatpush1.msra.mxu0 %v2090
      %2205 = vmatprep.subr.mxu0 0.0
      %2206 = vmatpush1.msra.mxu0 %v2091
      %2207 = vmatprep.subr.mxu0 0.0
      %2208 = vmatpush1.msra.mxu0 %v2092
      %2209 = vmatprep.subr.mxu0 0.0
      %2210 = vmatpush1.msra.mxu0 %v2093
      %2211 = vmatprep.subr.mxu0 0.0
      %2212 = vmatpush1.msra.mxu0 %v2094
      %2213 = vmatprep.subr.mxu0 0.0
      %2214 = vmatpush1.msra.mxu0 %v2095
      %2215 = vmatprep.subr.mxu0 0.0
      %2216 = vmatpush1.msra.mxu0 %v2096
      %2217 = vmatprep.subr.mxu0 0.0
      %2218 = vmatpush1.msra.mxu0 %v2097
      %2219 = vmatprep.subr.mxu0 0.0
      %2220 = vmatpush1.msra.mxu0 %v2098
      %2221 = vmatprep.subr.mxu0 0.0
      %2222 = vmatpush1.msra.mxu0 %v2099
      %2223 = vmatprep.subr.mxu0 0.0
      %2224 = vmatpush1.msra.mxu0 %v2100
      %2225 = vmatprep.subr.mxu0 0.0
      %2226 = vmatpush1.msra.mxu0 %v2101
      %2227 = vmatprep.subr.mxu0 0.0
      %2228 = vmatpush1.msra.mxu0 %v2102
      %2229 = vmatprep.subr.mxu0 0.0
      %2230 = vmatpush1.msra.mxu0 %v2103
      %2231 = vmatprep.subr.mxu0 0.0
      %2232 = vmatpush1.msra.mxu0 %v2104
      %2233 = vmatprep.mubr.f32.mxu0 %v522
      %2234 = vmatmul.mubr.f32.gmra.mrb[0].mxu0 %v412
      %v2235 = vpop.f32.mrb[0].mxu0
      %v2236 = vadd.f32 0.0, %v2235
      %v2237 = vpop.f32.mrb[0].mxu0
      %2238 = vmatprep.mubr.f32.mxu0 %v524
      %2239 = vmatmul.mubr.f32.gmra.mrb[0].mxu0 %v413
      %v2240 = vpop.f32.mrb[0].mxu0
      %v2241 = vadd.f32 0.0, %v2240
      %v2242 = vpop.f32.mrb[0].mxu0
      %2243 = vmatprep.mubr.f32.mxu0 %v527
      %2244 = vmatmul.mubr.f32.gmra.mrb[0].mxu0 %v415
      %v2245 = vpop.f32.mrb[0].mxu0
      %v2246 = vadd.f32 0.0, %v2245
      %v2247 = vpop.f32.mrb[0].mxu0
      %2248 = vmatprep.mubr.f32.mxu0 %v529
      %2249 = vmatmul.mubr.f32.gmra.mrb[0].mxu0 %v416
      %v2250 = vpop.f32.mrb[0].mxu0
      %v2251 = vadd.f32 0.0, %v2250
      %v2252 = vpop.f32.mrb[0].mxu0
      %2253 = vmatprep.mubr.f32.mxu0 %v532
      %2254 = vmatmul.mubr.f32.gmra.mrb[0].mxu0 %v418
      %v2255 = vpop.f32.mrb[0].mxu0
      %v2256 = vadd.f32 0.0, %v2255
      %v2257 = vpop.f32.mrb[0].mxu0
      %2258 = vmatprep.mubr.f32.mxu0 %v534
      %2259 = vmatmul.mubr.f32.gmra.mrb[0].mxu0 %v419
      %v2260 = vpop.f32.mrb[0].mxu0
      %v2261 = vadd.f32 0.0, %v2260
      %v2262 = vpop.f32.mrb[0].mxu0
      %2263 = vmatprep.mubr.f32.mxu0 %v537
      %2264 = vmatmul.mubr.f32.gmra.mrb[0].mxu0 %v421
      %v2265 = vpop.f32.mrb[0].mxu0
      %v2266 = vadd.f32 0.0, %v2265
      %v2267 = vpop.f32.mrb[0].mxu0
      %2268 = vmatprep.mubr.f32.mxu0 %v539
      %2269 = vmatmul.mubr.f32.gmra.mrb[0].mxu0 %v422
      %v2270 = vpop.f32.mrb[0].mxu0
      %v2271 = vadd.f32 0.0, %v2270
      %v2272 = vpop.f32.mrb[0].mxu0
      %2273 = vmatprep.mubr.f32.mxu0 %v542
      %2274 = vmatmul.mubr.f32.gmra.mrb[0].mxu0 %v424
      %v2275 = vpop.f32.mrb[0].mxu0
      %v2276 = vadd.f32 0.0, %v2275
      %v2277 = vpop.f32.mrb[0].mxu0
      %2278 = vmatprep.mubr.f32.mxu0 %v544
      %2279 = vmatmul.mubr.f32.gmra.mrb[0].mxu0 %v425
      %v2280 = vpop.f32.mrb[0].mxu0
      %v2281 = vadd.f32 0.0, %v2280
      %v2282 = vpop.f32.mrb[0].mxu0
      %2283 = vmatprep.mubr.f32.mxu0 %v547
      %2284 = vmatmul.mubr.f32.gmra.mrb[0].mxu0 %v427
      %v2285 = vpop.f32.mrb[0].mxu0
      %v2286 = vadd.f32 0.0, %v2285
      %v2287 = vpop.f32.mrb[0].mxu0
      %2288 = vmatprep.mubr.f32.mxu0 %v549
      %2289 = vmatmul.mubr.f32.gmra.mrb[0].mxu0 %v428
      %v2290 = vpop.f32.mrb[0].mxu0
      %v2291 = vadd.f32 0.0, %v2290
      %v2292 = vpop.f32.mrb[0].mxu0
      %2293 = vmatprep.mubr.f32.mxu0 %v552
      %2294 = vmatmul.mubr.f32.gmra.mrb[0].mxu0 %v430
      %v2295 = vpop.f32.mrb[0].mxu0
      %v2296 = vadd.f32 0.0, %v2295
      %v2297 = vpop.f32.mrb[0].mxu0
      %2298 = vmatprep.mubr.f32.mxu0 %v554
      %2299 = vmatmul.mubr.f32.gmra.mrb[0].mxu0 %v431
      %v2300 = vpop.f32.mrb[0].mxu0
      %v2301 = vadd.f32 0.0, %v2300
      %v2302 = vpop.f32.mrb[0].mxu0
      %2303 = vmatprep.mubr.f32.mxu0 %v557
      %2304 = vmatmul.mubr.f32.gmra.mrb[0].mxu0 %v433
      %v2305 = vpop.f32.mrb[0].mxu0
      %v2306 = vadd.f32 0.0, %v2305
      %v2307 = vpop.f32.mrb[0].mxu0
      %2308 = vmatprep.mubr.f32.mxu0 %v559
      %2309 = vmatmul.mubr.f32.gmra.mrb[0].mxu0 %v434
      %v2310 = vpop.f32.mrb[0].mxu0
      %v2311 = vadd.f32 0.0, %v2310
      %v2312 = vpop.f32.mrb[0].mxu0
      %2313 = vmatprep.mubr.f32.mxu0 %v922
      %2314 = vmatmul.mubr.f32.gmra.mrb[0].mxu0 %v436
      %v2315 = vpop.f32.mrb[0].mxu0
      %v2316 = vadd.f32 0.0, %v2315
      %v2317 = vpop.f32.mrb[0].mxu0
      %2318 = vmatprep.mubr.f32.mxu0 %v924
      %2319 = vmatmul.mubr.f32.gmra.mrb[0].mxu0 %v437
      %v2320 = vpop.f32.mrb[0].mxu0
      %v2321 = vadd.f32 0.0, %v2320
      %v2322 = vpop.f32.mrb[0].mxu0
      %2323 = vmatprep.mubr.f32.mxu0 %v2043
      %2324 = vmatmul.mubr.f32.gmra.mrb[0].mxu0 %v439
      %v2325 = vpop.f32.mrb[0].mxu0
      %v2326 = vadd.f32 0.0, %v2325
      %v2327 = vpop.f32.mrb[0].mxu0
      %2328 = vmatprep.mubr.f32.mxu0 %v2045
      %2329 = vmatmul.mubr.f32.gmra.mrb[0].mxu0 %v440
      %v2330 = vpop.f32.mrb[0].mxu0
      %v2331 = vadd.f32 0.0, %v2330
      %v2332 = vpop.f32.mrb[0].mxu0
      %2333 = vdwg.mxu0
      %2334 = vmatprep.subr.mxu0 0.0
      %2335 = vmatpush1.msra.mxu0 %v2105
      %2336 = vmatprep.subr.mxu0 0.0
      %2337 = vmatpush1.msra.mxu0 %v2106
      %2338 = vmatprep.subr.mxu0 0.0
      %2339 = vmatpush1.msra.mxu0 %v2107
      %2340 = vmatprep.subr.mxu0 0.0
      %2341 = vmatpush1.msra.mxu0 %v2108
      %2342 = vmatprep.subr.mxu0 0.0
      %2343 = vmatpush1.msra.mxu0 %v2109
      %2344 = vmatprep.subr.mxu0 0.0
      %2345 = vmatpush1.msra.mxu0 %v2110
      %2346 = vmatprep.subr.mxu0 0.0
      %2347 = vmatpush1.msra.mxu0 %v2111
      %2348 = vmatprep.subr.mxu0 0.0
      %2349 = vmatpush1.msra.mxu0 %v2112
      %2350 = vmatprep.subr.mxu0 0.0
      %2351 = vmatpush1.msra.mxu0 %v2113
      %2352 = vmatprep.subr.mxu0 0.0
      %2353 = vmatpush1.msra.mxu0 %v2114
      %2354 = vmatprep.subr.mxu0 0.0
      %2355 = vmatpush1.msra.mxu0 %v2115
      %2356 = vmatprep.subr.mxu0 0.0
      %2357 = vmatpush1.msra.mxu0 %v2116
      %2358 = vmatprep.subr.mxu0 0.0
      %2359 = vmatpush1.msra.mxu0 %v2117
      %2360 = vmatprep.subr.mxu0 0.0
      %2361 = vmatpush1.msra.mxu0 %v2118
      %2362 = vmatprep.subr.mxu0 0.0
      %2363 = vmatpush1.msra.mxu0 %v2119
      %2364 = vmatprep.subr.mxu0 0.0
      %2365 = vmatpush1.msra.mxu0 %v2120
      %2366 = vmatprep.subr.mxu0 0.0
      %2367 = vmatpush1.msra.mxu0 %v2121
      %2368 = vmatprep.subr.mxu0 0.0
      %2369 = vmatpush1.msra.mxu0 %v2122
      %2370 = vmatprep.subr.mxu0 0.0
      %2371 = vmatpush1.msra.mxu0 %v2123
      %2372 = vmatprep.subr.mxu0 0.0
      %2373 = vmatpush1.msra.mxu0 %v2124
      %2374 = vmatprep.subr.mxu0 0.0
      %2375 = vmatpush1.msra.mxu0 %v2125
      %2376 = vmatprep.subr.mxu0 0.0
      %2377 = vmatpush1.msra.mxu0 %v2126
      %2378 = vmatprep.subr.mxu0 0.0
      %2379 = vmatpush1.msra.mxu0 %v2127
      %2380 = vmatprep.subr.mxu0 0.0
      %2381 = vmatpush1.msra.mxu0 %v2128
      %2382 = vmatprep.subr.mxu0 0.0
      %2383 = vmatpush1.msra.mxu0 %v2129
      %2384 = vmatprep.subr.mxu0 0.0
      %2385 = vmatpush1.msra.mxu0 %v2130
      %2386 = vmatprep.subr.mxu0 0.0
      %2387 = vmatpush1.msra.mxu0 %v2131
      %2388 = vmatprep.subr.mxu0 0.0
      %2389 = vmatpush1.msra.mxu0 %v2132
      %2390 = vmatprep.subr.mxu0 0.0
      %2391 = vmatpush1.msra.mxu0 %v2133
      %2392 = vmatprep.subr.mxu0 0.0
      %2393 = vmatpush1.msra.mxu0 %v2134
      %2394 = vmatprep.subr.mxu0 0.0
      %2395 = vmatpush1.msra.mxu0 %v2135
      %2396 = vmatprep.subr.mxu0 0.0
      %2397 = vmatpush1.msra.mxu0 %v2136
      %2398 = vmatprep.mubr.f32.mxu0 %v449
      %2399 = vmatmul.mubr.f32.gmra.mrb[0].mxu0 %v593
      %v2400 = vpop.f32.mrb[0].mxu0
      %v2401 = vadd.f32 %v2236, %v2400
      %v2402 = vpop.f32.mrb[0].mxu0
      %2403 = vmatprep.mubr.f32.mxu0 %v450
      %2404 = vmatmul.mubr.f32.gmra.mrb[0].mxu0 %v595
      %v2405 = vpop.f32.mrb[0].mxu0
      %v2406 = vadd.f32 %v2241, %v2405
      %v2407 = vpop.f32.mrb[0].mxu0
      %2408 = vmatprep.mubr.f32.mxu0 %v452
      %2409 = vmatmul.mubr.f32.gmra.mrb[0].mxu0 %v598
      %v2410 = vpop.f32.mrb[0].mxu0
      %v2411 = vadd.f32 %v2246, %v2410
      %v2412 = vpop.f32.mrb[0].mxu0
      %2413 = vmatprep.mubr.f32.mxu0 %v453
      %2414 = vmatmul.mubr.f32.gmra.mrb[0].mxu0 %v600
      %v2415 = vpop.f32.mrb[0].mxu0
      %v2416 = vadd.f32 %v2251, %v2415
      %v2417 = vpop.f32.mrb[0].mxu0
      %2418 = vmatprep.mubr.f32.mxu0 %v455
      %2419 = vmatmul.mubr.f32.gmra.mrb[0].mxu0 %v603
      %v2420 = vpop.f32.mrb[0].mxu0
      %v2421 = vadd.f32 %v2256, %v2420
      %v2422 = vpop.f32.mrb[0].mxu0
      %2423 = vmatprep.mubr.f32.mxu0 %v456
      %2424 = vmatmul.mubr.f32.gmra.mrb[0].mxu0 %v605
      %v2425 = vpop.f32.mrb[0].mxu0
      %v2426 = vadd.f32 %v2261, %v2425
      %v2427 = vpop.f32.mrb[0].mxu0
      %2428 = vmatprep.mubr.f32.mxu0 %v458
      %2429 = vmatmul.mubr.f32.gmra.mrb[0].mxu0 %v608
      %v2430 = vpop.f32.mrb[0].mxu0
      %v2431 = vadd.f32 %v2266, %v2430
      %v2432 = vpop.f32.mrb[0].mxu0
      %2433 = vmatprep.mubr.f32.mxu0 %v459
      %2434 = vmatmul.mubr.f32.gmra.mrb[0].mxu0 %v610
      %v2435 = vpop.f32.mrb[0].mxu0
      %v2436 = vadd.f32 %v2271, %v2435
      %v2437 = vpop.f32.mrb[0].mxu0
      %2438 = vmatprep.mubr.f32.mxu0 %v461
      %2439 = vmatmul.mubr.f32.gmra.mrb[0].mxu0 %v613
      %v2440 = vpop.f32.mrb[0].mxu0
      %v2441 = vadd.f32 %v2276, %v2440
      %v2442 = vpop.f32.mrb[0].mxu0
      %2443 = vmatprep.mubr.f32.mxu0 %v462
      %2444 = vmatmul.mubr.f32.gmra.mrb[0].mxu0 %v615
      %v2445 = vpop.f32.mrb[0].mxu0
      %v2446 = vadd.f32 %v2281, %v2445
      %v2447 = vpop.f32.mrb[0].mxu0
      %2448 = vmatprep.mubr.f32.mxu0 %v464
      %2449 = vmatmul.mubr.f32.gmra.mrb[0].mxu0 %v618
      %v2450 = vpop.f32.mrb[0].mxu0
      %v2451 = vadd.f32 %v2286, %v2450
      %v2452 = vpop.f32.mrb[0].mxu0
      %2453 = vmatprep.mubr.f32.mxu0 %v465
      %2454 = vmatmul.mubr.f32.gmra.mrb[0].mxu0 %v620
      %v2455 = vpop.f32.mrb[0].mxu0
      %v2456 = vadd.f32 %v2291, %v2455
      %v2457 = vpop.f32.mrb[0].mxu0
      %2458 = vmatprep.mubr.f32.mxu0 %v467
      %2459 = vmatmul.mubr.f32.gmra.mrb[0].mxu0 %v623
      %v2460 = vpop.f32.mrb[0].mxu0
      %v2461 = vadd.f32 %v2296, %v2460
      %v2462 = vpop.f32.mrb[0].mxu0
      %2463 = vmatprep.mubr.f32.mxu0 %v468
      %2464 = vmatmul.mubr.f32.gmra.mrb[0].mxu0 %v625
      %v2465 = vpop.f32.mrb[0].mxu0
      %v2466 = vadd.f32 %v2301, %v2465
      %v2467 = vpop.f32.mrb[0].mxu0
      %2468 = vmatprep.mubr.f32.mxu0 %v470
      %2469 = vmatmul.mubr.f32.gmra.mrb[0].mxu0 %v628
      %v2470 = vpop.f32.mrb[0].mxu0
      %v2471 = vadd.f32 %v2306, %v2470
      %v2472 = vpop.f32.mrb[0].mxu0
      %2473 = vmatprep.mubr.f32.mxu0 %v471
      %2474 = vmatmul.mubr.f32.gmra.mrb[0].mxu0 %v630
      %v2475 = vpop.f32.mrb[0].mxu0
      %v2476 = vadd.f32 %v2311, %v2475
      %v2477 = vpop.f32.mrb[0].mxu0
      %2478 = vmatprep.mubr.f32.mxu0 %v473
      %2479 = vmatmul.mubr.f32.gmra.mrb[0].mxu0 %v929
      %v2480 = vpop.f32.mrb[0].mxu0
      %v2481 = vadd.f32 %v2316, %v2480
      %v2482 = vpop.f32.mrb[0].mxu0
      %2483 = vmatprep.mubr.f32.mxu0 %v474
      %2484 = vmatmul.mubr.f32.gmra.mrb[0].mxu0 %v931
      %v2485 = vpop.f32.mrb[0].mxu0
      %v2486 = vadd.f32 %v2321, %v2485
      %v2487 = vpop.f32.mrb[0].mxu0
      %2488 = vmatprep.mubr.f32.mxu0 %v476
      %2489 = vmatmul.mubr.f32.gmra.mrb[0].mxu0 %v2050
      %v2490 = vpop.f32.mrb[0].mxu0
      %v2491 = vadd.f32 %v2326, %v2490
      %v2492 = vpop.f32.mrb[0].mxu0
      %2493 = vmatprep.mubr.f32.mxu0 %v477
      %2494 = vmatmul.mubr.f32.gmra.mrb[0].mxu0 %v2052
      %v2495 = vpop.f32.mrb[0].mxu0
      %v2496 = vadd.f32 %v2331, %v2495
      %v2497 = vpop.f32.mrb[0].mxu0
      %2498 = vdwg.mxu0
      %2499 = vmatprep.subr.mxu0 0.0
      %2500 = vmatpush1.msra.mxu0 %v2137
      %2501 = vmatprep.subr.mxu0 0.0
      %2502 = vmatpush1.msra.mxu0 %v2138
      %2503 = vmatprep.subr.mxu0 0.0
      %2504 = vmatpush1.msra.mxu0 %v2139
      %2505 = vmatprep.subr.mxu0 0.0
      %2506 = vmatpush1.msra.mxu0 %v2140
      %2507 = vmatprep.subr.mxu0 0.0
      %2508 = vmatpush1.msra.mxu0 %v2141
      %2509 = vmatprep.subr.mxu0 0.0
      %2510 = vmatpush1.msra.mxu0 %v2142
      %2511 = vmatprep.subr.mxu0 0.0
      %2512 = vmatpush1.msra.mxu0 %v2143
      %2513 = vmatprep.subr.mxu0 0.0
      %2514 = vmatpush1.msra.mxu0 %v2144
      %2515 = vmatprep.subr.mxu0 0.0
      %2516 = vmatpush1.msra.mxu0 %v2145
      %2517 = vmatprep.subr.mxu0 0.0
      %2518 = vmatpush1.msra.mxu0 %v2146
      %2519 = vmatprep.subr.mxu0 0.0
      %2520 = vmatpush1.msra.mxu0 %v2147
      %2521 = vmatprep.subr.mxu0 0.0
      %2522 = vmatpush1.msra.mxu0 %v2148
      %2523 = vmatprep.subr.mxu0 0.0
      %2524 = vmatpush1.msra.mxu0 %v2149
      %2525 = vmatprep.subr.mxu0 0.0
      %2526 = vmatpush1.msra.mxu0 %v2150
      %2527 = vmatprep.subr.mxu0 0.0
      %2528 = vmatpush1.msra.mxu0 %v2151
      %2529 = vmatprep.subr.mxu0 0.0
      %2530 = vmatpush1.msra.mxu0 %v2152
      %2531 = vmatprep.subr.mxu0 0.0
      %2532 = vmatpush1.msra.mxu0 %v2153
      %2533 = vmatprep.subr.mxu0 0.0
      %2534 = vmatpush1.msra.mxu0 %v2154
      %2535 = vmatprep.subr.mxu0 0.0
      %2536 = vmatpush1.msra.mxu0 %v2155
      %2537 = vmatprep.subr.mxu0 0.0
      %2538 = vmatpush1.msra.mxu0 %v2156
      %2539 = vmatprep.subr.mxu0 0.0
      %2540 = vmatpush1.msra.mxu0 %v2157
      %2541 = vmatprep.subr.mxu0 0.0
      %2542 = vmatpush1.msra.mxu0 %v2158
      %2543 = vmatprep.subr.mxu0 0.0
      %2544 = vmatpush1.msra.mxu0 %v2159
      %2545 = vmatprep.subr.mxu0 0.0
      %2546 = vmatpush1.msra.mxu0 %v2160
      %2547 = vmatprep.subr.mxu0 0.0
      %2548 = vmatpush1.msra.mxu0 %v2161
      %2549 = vmatprep.subr.mxu0 0.0
      %2550 = vmatpush1.msra.mxu0 %v2162
      %2551 = vmatprep.subr.mxu0 0.0
      %2552 = vmatpush1.msra.mxu0 %v2163
      %2553 = vmatprep.subr.mxu0 0.0
      %2554 = vmatpush1.msra.mxu0 %v2164
      %2555 = vmatprep.subr.mxu0 0.0
      %2556 = vmatpush1.msra.mxu0 %v2165
      %2557 = vmatprep.subr.mxu0 0.0
      %2558 = vmatpush1.msra.mxu0 %v2166
      %2559 = vmatprep.subr.mxu0 0.0
      %2560 = vmatpush1.msra.mxu0 %v2167
      %2561 = vmatprep.subr.mxu0 0.0
      %2562 = vmatpush1.msra.mxu0 %v2168
      %2563 = vmatprep.mubr.f32.mxu0 %v763
      %2564 = vmatmul.mubr.f32.gmra.mrb[0].mxu0 %v693
      %v2565 = vpop.f32.mrb[0].mxu0
      %v2566 = vadd.f32 %v2401, %v2565
      %v2567 = vpop.f32.mrb[0].mxu0
      %2568 = vmatprep.mubr.f32.mxu0 %v765
      %2569 = vmatmul.mubr.f32.gmra.mrb[0].mxu0 %v695
      %v2570 = vpop.f32.mrb[0].mxu0
      %v2571 = vadd.f32 %v2406, %v2570
      %v2572 = vpop.f32.mrb[0].mxu0
      %2573 = vmatprep.mubr.f32.mxu0 %v768
      %2574 = vmatmul.mubr.f32.gmra.mrb[0].mxu0 %v698
      %v2575 = vpop.f32.mrb[0].mxu0
      %v2576 = vadd.f32 %v2411, %v2575
      %v2577 = vpop.f32.mrb[0].mxu0
      %2578 = vmatprep.mubr.f32.mxu0 %v770
      %2579 = vmatmul.mubr.f32.gmra.mrb[0].mxu0 %v700
      %v2580 = vpop.f32.mrb[0].mxu0
      %v2581 = vadd.f32 %v2416, %v2580
      %v2582 = vpop.f32.mrb[0].mxu0
      %2583 = vmatprep.mubr.f32.mxu0 %v773
      %2584 = vmatmul.mubr.f32.gmra.mrb[0].mxu0 %v703
      %v2585 = vpop.f32.mrb[0].mxu0
      %v2586 = vadd.f32 %v2421, %v2585
      %v2587 = vpop.f32.mrb[0].mxu0
      %2588 = vmatprep.mubr.f32.mxu0 %v775
      %2589 = vmatmul.mubr.f32.gmra.mrb[0].mxu0 %v705
      %v2590 = vpop.f32.mrb[0].mxu0
      %v2591 = vadd.f32 %v2426, %v2590
      %v2592 = vpop.f32.mrb[0].mxu0
      %2593 = vmatprep.mubr.f32.mxu0 %v778
      %2594 = vmatmul.mubr.f32.gmra.mrb[0].mxu0 %v708
      %v2595 = vpop.f32.mrb[0].mxu0
      %v2596 = vadd.f32 %v2431, %v2595
      %v2597 = vpop.f32.mrb[0].mxu0
      %2598 = vmatprep.mubr.f32.mxu0 %v780
      %2599 = vmatmul.mubr.f32.gmra.mrb[0].mxu0 %v710
      %v2600 = vpop.f32.mrb[0].mxu0
      %v2601 = vadd.f32 %v2436, %v2600
      %v2602 = vpop.f32.mrb[0].mxu0
      %2603 = vmatprep.mubr.f32.mxu0 %v783
      %2604 = vmatmul.mubr.f32.gmra.mrb[0].mxu0 %v713
      %v2605 = vpop.f32.mrb[0].mxu0
      %v2606 = vadd.f32 %v2441, %v2605
      %v2607 = vpop.f32.mrb[0].mxu0
      %2608 = vmatprep.mubr.f32.mxu0 %v785
      %2609 = vmatmul.mubr.f32.gmra.mrb[0].mxu0 %v715
      %v2610 = vpop.f32.mrb[0].mxu0
      %v2611 = vadd.f32 %v2446, %v2610
      %v2612 = vpop.f32.mrb[0].mxu0
      %2613 = vmatprep.mubr.f32.mxu0 %v788
      %2614 = vmatmul.mubr.f32.gmra.mrb[0].mxu0 %v718
      %v2615 = vpop.f32.mrb[0].mxu0
      %v2616 = vadd.f32 %v2451, %v2615
      %v2617 = vpop.f32.mrb[0].mxu0
      %2618 = vmatprep.mubr.f32.mxu0 %v790
      %2619 = vmatmul.mubr.f32.gmra.mrb[0].mxu0 %v720
      %v2620 = vpop.f32.mrb[0].mxu0
      %v2621 = vadd.f32 %v2456, %v2620
      %v2622 = vpop.f32.mrb[0].mxu0
      %2623 = vmatprep.mubr.f32.mxu0 %v793
      %2624 = vmatmul.mubr.f32.gmra.mrb[0].mxu0 %v723
      %v2625 = vpop.f32.mrb[0].mxu0
      %v2626 = vadd.f32 %v2461, %v2625
      %v2627 = vpop.f32.mrb[0].mxu0
      %2628 = vmatprep.mubr.f32.mxu0 %v795
      %2629 = vmatmul.mubr.f32.gmra.mrb[0].mxu0 %v725
      %v2630 = vpop.f32.mrb[0].mxu0
      %v2631 = vadd.f32 %v2466, %v2630
      %v2632 = vpop.f32.mrb[0].mxu0
      %2633 = vmatprep.mubr.f32.mxu0 %v798
      %2634 = vmatmul.mubr.f32.gmra.mrb[0].mxu0 %v728
      %v2635 = vpop.f32.mrb[0].mxu0
      %v2636 = vadd.f32 %v2471, %v2635
      %v2637 = vpop.f32.mrb[0].mxu0
      %2638 = vmatprep.mubr.f32.mxu0 %v800
      %2639 = vmatmul.mubr.f32.gmra.mrb[0].mxu0 %v730
      %v2640 = vpop.f32.mrb[0].mxu0
      %v2641 = vadd.f32 %v2476, %v2640
      %v2642 = vpop.f32.mrb[0].mxu0
      %2643 = vmatprep.mubr.f32.mxu0 %v946
      %2644 = vmatmul.mubr.f32.gmra.mrb[0].mxu0 %v939
      %v2645 = vpop.f32.mrb[0].mxu0
      %v2646 = vadd.f32 %v2481, %v2645
      %v2647 = vpop.f32.mrb[0].mxu0
      %2648 = vmatprep.mubr.f32.mxu0 %v948
      %2649 = vmatmul.mubr.f32.gmra.mrb[0].mxu0 %v941
      %v2650 = vpop.f32.mrb[0].mxu0
      %v2651 = vadd.f32 %v2486, %v2650
      %v2652 = vpop.f32.mrb[0].mxu0
      %2653 = vmatprep.mubr.f32.mxu0 %v2067
      %2654 = vmatmul.mubr.f32.gmra.mrb[0].mxu0 %v2060
      %v2655 = vpop.f32.mrb[0].mxu0
      %v2656 = vadd.f32 %v2491, %v2655
      %v2657 = vpop.f32.mrb[0].mxu0
      %2658 = vmatprep.mubr.f32.mxu0 %v2069
      %2659 = vmatmul.mubr.f32.gmra.mrb[0].mxu0 %v2062
      %v2660 = vpop.f32.mrb[0].mxu0
      %v2661 = vadd.f32 %v2496, %v2660
      %v2662 = vpop.f32.mrb[0].mxu0
      %2663 = vdwg.mxu0
      %v2664 = vadd.f32 %v1940, %v2566
      %v2665 = vadd.f32 %v1945, %v2571
      %v2666 = vadd.f32 %v1950, %v2576
      %v2667 = vadd.f32 %v1955, %v2581
      %v2668 = vadd.f32 %v1960, %v2586
      %v2669 = vadd.f32 %v1965, %v2591
      %v2670 = vadd.f32 %v1970, %v2596
      %v2671 = vadd.f32 %v1975, %v2601
      %v2672 = vadd.f32 %v1980, %v2606
      %v2673 = vadd.f32 %v1985, %v2611
      %v2674 = vadd.f32 %v1990, %v2616
      %v2675 = vadd.f32 %v1995, %v2621
      %v2676 = vadd.f32 %v2000, %v2626
      %v2677 = vadd.f32 %v2005, %v2631
      %v2678 = vadd.f32 %v2010, %v2636
      %v2679 = vadd.f32 %v2015, %v2641
      %v2680 = vadd.f32 %v2020, %v2646
      %v2681 = vadd.f32 %v2025, %v2651
      %v2682 = vadd.f32 %v2030, %v2656
      %v2683 = vadd.f32 %v2035, %v2661
      %v2684 = vld [vmem:[%s3] sm:$0x1]
      %v2686 = vlaneseq
      %v2687 = vshrl.u32 %v2686, 7
      %v2688 = vsub.s32 0, %v2687
      %v2689 = vrot.slane %v2684, %v2688
      %v2691 = vmul.f32 %v2664, %v2689
      %v2692 = vmul.f32 %v2665, %v2689
      %v2693 = vmul.f32 %v2666, %v2689
      %v2694 = vmul.f32 %v2667, %v2689
      %v2695 = vmul.f32 %v2668, %v2689
      %v2696 = vmul.f32 %v2669, %v2689
      %v2697 = vmul.f32 %v2670, %v2689
      %v2698 = vmul.f32 %v2671, %v2689
      %v2699 = vmul.f32 %v2672, %v2689
      %v2700 = vmul.f32 %v2673, %v2689
      %v2701 = vmul.f32 %v2674, %v2689
      %v2702 = vmul.f32 %v2675, %v2689
      %v2703 = vmul.f32 %v2676, %v2689
      %v2704 = vmul.f32 %v2677, %v2689
      %v2705 = vmul.f32 %v2678, %v2689
      %v2706 = vmul.f32 %v2679, %v2689
      %v2707 = vmul.f32 %v2680, %v2689
      %v2708 = vmul.f32 %v2681, %v2689
      %v2709 = vmul.f32 %v2682, %v2689
      %v2710 = vmul.f32 %v2683, %v2689
      %v2711 = vld [vmem:[%s4] sm:$0x1]
      %v2713 = vlaneseq
      %v2714 = vshrl.u32 %v2713, 7
      %v2715 = vsub.s32 0, %v2714
      %v2716 = vrot.slane %v2711, %v2715
      %v2718 = vadd.f32 %v2691, %v2716
      %v2719 = vadd.f32 %v2692, %v2716
      %v2720 = vadd.f32 %v2693, %v2716
      %v2721 = vadd.f32 %v2694, %v2716
      %v2722 = vadd.f32 %v2695, %v2716
      %v2723 = vadd.f32 %v2696, %v2716
      %v2724 = vadd.f32 %v2697, %v2716
      %v2725 = vadd.f32 %v2698, %v2716
      %v2726 = vadd.f32 %v2699, %v2716
      %v2727 = vadd.f32 %v2700, %v2716
      %v2728 = vadd.f32 %v2701, %v2716
      %v2729 = vadd.f32 %v2702, %v2716
      %v2730 = vadd.f32 %v2703, %v2716
      %v2731 = vadd.f32 %v2704, %v2716
      %v2732 = vadd.f32 %v2705, %v2716
      %v2733 = vadd.f32 %v2706, %v2716
      %v2734 = vadd.f32 %v2707, %v2716
      %v2735 = vadd.f32 %v2708, %v2716
      %v2736 = vadd.f32 %v2709, %v2716
      %v2737 = vadd.f32 %v2710, %v2716
      %v2738 = vmax.f32 %v2718, 0.0
      %v2739 = vmax.f32 %v2719, 0.0
      %v2740 = vmax.f32 %v2720, 0.0
      %v2741 = vmax.f32 %v2721, 0.0
      %v2742 = vmax.f32 %v2722, 0.0
      %v2743 = vmax.f32 %v2723, 0.0
      %v2744 = vmax.f32 %v2724, 0.0
      %v2745 = vmax.f32 %v2725, 0.0
      %v2746 = vmax.f32 %v2726, 0.0
      %v2747 = vmax.f32 %v2727, 0.0
      %v2748 = vmax.f32 %v2728, 0.0
      %v2749 = vmax.f32 %v2729, 0.0
      %v2750 = vmax.f32 %v2730, 0.0
      %v2751 = vmax.f32 %v2731, 0.0
      %v2752 = vmax.f32 %v2732, 0.0
      %v2753 = vmax.f32 %v2733, 0.0
      %v2754 = vmax.f32 %v2734, 0.0
      %v2755 = vmax.f32 %v2735, 0.0
      %v2756 = vmax.f32 %v2736, 0.0
      %v2757 = vmax.f32 %v2737, 0.0
      %s2758 = ssub.s32 %s403, 1
      %v2759 = vstv %s2758
      %v2760 = vadd.s32 %v2759, 1
      %v2761 = vadd.s32 %v2759, 2
      %v2762 = vadd.s32 %v2759, 3
      %v2763 = vadd.s32 %v2759, 4
      %v2764 = vadd.s32 %v2759, 5
      %v2765 = vadd.s32 %v2759, 6
      %v2766 = vadd.s32 %v2759, 7
      %v2767 = vadd.s32 %v2759, 8
      %v2768 = vadd.s32 %v2759, 9
      %vm2769 = vcmp.ge.s32.totalorder %v2759, 0
      %vm2770 = vcmp.ge.s32.totalorder %v2760, 0
      %vm2771 = vcmp.ge.s32.totalorder %v2761, 0
      %vm2772 = vcmp.ge.s32.totalorder %v2762, 0
      %vm2773 = vcmp.ge.s32.totalorder %v2763, 0
      %vm2774 = vcmp.ge.s32.totalorder %v2764, 0
      %vm2775 = vcmp.ge.s32.totalorder %v2765, 0
      %vm2776 = vcmp.ge.s32.totalorder %v2766, 0
      %vm2777 = vcmp.ge.s32.totalorder %v2767, 0
      %vm2778 = vcmp.ge.s32.totalorder %v2768, 0
      %vm2779 = vcmp.lt.s32.totalorder %v2759, 16
      %vm2780 = vcmp.lt.s32.totalorder %v2760, 16
      %vm2781 = vcmp.lt.s32.totalorder %v2761, 16
      %vm2782 = vcmp.lt.s32.totalorder %v2762, 16
      %vm2783 = vcmp.lt.s32.totalorder %v2763, 16
      %vm2784 = vcmp.lt.s32.totalorder %v2764, 16
      %vm2785 = vcmp.lt.s32.totalorder %v2765, 16
      %vm2786 = vcmp.lt.s32.totalorder %v2766, 16
      %vm2787 = vcmp.lt.s32.totalorder %v2767, 16
      %vm2788 = vcmp.lt.s32.totalorder %v2768, 16
      %vm2789 = vmand %vm2769, %vm2779
      %vm2790 = vmand %vm2770, %vm2780
      %vm2791 = vmand %vm2771, %vm2781
      %vm2792 = vmand %vm2772, %vm2782
      %vm2793 = vmand %vm2773, %vm2783
      %vm2794 = vmand %vm2774, %vm2784
      %vm2795 = vmand %vm2775, %vm2785
      %vm2796 = vmand %vm2776, %vm2786
      %vm2797 = vmand %vm2777, %vm2787
      %vm2798 = vmand %vm2778, %vm2788
      %v2799 = vsel %vm2789, 1, 0
      %v2800 = vsel %vm2790, 1, 0
      %v2801 = vsel %vm2791, 1, 0
      %v2802 = vsel %vm2792, 1, 0
      %v2803 = vsel %vm2793, 1, 0
      %v2804 = vsel %vm2794, 1, 0
      %v2805 = vsel %vm2795, 1, 0
      %v2806 = vsel %vm2796, 1, 0
      %v2807 = vsel %vm2797, 1, 0
      %v2808 = vsel %vm2798, 1, 0
      %vm2809 = vcmp.eq.s32.totalorder %v2799, 1
      %vm2810 = vcmp.eq.s32.totalorder %v2800, 1
      %vm2811 = vcmp.eq.s32.totalorder %v2801, 1
      %vm2812 = vcmp.eq.s32.totalorder %v2802, 1
      %vm2813 = vcmp.eq.s32.totalorder %v2803, 1
      %vm2814 = vcmp.eq.s32.totalorder %v2804, 1
      %vm2815 = vcmp.eq.s32.totalorder %v2805, 1
      %vm2816 = vcmp.eq.s32.totalorder %v2806, 1
      %vm2817 = vcmp.eq.s32.totalorder %v2807, 1
      %vm2818 = vcmp.eq.s32.totalorder %v2808, 1
      %v2819 = vsel %vm2809, %v2738, 0.0
      %v2820 = vsel %vm2809, %v2739, 0.0
      %v2821 = vsel %vm2810, %v2740, 0.0
      %v2822 = vsel %vm2810, %v2741, 0.0
      %v2823 = vsel %vm2811, %v2742, 0.0
      %v2824 = vsel %vm2811, %v2743, 0.0
      %v2825 = vsel %vm2812, %v2744, 0.0
      %v2826 = vsel %vm2812, %v2745, 0.0
      %v2827 = vsel %vm2813, %v2746, 0.0
      %v2828 = vsel %vm2813, %v2747, 0.0
      %v2829 = vsel %vm2814, %v2748, 0.0
      %v2830 = vsel %vm2814, %v2749, 0.0
      %v2831 = vsel %vm2815, %v2750, 0.0
      %v2832 = vsel %vm2815, %v2751, 0.0
      %v2833 = vsel %vm2816, %v2752, 0.0
      %v2834 = vsel %vm2816, %v2753, 0.0
      %v2835 = vsel %vm2817, %v2754, 0.0
      %v2836 = vsel %vm2817, %v2755, 0.0
      %v2837 = vsel %vm2818, %v2756, 0.0
      %v2838 = vsel %vm2818, %v2757, 0.0
      %vm2859 = vcmask 1040384
      %v2860 = vrot.slane %v2819, 7
      %v2861 = vrot.slane %v2820, 7
      %v2862 = vsel %vm2859, %v2860, %v2861
      %v2863 = vrot.slane %v2821, 7
      %v2864 = vrot.slane %v2822, 7
      %v2865 = vsel %vm2859, %v2863, %v2864
      %v2866 = vrot.slane %v2823, 7
      %v2867 = vrot.slane %v2824, 7
      %v2868 = vsel %vm2859, %v2866, %v2867
      %v2869 = vrot.slane %v2825, 7
      %v2870 = vrot.slane %v2826, 7
      %v2871 = vsel %vm2859, %v2869, %v2870
      %v2872 = vrot.slane %v2827, 7
      %v2873 = vrot.slane %v2828, 7
      %v2874 = vsel %vm2859, %v2872, %v2873
      %v2875 = vrot.slane %v2829, 7
      %v2876 = vrot.slane %v2830, 7
      %v2877 = vsel %vm2859, %v2875, %v2876
      %v2878 = vrot.slane %v2831, 7
      %v2879 = vrot.slane %v2832, 7
      %v2880 = vsel %vm2859, %v2878, %v2879
      %v2881 = vrot.slane %v2833, 7
      %v2882 = vrot.slane %v2834, 7
      %v2883 = vsel %vm2859, %v2881, %v2882
      %v2884 = vrot.slane %v2835, 7
      %v2885 = vrot.slane %v2836, 7
      %v2886 = vsel %vm2859, %v2884, %v2885
      %v2887 = vrot.slane %v2837, 7
      %v2888 = vrot.slane %v2838, 7
      %v2889 = vsel %vm2859, %v2887, %v2888
      %v2920 = vsel %vm2859, 0.0, %v2860
      %v2921 = vsel %vm2859, 0.0, %v2863
      %v2922 = vsel %vm2859, 0.0, %v2866
      %v2923 = vsel %vm2859, 0.0, %v2869
      %v2924 = vsel %vm2859, 0.0, %v2872
      %v2925 = vsel %vm2859, 0.0, %v2875
      %v2926 = vsel %vm2859, 0.0, %v2878
      %v2927 = vsel %vm2859, 0.0, %v2881
      %v2928 = vsel %vm2859, 0.0, %v2884
      %v2929 = vsel %vm2859, 0.0, %v2887
      %v2930 = vsel %vm2859, %v2861, 0.0
      %v2931 = vsel %vm2859, %v2864, 0.0
      %v2932 = vsel %vm2859, %v2867, 0.0
      %v2933 = vsel %vm2859, %v2870, 0.0
      %v2934 = vsel %vm2859, %v2873, 0.0
      %v2935 = vsel %vm2859, %v2876, 0.0
      %v2936 = vsel %vm2859, %v2879, 0.0
      %v2937 = vsel %vm2859, %v2882, 0.0
      %v2938 = vsel %vm2859, %v2885, 0.0
      %v2939 = vsel %vm2859, %v2888, 0.0
      %v2956 = vrot.slane %v2920, 1
      %v2957 = vrot.slane %v2862, 1
      %v2958 = vsel %vm509, %v2956, %v2957
      %v2959 = vrot.slane %v2930, 1
      %v2960 = vsel %vm509, %v2957, %v2959
      %v2961 = vrot.slane %v2921, 1
      %v2962 = vrot.slane %v2865, 1
      %v2963 = vsel %vm509, %v2961, %v2962
      %v2964 = vrot.slane %v2931, 1
      %v2965 = vsel %vm509, %v2962, %v2964
      %v2966 = vrot.slane %v2922, 1
      %v2967 = vrot.slane %v2868, 1
      %v2968 = vsel %vm509, %v2966, %v2967
      %v2969 = vrot.slane %v2932, 1
      %v2970 = vsel %vm509, %v2967, %v2969
      %v2971 = vrot.slane %v2923, 1
      %v2972 = vrot.slane %v2871, 1
      %v2973 = vsel %vm509, %v2971, %v2972
      %v2974 = vrot.slane %v2933, 1
      %v2975 = vsel %vm509, %v2972, %v2974
      %v2976 = vrot.slane %v2924, 1
      %v2977 = vrot.slane %v2874, 1
      %v2978 = vsel %vm509, %v2976, %v2977
      %v2979 = vrot.slane %v2934, 1
      %v2980 = vsel %vm509, %v2977, %v2979
      %v2981 = vrot.slane %v2925, 1
      %v2982 = vrot.slane %v2877, 1
      %v2983 = vsel %vm509, %v2981, %v2982
      %v2984 = vrot.slane %v2935, 1
      %v2985 = vsel %vm509, %v2982, %v2984
      %v2986 = vrot.slane %v2926, 1
      %v2987 = vrot.slane %v2880, 1
      %v2988 = vsel %vm509, %v2986, %v2987
      %v2989 = vrot.slane %v2936, 1
      %v2990 = vsel %vm509, %v2987, %v2989
      %v2991 = vrot.slane %v2927, 1
      %v2992 = vrot.slane %v2883, 1
      %v2993 = vsel %vm509, %v2991, %v2992
      %v2994 = vrot.slane %v2937, 1
      %v2995 = vsel %vm509, %v2992, %v2994
      %v3012 = vrot.slane %v2920, 2
      %v3013 = vrot.slane %v2862, 2
      %v3014 = vsel %vm580, %v3012, %v3013
      %v3015 = vrot.slane %v2930, 2
      %v3016 = vsel %vm580, %v3013, %v3015
      %v3017 = vrot.slane %v2921, 2
      %v3018 = vrot.slane %v2865, 2
      %v3019 = vsel %vm580, %v3017, %v3018
      %v3020 = vrot.slane %v2931, 2
      %v3021 = vsel %vm580, %v3018, %v3020
      %v3022 = vrot.slane %v2922, 2
      %v3023 = vrot.slane %v2868, 2
      %v3024 = vsel %vm580, %v3022, %v3023
      %v3025 = vrot.slane %v2932, 2
      %v3026 = vsel %vm580, %v3023, %v3025
      %v3027 = vrot.slane %v2923, 2
      %v3028 = vrot.slane %v2871, 2
      %v3029 = vsel %vm580, %v3027, %v3028
      %v3030 = vrot.slane %v2933, 2
      %v3031 = vsel %vm580, %v3028, %v3030
      %v3032 = vrot.slane %v2924, 2
      %v3033 = vrot.slane %v2874, 2
      %v3034 = vsel %vm580, %v3032, %v3033
      %v3035 = vrot.slane %v2934, 2
      %v3036 = vsel %vm580, %v3033, %v3035
      %v3037 = vrot.slane %v2925, 2
      %v3038 = vrot.slane %v2877, 2
      %v3039 = vsel %vm580, %v3037, %v3038
      %v3040 = vrot.slane %v2935, 2
      %v3041 = vsel %vm580, %v3038, %v3040
      %v3042 = vrot.slane %v2926, 2
      %v3043 = vrot.slane %v2880, 2
      %v3044 = vsel %vm580, %v3042, %v3043
      %v3045 = vrot.slane %v2936, 2
      %v3046 = vsel %vm580, %v3043, %v3045
      %v3047 = vrot.slane %v2927, 2
      %v3048 = vrot.slane %v2883, 2
      %v3049 = vsel %vm580, %v3047, %v3048
      %v3050 = vrot.slane %v2937, 2
      %v3051 = vsel %vm580, %v3048, %v3050
      %v3068 = vld [vmem:[%s5] sm:$0xff]
      %v3069 = vld [vmem:[%s5 + $0x8] sm:$0xff]
      %v3070 = vld [vmem:[%s5 + $0x10] sm:$0xff]
      %v3071 = vld [vmem:[%s5 + $0x18] sm:$0xff]
      %v3072 = vld [vmem:[%s5 + $0x20] sm:$0xff]
      %v3073 = vld [vmem:[%s5 + $0x28] sm:$0xff]
      %v3074 = vld [vmem:[%s5 + $0x30] sm:$0xff]
      %v3075 = vld [vmem:[%s5 + $0x38] sm:$0xff]
      %v3076 = vld [vmem:[%s5 + $0x40] sm:$0xff]
      %v3077 = vld [vmem:[%s5 + $0x48] sm:$0xff]
      %v3078 = vld [vmem:[%s5 + $0x50] sm:$0xff]
      %v3079 = vld [vmem:[%s5 + $0x58] sm:$0xff]
      %v3080 = vld [vmem:[%s5 + $0x60] sm:$0xff]
      %v3081 = vld [vmem:[%s5 + $0x68] sm:$0xff]
      %v3082 = vld [vmem:[%s5 + $0x70] sm:$0xff]
      %v3083 = vld [vmem:[%s5 + $0x78] sm:$0xff]
      %v3084 = vld [vmem:[%s5 + $0x80] sm:$0xff]
      %v3085 = vld [vmem:[%s5 + $0x88] sm:$0xff]
      %v3086 = vld [vmem:[%s5 + $0x90] sm:$0xff]
      %v3087 = vld [vmem:[%s5 + $0x98] sm:$0xff]
      %v3088 = vld [vmem:[%s5 + $0xa0] sm:$0xff]
      %v3089 = vld [vmem:[%s5 + $0xa8] sm:$0xff]
      %v3090 = vld [vmem:[%s5 + $0xb0] sm:$0xff]
      %v3091 = vld [vmem:[%s5 + $0xb8] sm:$0xff]
      %v3092 = vld [vmem:[%s5 + $0xc0] sm:$0xff]
      %v3093 = vld [vmem:[%s5 + $0xc8] sm:$0xff]
      %v3094 = vld [vmem:[%s5 + $0xd0] sm:$0xff]
      %v3095 = vld [vmem:[%s5 + $0xd8] sm:$0xff]
      %v3096 = vld [vmem:[%s5 + $0xe0] sm:$0xff]
      %v3097 = vld [vmem:[%s5 + $0xe8] sm:$0xff]
      %v3098 = vld [vmem:[%s5 + $0xf0] sm:$0xff]
      %v3099 = vld [vmem:[%s5 + $0xf8] sm:$0xff]
      %v3100 = vld [vmem:[%s5 + $0x100] sm:$0xff]
      %v3101 = vld [vmem:[%s5 + $0x108] sm:$0xff]
      %v3102 = vld [vmem:[%s5 + $0x110] sm:$0xff]
      %v3103 = vld [vmem:[%s5 + $0x118] sm:$0xff]
      %v3104 = vld [vmem:[%s5 + $0x120] sm:$0xff]
      %v3105 = vld [vmem:[%s5 + $0x128] sm:$0xff]
      %v3106 = vld [vmem:[%s5 + $0x130] sm:$0xff]
      %v3107 = vld [vmem:[%s5 + $0x138] sm:$0xff]
      %v3108 = vld [vmem:[%s5 + $0x140] sm:$0xff]
      %v3109 = vld [vmem:[%s5 + $0x148] sm:$0xff]
      %v3110 = vld [vmem:[%s5 + $0x150] sm:$0xff]
      %v3111 = vld [vmem:[%s5 + $0x158] sm:$0xff]
      %v3112 = vld [vmem:[%s5 + $0x160] sm:$0xff]
      %v3113 = vld [vmem:[%s5 + $0x168] sm:$0xff]
      %v3114 = vld [vmem:[%s5 + $0x170] sm:$0xff]
      %v3115 = vld [vmem:[%s5 + $0x178] sm:$0xff]
      %v3118 = vrot.slane %v2928, 1
      %v3119 = vrot.slane %v2886, 1
      %v3120 = vsel %vm509, %v3118, %v3119
      %v3121 = vrot.slane %v2938, 1
      %v3122 = vsel %vm509, %v3119, %v3121
      %v3125 = vrot.slane %v2928, 2
      %v3126 = vrot.slane %v2886, 2
      %v3127 = vsel %vm580, %v3125, %v3126
      %v3128 = vrot.slane %v2938, 2
      %v3129 = vsel %vm580, %v3126, %v3128
      %s3132 = scalar_lea.vmem %s5, 384
      %v3133 = vld [vmem:[%s3132] sm:$0xff]
      %v3134 = vld [vmem:[%s3132 + $0x8] sm:$0xff]
      %v3135 = vld [vmem:[%s3132 + $0x10] sm:$0xff]
      %v3136 = vld [vmem:[%s3132 + $0x18] sm:$0xff]
      %v3137 = vld [vmem:[%s3132 + $0x20] sm:$0xff]
      %v3138 = vld [vmem:[%s3132 + $0x28] sm:$0xff]
      %v3139 = vld [vmem:[%s3132 + $0x30] sm:$0xff]
      %v3140 = vld [vmem:[%s3132 + $0x38] sm:$0xff]
      %v3141 = vld [vmem:[%s3132 + $0x40] sm:$0xff]
      %v3142 = vld [vmem:[%s3132 + $0x48] sm:$0xff]
      %v3143 = vld [vmem:[%s3132 + $0x50] sm:$0xff]
      %v3144 = vld [vmem:[%s3132 + $0x58] sm:$0xff]
      %v3145 = vld [vmem:[%s3132 + $0x60] sm:$0xff]
      %v3146 = vld [vmem:[%s3132 + $0x68] sm:$0xff]
      %v3147 = vld [vmem:[%s3132 + $0x70] sm:$0xff]
      %v3148 = vld [vmem:[%s3132 + $0x78] sm:$0xff]
      %v3149 = vld [vmem:[%s3132 + $0x80] sm:$0xff]
      %v3150 = vld [vmem:[%s3132 + $0x88] sm:$0xff]
      %v3151 = vld [vmem:[%s3132 + $0x90] sm:$0xff]
      %v3152 = vld [vmem:[%s3132 + $0x98] sm:$0xff]
      %v3153 = vld [vmem:[%s3132 + $0xa0] sm:$0xff]
      %v3154 = vld [vmem:[%s3132 + $0xa8] sm:$0xff]
      %v3155 = vld [vmem:[%s3132 + $0xb0] sm:$0xff]
      %v3156 = vld [vmem:[%s3132 + $0xb8] sm:$0xff]
      %v3157 = vld [vmem:[%s3132 + $0xc0] sm:$0xff]
      %v3158 = vld [vmem:[%s3132 + $0xc8] sm:$0xff]
      %v3159 = vld [vmem:[%s3132 + $0xd0] sm:$0xff]
      %v3160 = vld [vmem:[%s3132 + $0xd8] sm:$0xff]
      %v3161 = vld [vmem:[%s3132 + $0xe0] sm:$0xff]
      %v3162 = vld [vmem:[%s3132 + $0xe8] sm:$0xff]
      %v3163 = vld [vmem:[%s3132 + $0xf0] sm:$0xff]
      %v3164 = vld [vmem:[%s3132 + $0xf8] sm:$0xff]
      %v3165 = vld [vmem:[%s3132 + $0x100] sm:$0xff]
      %v3166 = vld [vmem:[%s3132 + $0x108] sm:$0xff]
      %v3167 = vld [vmem:[%s3132 + $0x110] sm:$0xff]
      %v3168 = vld [vmem:[%s3132 + $0x118] sm:$0xff]
      %v3169 = vld [vmem:[%s3132 + $0x120] sm:$0xff]
      %v3170 = vld [vmem:[%s3132 + $0x128] sm:$0xff]
      %v3171 = vld [vmem:[%s3132 + $0x130] sm:$0xff]
      %v3172 = vld [vmem:[%s3132 + $0x138] sm:$0xff]
      %v3173 = vld [vmem:[%s3132 + $0x140] sm:$0xff]
      %v3174 = vld [vmem:[%s3132 + $0x148] sm:$0xff]
      %v3175 = vld [vmem:[%s3132 + $0x150] sm:$0xff]
      %v3176 = vld [vmem:[%s3132 + $0x158] sm:$0xff]
      %v3177 = vld [vmem:[%s3132 + $0x160] sm:$0xff]
      %v3178 = vld [vmem:[%s3132 + $0x168] sm:$0xff]
      %v3179 = vld [vmem:[%s3132 + $0x170] sm:$0xff]
      %v3180 = vld [vmem:[%s3132 + $0x178] sm:$0xff]
      %3181 = vmatprep.subr.mxu0 0.0
      %3182 = vmatpush1.msra.mxu0 %v3133
      %3183 = vmatprep.subr.mxu0 0.0
      %3184 = vmatpush1.msra.mxu0 %v3134
      %3185 = vmatprep.subr.mxu0 0.0
      %3186 = vmatpush1.msra.mxu0 %v3135
      %3187 = vmatprep.subr.mxu0 0.0
      %3188 = vmatpush1.msra.mxu0 %v3136
      %3189 = vmatprep.subr.mxu0 0.0
      %3190 = vmatpush1.msra.mxu0 %v3137
      %3191 = vmatprep.subr.mxu0 0.0
      %3192 = vmatpush1.msra.mxu0 %v3138
      %3193 = vmatprep.subr.mxu0 0.0
      %3194 = vmatpush1.msra.mxu0 %v3139
      %3195 = vmatprep.subr.mxu0 0.0
      %3196 = vmatpush1.msra.mxu0 %v3140
      %3197 = vmatprep.subr.mxu0 0.0
      %3198 = vmatpush1.msra.mxu0 %v3141
      %3199 = vmatprep.subr.mxu0 0.0
      %3200 = vmatpush1.msra.mxu0 %v3142
      %3201 = vmatprep.subr.mxu0 0.0
      %3202 = vmatpush1.msra.mxu0 %v3143
      %3203 = vmatprep.subr.mxu0 0.0
      %3204 = vmatpush1.msra.mxu0 %v3144
      %3205 = vmatprep.subr.mxu0 0.0
      %3206 = vmatpush1.msra.mxu0 %v3145
      %3207 = vmatprep.subr.mxu0 0.0
      %3208 = vmatpush1.msra.mxu0 %v3146
      %3209 = vmatprep.subr.mxu0 0.0
      %3210 = vmatpush1.msra.mxu0 %v3147
      %3211 = vmatprep.subr.mxu0 0.0
      %3212 = vmatpush1.msra.mxu0 %v3148
      %3213 = vmatprep.subr.mxu0 0.0
      %3214 = vmatpush1.msra.mxu0 %v3149
      %3215 = vmatprep.subr.mxu0 0.0
      %3216 = vmatpush1.msra.mxu0 %v3150
      %3217 = vmatprep.subr.mxu0 0.0
      %3218 = vmatpush1.msra.mxu0 %v3151
      %3219 = vmatprep.subr.mxu0 0.0
      %3220 = vmatpush1.msra.mxu0 %v3152
      %3221 = vmatprep.subr.mxu0 0.0
      %3222 = vmatpush1.msra.mxu0 %v3153
      %3223 = vmatprep.subr.mxu0 0.0
      %3224 = vmatpush1.msra.mxu0 %v3154
      %3225 = vmatprep.subr.mxu0 0.0
      %3226 = vmatpush1.msra.mxu0 %v3155
      %3227 = vmatprep.subr.mxu0 0.0
      %3228 = vmatpush1.msra.mxu0 %v3156
      %3229 = vmatprep.subr.mxu0 0.0
      %3230 = vmatpush1.msra.mxu0 %v3157
      %3231 = vmatprep.subr.mxu0 0.0
      %3232 = vmatpush1.msra.mxu0 %v3158
      %3233 = vmatprep.subr.mxu0 0.0
      %3234 = vmatpush1.msra.mxu0 %v3159
      %3235 = vmatprep.subr.mxu0 0.0
      %3236 = vmatpush1.msra.mxu0 %v3160
      %3237 = vmatprep.subr.mxu0 0.0
      %3238 = vmatpush1.msra.mxu0 %v3161
      %3239 = vmatprep.subr.mxu0 0.0
      %3240 = vmatpush1.msra.mxu0 %v3162
      %3241 = vmatprep.subr.mxu0 0.0
      %3242 = vmatpush1.msra.mxu0 %v3163
      %3243 = vmatprep.subr.mxu0 0.0
      %3244 = vmatpush1.msra.mxu0 %v3164
      %3245 = vmatprep.mubr.f32.mxu0 %v2963
      %3246 = vmatmul.mubr.f32.gmra.mrb[0].mxu0 %v2921
      %v3247 = vpop.f32.mrb[0].mxu0
      %v3248 = vadd.f32 0.0, %v3247
      %v3249 = vpop.f32.mrb[0].mxu0
      %3250 = vmatprep.mubr.f32.mxu0 %v2965
      %3251 = vmatmul.mubr.f32.gmra.mrb[0].mxu0 %v2865
      %v3252 = vpop.f32.mrb[0].mxu0
      %v3253 = vadd.f32 0.0, %v3252
      %v3254 = vpop.f32.mrb[0].mxu0
      %3255 = vmatprep.mubr.f32.mxu0 %v2968
      %3256 = vmatmul.mubr.f32.gmra.mrb[0].mxu0 %v2922
      %v3257 = vpop.f32.mrb[0].mxu0
      %v3258 = vadd.f32 0.0, %v3257
      %v3259 = vpop.f32.mrb[0].mxu0
      %3260 = vmatprep.mubr.f32.mxu0 %v2970
      %3261 = vmatmul.mubr.f32.gmra.mrb[0].mxu0 %v2868
      %v3262 = vpop.f32.mrb[0].mxu0
      %v3263 = vadd.f32 0.0, %v3262
      %v3264 = vpop.f32.mrb[0].mxu0
      %3265 = vmatprep.mubr.f32.mxu0 %v2973
      %3266 = vmatmul.mubr.f32.gmra.mrb[0].mxu0 %v2923
      %v3267 = vpop.f32.mrb[0].mxu0
      %v3268 = vadd.f32 0.0, %v3267
      %v3269 = vpop.f32.mrb[0].mxu0
      %3270 = vmatprep.mubr.f32.mxu0 %v2975
      %3271 = vmatmul.mubr.f32.gmra.mrb[0].mxu0 %v2871
      %v3272 = vpop.f32.mrb[0].mxu0
      %v3273 = vadd.f32 0.0, %v3272
      %v3274 = vpop.f32.mrb[0].mxu0
      %3275 = vmatprep.mubr.f32.mxu0 %v2978
      %3276 = vmatmul.mubr.f32.gmra.mrb[0].mxu0 %v2924
      %v3277 = vpop.f32.mrb[0].mxu0
      %v3278 = vadd.f32 0.0, %v3277
      %v3279 = vpop.f32.mrb[0].mxu0
      %3280 = vmatprep.mubr.f32.mxu0 %v2980
      %3281 = vmatmul.mubr.f32.gmra.mrb[0].mxu0 %v2874
      %v3282 = vpop.f32.mrb[0].mxu0
      %v3283 = vadd.f32 0.0, %v3282
      %v3284 = vpop.f32.mrb[0].mxu0
      %3285 = vmatprep.mubr.f32.mxu0 %v2983
      %3286 = vmatmul.mubr.f32.gmra.mrb[0].mxu0 %v2925
      %v3287 = vpop.f32.mrb[0].mxu0
      %v3288 = vadd.f32 0.0, %v3287
      %v3289 = vpop.f32.mrb[0].mxu0
      %3290 = vmatprep.mubr.f32.mxu0 %v2985
      %3291 = vmatmul.mubr.f32.gmra.mrb[0].mxu0 %v2877
      %v3292 = vpop.f32.mrb[0].mxu0
      %v3293 = vadd.f32 0.0, %v3292
      %v3294 = vpop.f32.mrb[0].mxu0
      %3295 = vmatprep.mubr.f32.mxu0 %v2988
      %3296 = vmatmul.mubr.f32.gmra.mrb[0].mxu0 %v2926
      %v3297 = vpop.f32.mrb[0].mxu0
      %v3298 = vadd.f32 0.0, %v3297
      %v3299 = vpop.f32.mrb[0].mxu0
      %3300 = vmatprep.mubr.f32.mxu0 %v2990
      %3301 = vmatmul.mubr.f32.gmra.mrb[0].mxu0 %v2880
      %v3302 = vpop.f32.mrb[0].mxu0
      %v3303 = vadd.f32 0.0, %v3302
      %v3304 = vpop.f32.mrb[0].mxu0
      %3305 = vmatprep.mubr.f32.mxu0 %v2993
      %3306 = vmatmul.mubr.f32.gmra.mrb[0].mxu0 %v2927
      %v3307 = vpop.f32.mrb[0].mxu0
      %v3308 = vadd.f32 0.0, %v3307
      %v3309 = vpop.f32.mrb[0].mxu0
      %3310 = vmatprep.mubr.f32.mxu0 %v2995
      %3311 = vmatmul.mubr.f32.gmra.mrb[0].mxu0 %v2883
      %v3312 = vpop.f32.mrb[0].mxu0
      %v3313 = vadd.f32 0.0, %v3312
      %v3314 = vpop.f32.mrb[0].mxu0
      %3315 = vmatprep.mubr.f32.mxu0 %v3120
      %3316 = vmatmul.mubr.f32.gmra.mrb[0].mxu0 %v2928
      %v3317 = vpop.f32.mrb[0].mxu0
      %v3318 = vadd.f32 0.0, %v3317
      %v3319 = vpop.f32.mrb[0].mxu0
      %3320 = vmatprep.mubr.f32.mxu0 %v3122
      %3321 = vmatmul.mubr.f32.gmra.mrb[0].mxu0 %v2886
      %v3322 = vpop.f32.mrb[0].mxu0
      %v3323 = vadd.f32 0.0, %v3322
      %v3324 = vpop.f32.mrb[0].mxu0
      %3325 = vdwg.mxu0
      %3326 = vmatprep.subr.mxu0 0.0
      %3327 = vmatpush1.msra.mxu0 %v3165
      %3328 = vmatprep.subr.mxu0 0.0
      %3329 = vmatpush1.msra.mxu0 %v3166
      %3330 = vmatprep.subr.mxu0 0.0
      %3331 = vmatpush1.msra.mxu0 %v3167
      %3332 = vmatprep.subr.mxu0 0.0
      %3333 = vmatpush1.msra.mxu0 %v3168
      %3334 = vmatprep.subr.mxu0 0.0
      %3335 = vmatpush1.msra.mxu0 %v3169
      %3336 = vmatprep.subr.mxu0 0.0
      %3337 = vmatpush1.msra.mxu0 %v3170
      %3338 = vmatprep.subr.mxu0 0.0
      %3339 = vmatpush1.msra.mxu0 %v3171
      %3340 = vmatprep.subr.mxu0 0.0
      %3341 = vmatpush1.msra.mxu0 %v3172
      %3342 = vmatprep.subr.mxu0 0.0
      %3343 = vmatpush1.msra.mxu0 %v3173
      %3344 = vmatprep.subr.mxu0 0.0
      %3345 = vmatpush1.msra.mxu0 %v3174
      %3346 = vmatprep.subr.mxu0 0.0
      %3347 = vmatpush1.msra.mxu0 %v3175
      %3348 = vmatprep.subr.mxu0 0.0
      %3349 = vmatpush1.msra.mxu0 %v3176
      %3350 = vmatprep.subr.mxu0 0.0
      %3351 = vmatpush1.msra.mxu0 %v3177
      %3352 = vmatprep.subr.mxu0 0.0
      %3353 = vmatpush1.msra.mxu0 %v3178
      %3354 = vmatprep.subr.mxu0 0.0
      %3355 = vmatpush1.msra.mxu0 %v3179
      %3356 = vmatprep.subr.mxu0 0.0
      %3357 = vmatpush1.msra.mxu0 %v3180
      %3358 = vmatprep.subr.mxu0 0.0
      %3359 = vmatpush1.msra.mxu0 0.0
      %3360 = vmatprep.subr.mxu0 0.0
      %3361 = vmatpush1.msra.mxu0 0.0
      %3362 = vmatprep.subr.mxu0 0.0
      %3363 = vmatpush1.msra.mxu0 0.0
      %3364 = vmatprep.subr.mxu0 0.0
      %3365 = vmatpush1.msra.mxu0 0.0
      %3366 = vmatprep.subr.mxu0 0.0
      %3367 = vmatpush1.msra.mxu0 0.0
      %3368 = vmatprep.subr.mxu0 0.0
      %3369 = vmatpush1.msra.mxu0 0.0
      %3370 = vmatprep.subr.mxu0 0.0
      %3371 = vmatpush1.msra.mxu0 0.0
      %3372 = vmatprep.subr.mxu0 0.0
      %3373 = vmatpush1.msra.mxu0 0.0
      %3374 = vmatprep.subr.mxu0 0.0
      %3375 = vmatpush1.msra.mxu0 0.0
      %3376 = vmatprep.subr.mxu0 0.0
      %3377 = vmatpush1.msra.mxu0 0.0
      %3378 = vmatprep.subr.mxu0 0.0
      %3379 = vmatpush1.msra.mxu0 0.0
      %3380 = vmatprep.subr.mxu0 0.0
      %3381 = vmatpush1.msra.mxu0 0.0
      %3382 = vmatprep.subr.mxu0 0.0
      %3383 = vmatpush1.msra.mxu0 0.0
      %3384 = vmatprep.subr.mxu0 0.0
      %3385 = vmatpush1.msra.mxu0 0.0
      %3386 = vmatprep.subr.mxu0 0.0
      %3387 = vmatpush1.msra.mxu0 0.0
      %3388 = vmatprep.subr.mxu0 0.0
      %3389 = vmatpush1.msra.mxu0 0.0
      %3390 = vmatprep.mubr.f32.mxu0 0.0
      %3391 = vmatmul.mubr.f32.gmra.mrb[0].mxu0 %v3019
      %v3392 = vpop.f32.mrb[0].mxu0
      %v3393 = vadd.f32 %v3248, %v3392
      %v3394 = vpop.f32.mrb[0].mxu0
      %3395 = vmatprep.mubr.f32.mxu0 0.0
      %3396 = vmatmul.mubr.f32.gmra.mrb[0].mxu0 %v3021
      %v3397 = vpop.f32.mrb[0].mxu0
      %v3398 = vadd.f32 %v3253, %v3397
      %v3399 = vpop.f32.mrb[0].mxu0
      %3400 = vmatprep.mubr.f32.mxu0 0.0
      %3401 = vmatmul.mubr.f32.gmra.mrb[0].mxu0 %v3024
      %v3402 = vpop.f32.mrb[0].mxu0
      %v3403 = vadd.f32 %v3258, %v3402
      %v3404 = vpop.f32.mrb[0].mxu0
      %3405 = vmatprep.mubr.f32.mxu0 0.0
      %3406 = vmatmul.mubr.f32.gmra.mrb[0].mxu0 %v3026
      %v3407 = vpop.f32.mrb[0].mxu0
      %v3408 = vadd.f32 %v3263, %v3407
      %v3409 = vpop.f32.mrb[0].mxu0
      %3410 = vmatprep.mubr.f32.mxu0 0.0
      %3411 = vmatmul.mubr.f32.gmra.mrb[0].mxu0 %v3029
      %v3412 = vpop.f32.mrb[0].mxu0
      %v3413 = vadd.f32 %v3268, %v3412
      %v3414 = vpop.f32.mrb[0].mxu0
      %3415 = vmatprep.mubr.f32.mxu0 0.0
      %3416 = vmatmul.mubr.f32.gmra.mrb[0].mxu0 %v3031
      %v3417 = vpop.f32.mrb[0].mxu0
      %v3418 = vadd.f32 %v3273, %v3417
      %v3419 = vpop.f32.mrb[0].mxu0
      %3420 = vmatprep.mubr.f32.mxu0 0.0
      %3421 = vmatmul.mubr.f32.gmra.mrb[0].mxu0 %v3034
      %v3422 = vpop.f32.mrb[0].mxu0
      %v3423 = vadd.f32 %v3278, %v3422
      %v3424 = vpop.f32.mrb[0].mxu0
      %3425 = vmatprep.mubr.f32.mxu0 0.0
      %3426 = vmatmul.mubr.f32.gmra.mrb[0].mxu0 %v3036
      %v3427 = vpop.f32.mrb[0].mxu0
      %v3428 = vadd.f32 %v3283, %v3427
      %v3429 = vpop.f32.mrb[0].mxu0
      %3430 = vmatprep.mubr.f32.mxu0 0.0
      %3431 = vmatmul.mubr.f32.gmra.mrb[0].mxu0 %v3039
      %v3432 = vpop.f32.mrb[0].mxu0
      %v3433 = vadd.f32 %v3288, %v3432
      %v3434 = vpop.f32.mrb[0].mxu0
      %3435 = vmatprep.mubr.f32.mxu0 0.0
      %3436 = vmatmul.mubr.f32.gmra.mrb[0].mxu0 %v3041
      %v3437 = vpop.f32.mrb[0].mxu0
      %v3438 = vadd.f32 %v3293, %v3437
      %v3439 = vpop.f32.mrb[0].mxu0
      %3440 = vmatprep.mubr.f32.mxu0 0.0
      %3441 = vmatmul.mubr.f32.gmra.mrb[0].mxu0 %v3044
      %v3442 = vpop.f32.mrb[0].mxu0
      %v3443 = vadd.f32 %v3298, %v3442
      %v3444 = vpop.f32.mrb[0].mxu0
      %3445 = vmatprep.mubr.f32.mxu0 0.0
      %3446 = vmatmul.mubr.f32.gmra.mrb[0].mxu0 %v3046
      %v3447 = vpop.f32.mrb[0].mxu0
      %v3448 = vadd.f32 %v3303, %v3447
      %v3449 = vpop.f32.mrb[0].mxu0
      %3450 = vmatprep.mubr.f32.mxu0 0.0
      %3451 = vmatmul.mubr.f32.gmra.mrb[0].mxu0 %v3049
      %v3452 = vpop.f32.mrb[0].mxu0
      %v3453 = vadd.f32 %v3308, %v3452
      %v3454 = vpop.f32.mrb[0].mxu0
      %3455 = vmatprep.mubr.f32.mxu0 0.0
      %3456 = vmatmul.mubr.f32.gmra.mrb[0].mxu0 %v3051
      %v3457 = vpop.f32.mrb[0].mxu0
      %v3458 = vadd.f32 %v3313, %v3457
      %v3459 = vpop.f32.mrb[0].mxu0
      %3460 = vmatprep.mubr.f32.mxu0 0.0
      %3461 = vmatmul.mubr.f32.gmra.mrb[0].mxu0 %v3127
      %v3462 = vpop.f32.mrb[0].mxu0
      %v3463 = vadd.f32 %v3318, %v3462
      %v3464 = vpop.f32.mrb[0].mxu0
      %3465 = vmatprep.mubr.f32.mxu0 0.0
      %3466 = vmatmul.mubr.f32.gmra.mrb[0].mxu0 %v3129
      %v3467 = vpop.f32.mrb[0].mxu0
      %v3468 = vadd.f32 %v3323, %v3467
      %v3469 = vpop.f32.mrb[0].mxu0
      %3470 = vdwg.mxu0
      %3471 = vmatprep.subr.mxu0 0.0
      %3472 = vmatpush1.msra.mxu0 %v3068
      %3473 = vmatprep.subr.mxu0 0.0
      %3474 = vmatpush1.msra.mxu0 %v3069
      %3475 = vmatprep.subr.mxu0 0.0
      %3476 = vmatpush1.msra.mxu0 %v3070
      %3477 = vmatprep.subr.mxu0 0.0
      %3478 = vmatpush1.msra.mxu0 %v3071
      %3479 = vmatprep.subr.mxu0 0.0
      %3480 = vmatpush1.msra.mxu0 %v3072
      %3481 = vmatprep.subr.mxu0 0.0
      %3482 = vmatpush1.msra.mxu0 %v3073
      %3483 = vmatprep.subr.mxu0 0.0
      %3484 = vmatpush1.msra.mxu0 %v3074
      %3485 = vmatprep.subr.mxu0 0.0
      %3486 = vmatpush1.msra.mxu0 %v3075
      %3487 = vmatprep.subr.mxu0 0.0
      %3488 = vmatpush1.msra.mxu0 %v3076
      %3489 = vmatprep.subr.mxu0 0.0
      %3490 = vmatpush1.msra.mxu0 %v3077
      %3491 = vmatprep.subr.mxu0 0.0
      %3492 = vmatpush1.msra.mxu0 %v3078
      %3493 = vmatprep.subr.mxu0 0.0
      %3494 = vmatpush1.msra.mxu0 %v3079
      %3495 = vmatprep.subr.mxu0 0.0
      %3496 = vmatpush1.msra.mxu0 %v3080
      %3497 = vmatprep.subr.mxu0 0.0
      %3498 = vmatpush1.msra.mxu0 %v3081
      %3499 = vmatprep.subr.mxu0 0.0
      %3500 = vmatpush1.msra.mxu0 %v3082
      %3501 = vmatprep.subr.mxu0 0.0
      %3502 = vmatpush1.msra.mxu0 %v3083
      %3503 = vmatprep.subr.mxu0 0.0
      %3504 = vmatpush1.msra.mxu0 %v3084
      %3505 = vmatprep.subr.mxu0 0.0
      %3506 = vmatpush1.msra.mxu0 %v3085
      %3507 = vmatprep.subr.mxu0 0.0
      %3508 = vmatpush1.msra.mxu0 %v3086
      %3509 = vmatprep.subr.mxu0 0.0
      %3510 = vmatpush1.msra.mxu0 %v3087
      %3511 = vmatprep.subr.mxu0 0.0
      %3512 = vmatpush1.msra.mxu0 %v3088
      %3513 = vmatprep.subr.mxu0 0.0
      %3514 = vmatpush1.msra.mxu0 %v3089
      %3515 = vmatprep.subr.mxu0 0.0
      %3516 = vmatpush1.msra.mxu0 %v3090
      %3517 = vmatprep.subr.mxu0 0.0
      %3518 = vmatpush1.msra.mxu0 %v3091
      %3519 = vmatprep.subr.mxu0 0.0
      %3520 = vmatpush1.msra.mxu0 %v3092
      %3521 = vmatprep.subr.mxu0 0.0
      %3522 = vmatpush1.msra.mxu0 %v3093
      %3523 = vmatprep.subr.mxu0 0.0
      %3524 = vmatpush1.msra.mxu0 %v3094
      %3525 = vmatprep.subr.mxu0 0.0
      %3526 = vmatpush1.msra.mxu0 %v3095
      %3527 = vmatprep.subr.mxu0 0.0
      %3528 = vmatpush1.msra.mxu0 %v3096
      %3529 = vmatprep.subr.mxu0 0.0
      %3530 = vmatpush1.msra.mxu0 %v3097
      %3531 = vmatprep.subr.mxu0 0.0
      %3532 = vmatpush1.msra.mxu0 %v3098
      %3533 = vmatprep.subr.mxu0 0.0
      %3534 = vmatpush1.msra.mxu0 %v3099
      %3535 = vmatprep.mubr.f32.mxu0 %v2958
      %3536 = vmatmul.mubr.f32.gmra.mrb[0].mxu0 %v2920
      %v3537 = vpop.f32.mrb[0].mxu0
      %v3538 = vadd.f32 %v3393, %v3537
      %v3539 = vpop.f32.mrb[0].mxu0
      %3540 = vmatprep.mubr.f32.mxu0 %v2960
      %3541 = vmatmul.mubr.f32.gmra.mrb[0].mxu0 %v2862
      %v3542 = vpop.f32.mrb[0].mxu0
      %v3543 = vadd.f32 %v3398, %v3542
      %v3544 = vpop.f32.mrb[0].mxu0
      %3545 = vmatprep.mubr.f32.mxu0 %v2963
      %3546 = vmatmul.mubr.f32.gmra.mrb[0].mxu0 %v2921
      %v3547 = vpop.f32.mrb[0].mxu0
      %v3548 = vadd.f32 %v3403, %v3547
      %v3549 = vpop.f32.mrb[0].mxu0
      %3550 = vmatprep.mubr.f32.mxu0 %v2965
      %3551 = vmatmul.mubr.f32.gmra.mrb[0].mxu0 %v2865
      %v3552 = vpop.f32.mrb[0].mxu0
      %v3553 = vadd.f32 %v3408, %v3552
      %v3554 = vpop.f32.mrb[0].mxu0
      %3555 = vmatprep.mubr.f32.mxu0 %v2968
      %3556 = vmatmul.mubr.f32.gmra.mrb[0].mxu0 %v2922
      %v3557 = vpop.f32.mrb[0].mxu0
      %v3558 = vadd.f32 %v3413, %v3557
      %v3559 = vpop.f32.mrb[0].mxu0
      %3560 = vmatprep.mubr.f32.mxu0 %v2970
      %3561 = vmatmul.mubr.f32.gmra.mrb[0].mxu0 %v2868
      %v3562 = vpop.f32.mrb[0].mxu0
      %v3563 = vadd.f32 %v3418, %v3562
      %v3564 = vpop.f32.mrb[0].mxu0
      %3565 = vmatprep.mubr.f32.mxu0 %v2973
      %3566 = vmatmul.mubr.f32.gmra.mrb[0].mxu0 %v2923
      %v3567 = vpop.f32.mrb[0].mxu0
      %v3568 = vadd.f32 %v3423, %v3567
      %v3569 = vpop.f32.mrb[0].mxu0
      %3570 = vmatprep.mubr.f32.mxu0 %v2975
      %3571 = vmatmul.mubr.f32.gmra.mrb[0].mxu0 %v2871
      %v3572 = vpop.f32.mrb[0].mxu0
      %v3573 = vadd.f32 %v3428, %v3572
      %v3574 = vpop.f32.mrb[0].mxu0
      %3575 = vmatprep.mubr.f32.mxu0 %v2978
      %3576 = vmatmul.mubr.f32.gmra.mrb[0].mxu0 %v2924
      %v3577 = vpop.f32.mrb[0].mxu0
      %v3578 = vadd.f32 %v3433, %v3577
      %v3579 = vpop.f32.mrb[0].mxu0
      %3580 = vmatprep.mubr.f32.mxu0 %v2980
      %3581 = vmatmul.mubr.f32.gmra.mrb[0].mxu0 %v2874
      %v3582 = vpop.f32.mrb[0].mxu0
      %v3583 = vadd.f32 %v3438, %v3582
      %v3584 = vpop.f32.mrb[0].mxu0
      %3585 = vmatprep.mubr.f32.mxu0 %v2983
      %3586 = vmatmul.mubr.f32.gmra.mrb[0].mxu0 %v2925
      %v3587 = vpop.f32.mrb[0].mxu0
      %v3588 = vadd.f32 %v3443, %v3587
      %v3589 = vpop.f32.mrb[0].mxu0
      %3590 = vmatprep.mubr.f32.mxu0 %v2985
      %3591 = vmatmul.mubr.f32.gmra.mrb[0].mxu0 %v2877
      %v3592 = vpop.f32.mrb[0].mxu0
      %v3593 = vadd.f32 %v3448, %v3592
      %v3594 = vpop.f32.mrb[0].mxu0
      %3595 = vmatprep.mubr.f32.mxu0 %v2988
      %3596 = vmatmul.mubr.f32.gmra.mrb[0].mxu0 %v2926
      %v3597 = vpop.f32.mrb[0].mxu0
      %v3598 = vadd.f32 %v3453, %v3597
      %v3599 = vpop.f32.mrb[0].mxu0
      %3600 = vmatprep.mubr.f32.mxu0 %v2990
      %3601 = vmatmul.mubr.f32.gmra.mrb[0].mxu0 %v2880
      %v3602 = vpop.f32.mrb[0].mxu0
      %v3603 = vadd.f32 %v3458, %v3602
      %v3604 = vpop.f32.mrb[0].mxu0
      %3605 = vmatprep.mubr.f32.mxu0 %v2993
      %3606 = vmatmul.mubr.f32.gmra.mrb[0].mxu0 %v2927
      %v3607 = vpop.f32.mrb[0].mxu0
      %v3608 = vadd.f32 %v3463, %v3607
      %v3609 = vpop.f32.mrb[0].mxu0
      %3610 = vmatprep.mubr.f32.mxu0 %v2995
      %3611 = vmatmul.mubr.f32.gmra.mrb[0].mxu0 %v2883
      %v3612 = vpop.f32.mrb[0].mxu0
      %v3613 = vadd.f32 %v3468, %v3612
      %v3614 = vpop.f32.mrb[0].mxu0
      %3615 = vdwg.mxu0
      %3616 = vmatprep.subr.mxu0 0.0
      %3617 = vmatpush1.msra.mxu0 %v3100
      %3618 = vmatprep.subr.mxu0 0.0
      %3619 = vmatpush1.msra.mxu0 %v3101
      %3620 = vmatprep.subr.mxu0 0.0
      %3621 = vmatpush1.msra.mxu0 %v3102
      %3622 = vmatprep.subr.mxu0 0.0
      %3623 = vmatpush1.msra.mxu0 %v3103
      %3624 = vmatprep.subr.mxu0 0.0
      %3625 = vmatpush1.msra.mxu0 %v3104
      %3626 = vmatprep.subr.mxu0 0.0
      %3627 = vmatpush1.msra.mxu0 %v3105
      %3628 = vmatprep.subr.mxu0 0.0
      %3629 = vmatpush1.msra.mxu0 %v3106
      %3630 = vmatprep.subr.mxu0 0.0
      %3631 = vmatpush1.msra.mxu0 %v3107
      %3632 = vmatprep.subr.mxu0 0.0
      %3633 = vmatpush1.msra.mxu0 %v3108
      %3634 = vmatprep.subr.mxu0 0.0
      %3635 = vmatpush1.msra.mxu0 %v3109
      %3636 = vmatprep.subr.mxu0 0.0
      %3637 = vmatpush1.msra.mxu0 %v3110
      %3638 = vmatprep.subr.mxu0 0.0
      %3639 = vmatpush1.msra.mxu0 %v3111
      %3640 = vmatprep.subr.mxu0 0.0
      %3641 = vmatpush1.msra.mxu0 %v3112
      %3642 = vmatprep.subr.mxu0 0.0
      %3643 = vmatpush1.msra.mxu0 %v3113
      %3644 = vmatprep.subr.mxu0 0.0
      %3645 = vmatpush1.msra.mxu0 %v3114
      %3646 = vmatprep.subr.mxu0 0.0
      %3647 = vmatpush1.msra.mxu0 %v3115
      %3648 = vmatprep.subr.mxu0 0.0
      %3649 = vmatpush1.msra.mxu0 0.0
      %3650 = vmatprep.subr.mxu0 0.0
      %3651 = vmatpush1.msra.mxu0 0.0
      %3652 = vmatprep.subr.mxu0 0.0
      %3653 = vmatpush1.msra.mxu0 0.0
      %3654 = vmatprep.subr.mxu0 0.0
      %3655 = vmatpush1.msra.mxu0 0.0
      %3656 = vmatprep.subr.mxu0 0.0
      %3657 = vmatpush1.msra.mxu0 0.0
      %3658 = vmatprep.subr.mxu0 0.0
      %3659 = vmatpush1.msra.mxu0 0.0
      %3660 = vmatprep.subr.mxu0 0.0
      %3661 = vmatpush1.msra.mxu0 0.0
      %3662 = vmatprep.subr.mxu0 0.0
      %3663 = vmatpush1.msra.mxu0 0.0
      %3664 = vmatprep.subr.mxu0 0.0
      %3665 = vmatpush1.msra.mxu0 0.0
      %3666 = vmatprep.subr.mxu0 0.0
      %3667 = vmatpush1.msra.mxu0 0.0
      %3668 = vmatprep.subr.mxu0 0.0
      %3669 = vmatpush1.msra.mxu0 0.0
      %3670 = vmatprep.subr.mxu0 0.0
      %3671 = vmatpush1.msra.mxu0 0.0
      %3672 = vmatprep.subr.mxu0 0.0
      %3673 = vmatpush1.msra.mxu0 0.0
      %3674 = vmatprep.subr.mxu0 0.0
      %3675 = vmatpush1.msra.mxu0 0.0
      %3676 = vmatprep.subr.mxu0 0.0
      %3677 = vmatpush1.msra.mxu0 0.0
      %3678 = vmatprep.subr.mxu0 0.0
      %3679 = vmatpush1.msra.mxu0 0.0
      %3680 = vmatprep.mubr.f32.mxu0 0.0
      %3681 = vmatmul.mubr.f32.gmra.mrb[0].mxu0 %v3014
      %v3682 = vpop.f32.mrb[0].mxu0
      %v3683 = vadd.f32 %v3538, %v3682
      %v3684 = vpop.f32.mrb[0].mxu0
      %3685 = vmatprep.mubr.f32.mxu0 0.0
      %3686 = vmatmul.mubr.f32.gmra.mrb[0].mxu0 %v3016
      %v3687 = vpop.f32.mrb[0].mxu0
      %v3688 = vadd.f32 %v3543, %v3687
      %v3689 = vpop.f32.mrb[0].mxu0
      %3690 = vmatprep.mubr.f32.mxu0 0.0
      %3691 = vmatmul.mubr.f32.gmra.mrb[0].mxu0 %v3019
      %v3692 = vpop.f32.mrb[0].mxu0
      %v3693 = vadd.f32 %v3548, %v3692
      %v3694 = vpop.f32.mrb[0].mxu0
      %3695 = vmatprep.mubr.f32.mxu0 0.0
      %3696 = vmatmul.mubr.f32.gmra.mrb[0].mxu0 %v3021
      %v3697 = vpop.f32.mrb[0].mxu0
      %v3698 = vadd.f32 %v3553, %v3697
      %v3699 = vpop.f32.mrb[0].mxu0
      %3700 = vmatprep.mubr.f32.mxu0 0.0
      %3701 = vmatmul.mubr.f32.gmra.mrb[0].mxu0 %v3024
      %v3702 = vpop.f32.mrb[0].mxu0
      %v3703 = vadd.f32 %v3558, %v3702
      %v3704 = vpop.f32.mrb[0].mxu0
      %3705 = vmatprep.mubr.f32.mxu0 0.0
      %3706 = vmatmul.mubr.f32.gmra.mrb[0].mxu0 %v3026
      %v3707 = vpop.f32.mrb[0].mxu0
      %v3708 = vadd.f32 %v3563, %v3707
      %v3709 = vpop.f32.mrb[0].mxu0
      %3710 = vmatprep.mubr.f32.mxu0 0.0
      %3711 = vmatmul.mubr.f32.gmra.mrb[0].mxu0 %v3029
      %v3712 = vpop.f32.mrb[0].mxu0
      %v3713 = vadd.f32 %v3568, %v3712
      %v3714 = vpop.f32.mrb[0].mxu0
      %3715 = vmatprep.mubr.f32.mxu0 0.0
      %3716 = vmatmul.mubr.f32.gmra.mrb[0].mxu0 %v3031
      %v3717 = vpop.f32.mrb[0].mxu0
      %v3718 = vadd.f32 %v3573, %v3717
      %v3719 = vpop.f32.mrb[0].mxu0
      %3720 = vmatprep.mubr.f32.mxu0 0.0
      %3721 = vmatmul.mubr.f32.gmra.mrb[0].mxu0 %v3034
      %v3722 = vpop.f32.mrb[0].mxu0
      %v3723 = vadd.f32 %v3578, %v3722
      %v3724 = vpop.f32.mrb[0].mxu0
      %3725 = vmatprep.mubr.f32.mxu0 0.0
      %3726 = vmatmul.mubr.f32.gmra.mrb[0].mxu0 %v3036
      %v3727 = vpop.f32.mrb[0].mxu0
      %v3728 = vadd.f32 %v3583, %v3727
      %v3729 = vpop.f32.mrb[0].mxu0
      %3730 = vmatprep.mubr.f32.mxu0 0.0
      %3731 = vmatmul.mubr.f32.gmra.mrb[0].mxu0 %v3039
      %v3732 = vpop.f32.mrb[0].mxu0
      %v3733 = vadd.f32 %v3588, %v3732
      %v3734 = vpop.f32.mrb[0].mxu0
      %3735 = vmatprep.mubr.f32.mxu0 0.0
      %3736 = vmatmul.mubr.f32.gmra.mrb[0].mxu0 %v3041
      %v3737 = vpop.f32.mrb[0].mxu0
      %v3738 = vadd.f32 %v3593, %v3737
      %v3739 = vpop.f32.mrb[0].mxu0
      %3740 = vmatprep.mubr.f32.mxu0 0.0
      %3741 = vmatmul.mubr.f32.gmra.mrb[0].mxu0 %v3044
      %v3742 = vpop.f32.mrb[0].mxu0
      %v3743 = vadd.f32 %v3598, %v3742
      %v3744 = vpop.f32.mrb[0].mxu0
      %3745 = vmatprep.mubr.f32.mxu0 0.0
      %3746 = vmatmul.mubr.f32.gmra.mrb[0].mxu0 %v3046
      %v3747 = vpop.f32.mrb[0].mxu0
      %v3748 = vadd.f32 %v3603, %v3747
      %v3749 = vpop.f32.mrb[0].mxu0
      %3750 = vmatprep.mubr.f32.mxu0 0.0
      %3751 = vmatmul.mubr.f32.gmra.mrb[0].mxu0 %v3049
      %v3752 = vpop.f32.mrb[0].mxu0
      %v3753 = vadd.f32 %v3608, %v3752
      %v3754 = vpop.f32.mrb[0].mxu0
      %3755 = vmatprep.mubr.f32.mxu0 0.0
      %3756 = vmatmul.mubr.f32.gmra.mrb[0].mxu0 %v3051
      %v3757 = vpop.f32.mrb[0].mxu0
      %v3758 = vadd.f32 %v3613, %v3757
      %v3759 = vpop.f32.mrb[0].mxu0
      %3760 = vdwg.mxu0
      %v3763 = vrot.slane %v2929, 1
      %v3764 = vrot.slane %v2889, 1
      %v3765 = vsel %vm509, %v3763, %v3764
      %v3766 = vrot.slane %v2939, 1
      %v3767 = vsel %vm509, %v3764, %v3766
      %v3770 = vrot.slane %v2929, 2
      %v3771 = vrot.slane %v2889, 2
      %v3772 = vsel %vm580, %v3770, %v3771
      %v3773 = vrot.slane %v2939, 2
      %v3774 = vsel %vm580, %v3771, %v3773
      %s3777 = scalar_lea.vmem %s5, 768
      %v3778 = vld [vmem:[%s3777] sm:$0xff]
      %v3779 = vld [vmem:[%s3777 + $0x8] sm:$0xff]
      %v3780 = vld [vmem:[%s3777 + $0x10] sm:$0xff]
      %v3781 = vld [vmem:[%s3777 + $0x18] sm:$0xff]
      %v3782 = vld [vmem:[%s3777 + $0x20] sm:$0xff]
      %v3783 = vld [vmem:[%s3777 + $0x28] sm:$0xff]
      %v3784 = vld [vmem:[%s3777 + $0x30] sm:$0xff]
      %v3785 = vld [vmem:[%s3777 + $0x38] sm:$0xff]
      %v3786 = vld [vmem:[%s3777 + $0x40] sm:$0xff]
      %v3787 = vld [vmem:[%s3777 + $0x48] sm:$0xff]
      %v3788 = vld [vmem:[%s3777 + $0x50] sm:$0xff]
      %v3789 = vld [vmem:[%s3777 + $0x58] sm:$0xff]
      %v3790 = vld [vmem:[%s3777 + $0x60] sm:$0xff]
      %v3791 = vld [vmem:[%s3777 + $0x68] sm:$0xff]
      %v3792 = vld [vmem:[%s3777 + $0x70] sm:$0xff]
      %v3793 = vld [vmem:[%s3777 + $0x78] sm:$0xff]
      %v3794 = vld [vmem:[%s3777 + $0x80] sm:$0xff]
      %v3795 = vld [vmem:[%s3777 + $0x88] sm:$0xff]
      %v3796 = vld [vmem:[%s3777 + $0x90] sm:$0xff]
      %v3797 = vld [vmem:[%s3777 + $0x98] sm:$0xff]
      %v3798 = vld [vmem:[%s3777 + $0xa0] sm:$0xff]
      %v3799 = vld [vmem:[%s3777 + $0xa8] sm:$0xff]
      %v3800 = vld [vmem:[%s3777 + $0xb0] sm:$0xff]
      %v3801 = vld [vmem:[%s3777 + $0xb8] sm:$0xff]
      %v3802 = vld [vmem:[%s3777 + $0xc0] sm:$0xff]
      %v3803 = vld [vmem:[%s3777 + $0xc8] sm:$0xff]
      %v3804 = vld [vmem:[%s3777 + $0xd0] sm:$0xff]
      %v3805 = vld [vmem:[%s3777 + $0xd8] sm:$0xff]
      %v3806 = vld [vmem:[%s3777 + $0xe0] sm:$0xff]
      %v3807 = vld [vmem:[%s3777 + $0xe8] sm:$0xff]
      %v3808 = vld [vmem:[%s3777 + $0xf0] sm:$0xff]
      %v3809 = vld [vmem:[%s3777 + $0xf8] sm:$0xff]
      %v3810 = vld [vmem:[%s3777 + $0x100] sm:$0xff]
      %v3811 = vld [vmem:[%s3777 + $0x108] sm:$0xff]
      %v3812 = vld [vmem:[%s3777 + $0x110] sm:$0xff]
      %v3813 = vld [vmem:[%s3777 + $0x118] sm:$0xff]
      %v3814 = vld [vmem:[%s3777 + $0x120] sm:$0xff]
      %v3815 = vld [vmem:[%s3777 + $0x128] sm:$0xff]
      %v3816 = vld [vmem:[%s3777 + $0x130] sm:$0xff]
      %v3817 = vld [vmem:[%s3777 + $0x138] sm:$0xff]
      %v3818 = vld [vmem:[%s3777 + $0x140] sm:$0xff]
      %v3819 = vld [vmem:[%s3777 + $0x148] sm:$0xff]
      %v3820 = vld [vmem:[%s3777 + $0x150] sm:$0xff]
      %v3821 = vld [vmem:[%s3777 + $0x158] sm:$0xff]
      %v3822 = vld [vmem:[%s3777 + $0x160] sm:$0xff]
      %v3823 = vld [vmem:[%s3777 + $0x168] sm:$0xff]
      %v3824 = vld [vmem:[%s3777 + $0x170] sm:$0xff]
      %v3825 = vld [vmem:[%s3777 + $0x178] sm:$0xff]
      %3826 = vmatprep.subr.mxu0 0.0
      %3827 = vmatpush1.msra.mxu0 %v3778
      %3828 = vmatprep.subr.mxu0 0.0
      %3829 = vmatpush1.msra.mxu0 %v3779
      %3830 = vmatprep.subr.mxu0 0.0
      %3831 = vmatpush1.msra.mxu0 %v3780
      %3832 = vmatprep.subr.mxu0 0.0
      %3833 = vmatpush1.msra.mxu0 %v3781
      %3834 = vmatprep.subr.mxu0 0.0
      %3835 = vmatpush1.msra.mxu0 %v3782
      %3836 = vmatprep.subr.mxu0 0.0
      %3837 = vmatpush1.msra.mxu0 %v3783
      %3838 = vmatprep.subr.mxu0 0.0
      %3839 = vmatpush1.msra.mxu0 %v3784
      %3840 = vmatprep.subr.mxu0 0.0
      %3841 = vmatpush1.msra.mxu0 %v3785
      %3842 = vmatprep.subr.mxu0 0.0
      %3843 = vmatpush1.msra.mxu0 %v3786
      %3844 = vmatprep.subr.mxu0 0.0
      %3845 = vmatpush1.msra.mxu0 %v3787
      %3846 = vmatprep.subr.mxu0 0.0
      %3847 = vmatpush1.msra.mxu0 %v3788
      %3848 = vmatprep.subr.mxu0 0.0
      %3849 = vmatpush1.msra.mxu0 %v3789
      %3850 = vmatprep.subr.mxu0 0.0
      %3851 = vmatpush1.msra.mxu0 %v3790
      %3852 = vmatprep.subr.mxu0 0.0
      %3853 = vmatpush1.msra.mxu0 %v3791
      %3854 = vmatprep.subr.mxu0 0.0
      %3855 = vmatpush1.msra.mxu0 %v3792
      %3856 = vmatprep.subr.mxu0 0.0
      %3857 = vmatpush1.msra.mxu0 %v3793
      %3858 = vmatprep.subr.mxu0 0.0
      %3859 = vmatpush1.msra.mxu0 %v3794
      %3860 = vmatprep.subr.mxu0 0.0
      %3861 = vmatpush1.msra.mxu0 %v3795
      %3862 = vmatprep.subr.mxu0 0.0
      %3863 = vmatpush1.msra.mxu0 %v3796
      %3864 = vmatprep.subr.mxu0 0.0
      %3865 = vmatpush1.msra.mxu0 %v3797
      %3866 = vmatprep.subr.mxu0 0.0
      %3867 = vmatpush1.msra.mxu0 %v3798
      %3868 = vmatprep.subr.mxu0 0.0
      %3869 = vmatpush1.msra.mxu0 %v3799
      %3870 = vmatprep.subr.mxu0 0.0
      %3871 = vmatpush1.msra.mxu0 %v3800
      %3872 = vmatprep.subr.mxu0 0.0
      %3873 = vmatpush1.msra.mxu0 %v3801
      %3874 = vmatprep.subr.mxu0 0.0
      %3875 = vmatpush1.msra.mxu0 %v3802
      %3876 = vmatprep.subr.mxu0 0.0
      %3877 = vmatpush1.msra.mxu0 %v3803
      %3878 = vmatprep.subr.mxu0 0.0
      %3879 = vmatpush1.msra.mxu0 %v3804
      %3880 = vmatprep.subr.mxu0 0.0
      %3881 = vmatpush1.msra.mxu0 %v3805
      %3882 = vmatprep.subr.mxu0 0.0
      %3883 = vmatpush1.msra.mxu0 %v3806
      %3884 = vmatprep.subr.mxu0 0.0
      %3885 = vmatpush1.msra.mxu0 %v3807
      %3886 = vmatprep.subr.mxu0 0.0
      %3887 = vmatpush1.msra.mxu0 %v3808
      %3888 = vmatprep.subr.mxu0 0.0
      %3889 = vmatpush1.msra.mxu0 %v3809
      %3890 = vmatprep.mubr.f32.mxu0 %v2968
      %3891 = vmatmul.mubr.f32.gmra.mrb[0].mxu0 %v2922
      %v3892 = vpop.f32.mrb[0].mxu0
      %v3893 = vadd.f32 0.0, %v3892
      %v3894 = vpop.f32.mrb[0].mxu0
      %3895 = vmatprep.mubr.f32.mxu0 %v2970
      %3896 = vmatmul.mubr.f32.gmra.mrb[0].mxu0 %v2868
      %v3897 = vpop.f32.mrb[0].mxu0
      %v3898 = vadd.f32 0.0, %v3897
      %v3899 = vpop.f32.mrb[0].mxu0
      %3900 = vmatprep.mubr.f32.mxu0 %v2973
      %3901 = vmatmul.mubr.f32.gmra.mrb[0].mxu0 %v2923
      %v3902 = vpop.f32.mrb[0].mxu0
      %v3903 = vadd.f32 0.0, %v3902
      %v3904 = vpop.f32.mrb[0].mxu0
      %3905 = vmatprep.mubr.f32.mxu0 %v2975
      %3906 = vmatmul.mubr.f32.gmra.mrb[0].mxu0 %v2871
      %v3907 = vpop.f32.mrb[0].mxu0
      %v3908 = vadd.f32 0.0, %v3907
      %v3909 = vpop.f32.mrb[0].mxu0
      %3910 = vmatprep.mubr.f32.mxu0 %v2978
      %3911 = vmatmul.mubr.f32.gmra.mrb[0].mxu0 %v2924
      %v3912 = vpop.f32.mrb[0].mxu0
      %v3913 = vadd.f32 0.0, %v3912
      %v3914 = vpop.f32.mrb[0].mxu0
      %3915 = vmatprep.mubr.f32.mxu0 %v2980
      %3916 = vmatmul.mubr.f32.gmra.mrb[0].mxu0 %v2874
      %v3917 = vpop.f32.mrb[0].mxu0
      %v3918 = vadd.f32 0.0, %v3917
      %v3919 = vpop.f32.mrb[0].mxu0
      %3920 = vmatprep.mubr.f32.mxu0 %v2983
      %3921 = vmatmul.mubr.f32.gmra.mrb[0].mxu0 %v2925
      %v3922 = vpop.f32.mrb[0].mxu0
      %v3923 = vadd.f32 0.0, %v3922
      %v3924 = vpop.f32.mrb[0].mxu0
      %3925 = vmatprep.mubr.f32.mxu0 %v2985
      %3926 = vmatmul.mubr.f32.gmra.mrb[0].mxu0 %v2877
      %v3927 = vpop.f32.mrb[0].mxu0
      %v3928 = vadd.f32 0.0, %v3927
      %v3929 = vpop.f32.mrb[0].mxu0
      %3930 = vmatprep.mubr.f32.mxu0 %v2988
      %3931 = vmatmul.mubr.f32.gmra.mrb[0].mxu0 %v2926
      %v3932 = vpop.f32.mrb[0].mxu0
      %v3933 = vadd.f32 0.0, %v3932
      %v3934 = vpop.f32.mrb[0].mxu0
      %3935 = vmatprep.mubr.f32.mxu0 %v2990
      %3936 = vmatmul.mubr.f32.gmra.mrb[0].mxu0 %v2880
      %v3937 = vpop.f32.mrb[0].mxu0
      %v3938 = vadd.f32 0.0, %v3937
      %v3939 = vpop.f32.mrb[0].mxu0
      %3940 = vmatprep.mubr.f32.mxu0 %v2993
      %3941 = vmatmul.mubr.f32.gmra.mrb[0].mxu0 %v2927
      %v3942 = vpop.f32.mrb[0].mxu0
      %v3943 = vadd.f32 0.0, %v3942
      %v3944 = vpop.f32.mrb[0].mxu0
      %3945 = vmatprep.mubr.f32.mxu0 %v2995
      %3946 = vmatmul.mubr.f32.gmra.mrb[0].mxu0 %v2883
      %v3947 = vpop.f32.mrb[0].mxu0
      %v3948 = vadd.f32 0.0, %v3947
      %v3949 = vpop.f32.mrb[0].mxu0
      %3950 = vmatprep.mubr.f32.mxu0 %v3120
      %3951 = vmatmul.mubr.f32.gmra.mrb[0].mxu0 %v2928
      %v3952 = vpop.f32.mrb[0].mxu0
      %v3953 = vadd.f32 0.0, %v3952
      %v3954 = vpop.f32.mrb[0].mxu0
      %3955 = vmatprep.mubr.f32.mxu0 %v3122
      %3956 = vmatmul.mubr.f32.gmra.mrb[0].mxu0 %v2886
      %v3957 = vpop.f32.mrb[0].mxu0
      %v3958 = vadd.f32 0.0, %v3957
      %v3959 = vpop.f32.mrb[0].mxu0
      %3960 = vmatprep.mubr.f32.mxu0 %v3765
      %3961 = vmatmul.mubr.f32.gmra.mrb[0].mxu0 %v2929
      %v3962 = vpop.f32.mrb[0].mxu0
      %v3963 = vadd.f32 0.0, %v3962
      %v3964 = vpop.f32.mrb[0].mxu0
      %3965 = vmatprep.mubr.f32.mxu0 %v3767
      %3966 = vmatmul.mubr.f32.gmra.mrb[0].mxu0 %v2889
      %v3967 = vpop.f32.mrb[0].mxu0
      %v3968 = vadd.f32 0.0, %v3967
      %v3969 = vpop.f32.mrb[0].mxu0
      %3970 = vdwg.mxu0
      %3971 = vmatprep.subr.mxu0 0.0
      %3972 = vmatpush1.msra.mxu0 %v3810
      %3973 = vmatprep.subr.mxu0 0.0
      %3974 = vmatpush1.msra.mxu0 %v3811
      %3975 = vmatprep.subr.mxu0 0.0
      %3976 = vmatpush1.msra.mxu0 %v3812
      %3977 = vmatprep.subr.mxu0 0.0
      %3978 = vmatpush1.msra.mxu0 %v3813
      %3979 = vmatprep.subr.mxu0 0.0
      %3980 = vmatpush1.msra.mxu0 %v3814
      %3981 = vmatprep.subr.mxu0 0.0
      %3982 = vmatpush1.msra.mxu0 %v3815
      %3983 = vmatprep.subr.mxu0 0.0
      %3984 = vmatpush1.msra.mxu0 %v3816
      %3985 = vmatprep.subr.mxu0 0.0
      %3986 = vmatpush1.msra.mxu0 %v3817
      %3987 = vmatprep.subr.mxu0 0.0
      %3988 = vmatpush1.msra.mxu0 %v3818
      %3989 = vmatprep.subr.mxu0 0.0
      %3990 = vmatpush1.msra.mxu0 %v3819
      %3991 = vmatprep.subr.mxu0 0.0
      %3992 = vmatpush1.msra.mxu0 %v3820
      %3993 = vmatprep.subr.mxu0 0.0
      %3994 = vmatpush1.msra.mxu0 %v3821
      %3995 = vmatprep.subr.mxu0 0.0
      %3996 = vmatpush1.msra.mxu0 %v3822
      %3997 = vmatprep.subr.mxu0 0.0
      %3998 = vmatpush1.msra.mxu0 %v3823
      %3999 = vmatprep.subr.mxu0 0.0
      %4000 = vmatpush1.msra.mxu0 %v3824
      %4001 = vmatprep.subr.mxu0 0.0
      %4002 = vmatpush1.msra.mxu0 %v3825
      %4003 = vmatprep.subr.mxu0 0.0
      %4004 = vmatpush1.msra.mxu0 0.0
      %4005 = vmatprep.subr.mxu0 0.0
      %4006 = vmatpush1.msra.mxu0 0.0
      %4007 = vmatprep.subr.mxu0 0.0
      %4008 = vmatpush1.msra.mxu0 0.0
      %4009 = vmatprep.subr.mxu0 0.0
      %4010 = vmatpush1.msra.mxu0 0.0
      %4011 = vmatprep.subr.mxu0 0.0
      %4012 = vmatpush1.msra.mxu0 0.0
      %4013 = vmatprep.subr.mxu0 0.0
      %4014 = vmatpush1.msra.mxu0 0.0
      %4015 = vmatprep.subr.mxu0 0.0
      %4016 = vmatpush1.msra.mxu0 0.0
      %4017 = vmatprep.subr.mxu0 0.0
      %4018 = vmatpush1.msra.mxu0 0.0
      %4019 = vmatprep.subr.mxu0 0.0
      %4020 = vmatpush1.msra.mxu0 0.0
      %4021 = vmatprep.subr.mxu0 0.0
      %4022 = vmatpush1.msra.mxu0 0.0
      %4023 = vmatprep.subr.mxu0 0.0
      %4024 = vmatpush1.msra.mxu0 0.0
      %4025 = vmatprep.subr.mxu0 0.0
      %4026 = vmatpush1.msra.mxu0 0.0
      %4027 = vmatprep.subr.mxu0 0.0
      %4028 = vmatpush1.msra.mxu0 0.0
      %4029 = vmatprep.subr.mxu0 0.0
      %4030 = vmatpush1.msra.mxu0 0.0
      %4031 = vmatprep.subr.mxu0 0.0
      %4032 = vmatpush1.msra.mxu0 0.0
      %4033 = vmatprep.subr.mxu0 0.0
      %4034 = vmatpush1.msra.mxu0 0.0
      %4035 = vmatprep.mubr.f32.mxu0 0.0
      %4036 = vmatmul.mubr.f32.gmra.mrb[0].mxu0 %v3024
      %v4037 = vpop.f32.mrb[0].mxu0
      %v4038 = vadd.f32 %v3893, %v4037
      %v4039 = vpop.f32.mrb[0].mxu0
      %4040 = vmatprep.mubr.f32.mxu0 0.0
      %4041 = vmatmul.mubr.f32.gmra.mrb[0].mxu0 %v3026
      %v4042 = vpop.f32.mrb[0].mxu0
      %v4043 = vadd.f32 %v3898, %v4042
      %v4044 = vpop.f32.mrb[0].mxu0
      %4045 = vmatprep.mubr.f32.mxu0 0.0
      %4046 = vmatmul.mubr.f32.gmra.mrb[0].mxu0 %v3029
      %v4047 = vpop.f32.mrb[0].mxu0
      %v4048 = vadd.f32 %v3903, %v4047
      %v4049 = vpop.f32.mrb[0].mxu0
      %4050 = vmatprep.mubr.f32.mxu0 0.0
      %4051 = vmatmul.mubr.f32.gmra.mrb[0].mxu0 %v3031
      %v4052 = vpop.f32.mrb[0].mxu0
      %v4053 = vadd.f32 %v3908, %v4052
      %v4054 = vpop.f32.mrb[0].mxu0
      %4055 = vmatprep.mubr.f32.mxu0 0.0
      %4056 = vmatmul.mubr.f32.gmra.mrb[0].mxu0 %v3034
      %v4057 = vpop.f32.mrb[0].mxu0
      %v4058 = vadd.f32 %v3913, %v4057
      %v4059 = vpop.f32.mrb[0].mxu0
      %4060 = vmatprep.mubr.f32.mxu0 0.0
      %4061 = vmatmul.mubr.f32.gmra.mrb[0].mxu0 %v3036
      %v4062 = vpop.f32.mrb[0].mxu0
      %v4063 = vadd.f32 %v3918, %v4062
      %v4064 = vpop.f32.mrb[0].mxu0
      %4065 = vmatprep.mubr.f32.mxu0 0.0
      %4066 = vmatmul.mubr.f32.gmra.mrb[0].mxu0 %v3039
      %v4067 = vpop.f32.mrb[0].mxu0
      %v4068 = vadd.f32 %v3923, %v4067
      %v4069 = vpop.f32.mrb[0].mxu0
      %4070 = vmatprep.mubr.f32.mxu0 0.0
      %4071 = vmatmul.mubr.f32.gmra.mrb[0].mxu0 %v3041
      %v4072 = vpop.f32.mrb[0].mxu0
      %v4073 = vadd.f32 %v3928, %v4072
      %v4074 = vpop.f32.mrb[0].mxu0
      %4075 = vmatprep.mubr.f32.mxu0 0.0
      %4076 = vmatmul.mubr.f32.gmra.mrb[0].mxu0 %v3044
      %v4077 = vpop.f32.mrb[0].mxu0
      %v4078 = vadd.f32 %v3933, %v4077
      %v4079 = vpop.f32.mrb[0].mxu0
      %4080 = vmatprep.mubr.f32.mxu0 0.0
      %4081 = vmatmul.mubr.f32.gmra.mrb[0].mxu0 %v3046
      %v4082 = vpop.f32.mrb[0].mxu0
      %v4083 = vadd.f32 %v3938, %v4082
      %v4084 = vpop.f32.mrb[0].mxu0
      %4085 = vmatprep.mubr.f32.mxu0 0.0
      %4086 = vmatmul.mubr.f32.gmra.mrb[0].mxu0 %v3049
      %v4087 = vpop.f32.mrb[0].mxu0
      %v4088 = vadd.f32 %v3943, %v4087
      %v4089 = vpop.f32.mrb[0].mxu0
      %4090 = vmatprep.mubr.f32.mxu0 0.0
      %4091 = vmatmul.mubr.f32.gmra.mrb[0].mxu0 %v3051
      %v4092 = vpop.f32.mrb[0].mxu0
      %v4093 = vadd.f32 %v3948, %v4092
      %v4094 = vpop.f32.mrb[0].mxu0
      %4095 = vmatprep.mubr.f32.mxu0 0.0
      %4096 = vmatmul.mubr.f32.gmra.mrb[0].mxu0 %v3127
      %v4097 = vpop.f32.mrb[0].mxu0
      %v4098 = vadd.f32 %v3953, %v4097
      %v4099 = vpop.f32.mrb[0].mxu0
      %4100 = vmatprep.mubr.f32.mxu0 0.0
      %4101 = vmatmul.mubr.f32.gmra.mrb[0].mxu0 %v3129
      %v4102 = vpop.f32.mrb[0].mxu0
      %v4103 = vadd.f32 %v3958, %v4102
      %v4104 = vpop.f32.mrb[0].mxu0
      %4105 = vmatprep.mubr.f32.mxu0 0.0
      %4106 = vmatmul.mubr.f32.gmra.mrb[0].mxu0 %v3772
      %v4107 = vpop.f32.mrb[0].mxu0
      %v4108 = vadd.f32 %v3963, %v4107
      %v4109 = vpop.f32.mrb[0].mxu0
      %4110 = vmatprep.mubr.f32.mxu0 0.0
      %4111 = vmatmul.mubr.f32.gmra.mrb[0].mxu0 %v3774
      %v4112 = vpop.f32.mrb[0].mxu0
      %v4113 = vadd.f32 %v3968, %v4112
      %v4114 = vpop.f32.mrb[0].mxu0
      %4115 = vdwg.mxu0
      %v4116 = vadd.f32 %v3683, %v4038
      %v4117 = vadd.f32 %v3688, %v4043
      %v4118 = vadd.f32 %v3693, %v4048
      %v4119 = vadd.f32 %v3698, %v4053
      %v4120 = vadd.f32 %v3703, %v4058
      %v4121 = vadd.f32 %v3708, %v4063
      %v4122 = vadd.f32 %v3713, %v4068
      %v4123 = vadd.f32 %v3718, %v4073
      %v4124 = vadd.f32 %v3723, %v4078
      %v4125 = vadd.f32 %v3728, %v4083
      %v4126 = vadd.f32 %v3733, %v4088
      %v4127 = vadd.f32 %v3738, %v4093
      %v4128 = vadd.f32 %v3743, %v4098
      %v4129 = vadd.f32 %v3748, %v4103
      %v4130 = vadd.f32 %v3753, %v4108
      %v4131 = vadd.f32 %v3758, %v4113
      %v4132 = vld [vmem:[%s6] sm:$0x1]
      %v4134 = vlaneseq
      %v4135 = vshrl.u32 %v4134, 7
      %v4136 = vsub.s32 0, %v4135
      %v4137 = vrot.slane %v4132, %v4136
      %v4139 = vmul.f32 %v4116, %v4137
      %v4140 = vmul.f32 %v4117, %v4137
      %v4141 = vmul.f32 %v4118, %v4137
      %v4142 = vmul.f32 %v4119, %v4137
      %v4143 = vmul.f32 %v4120, %v4137
      %v4144 = vmul.f32 %v4121, %v4137
      %v4145 = vmul.f32 %v4122, %v4137
      %v4146 = vmul.f32 %v4123, %v4137
      %v4147 = vmul.f32 %v4124, %v4137
      %v4148 = vmul.f32 %v4125, %v4137
      %v4149 = vmul.f32 %v4126, %v4137
      %v4150 = vmul.f32 %v4127, %v4137
      %v4151 = vmul.f32 %v4128, %v4137
      %v4152 = vmul.f32 %v4129, %v4137
      %v4153 = vmul.f32 %v4130, %v4137
      %v4154 = vmul.f32 %v4131, %v4137
      %v4155 = vld [vmem:[%s7] sm:$0x1]
      %v4157 = vlaneseq
      %v4158 = vshrl.u32 %v4157, 7
      %v4159 = vsub.s32 0, %v4158
      %v4160 = vrot.slane %v4155, %v4159
      %v4162 = vadd.f32 %v4139, %v4160
      %v4163 = vadd.f32 %v4140, %v4160
      %v4164 = vadd.f32 %v4141, %v4160
      %v4165 = vadd.f32 %v4142, %v4160
      %v4166 = vadd.f32 %v4143, %v4160
      %v4167 = vadd.f32 %v4144, %v4160
      %v4168 = vadd.f32 %v4145, %v4160
      %v4169 = vadd.f32 %v4146, %v4160
      %v4170 = vadd.f32 %v4147, %v4160
      %v4171 = vadd.f32 %v4148, %v4160
      %v4172 = vadd.f32 %v4149, %v4160
      %v4173 = vadd.f32 %v4150, %v4160
      %v4174 = vadd.f32 %v4151, %v4160
      %v4175 = vadd.f32 %v4152, %v4160
      %v4176 = vadd.f32 %v4153, %v4160
      %v4177 = vadd.f32 %v4154, %v4160
      %v4178 = vmax.f32 %v4162, 0.0
      %v4179 = vmax.f32 %v4163, 0.0
      %v4180 = vmax.f32 %v4164, 0.0
      %v4181 = vmax.f32 %v4165, 0.0
      %v4182 = vmax.f32 %v4166, 0.0
      %v4183 = vmax.f32 %v4167, 0.0
      %v4184 = vmax.f32 %v4168, 0.0
      %v4185 = vmax.f32 %v4169, 0.0
      %v4186 = vmax.f32 %v4170, 0.0
      %v4187 = vmax.f32 %v4171, 0.0
      %v4188 = vmax.f32 %v4172, 0.0
      %v4189 = vmax.f32 %v4173, 0.0
      %v4190 = vmax.f32 %v4174, 0.0
      %v4191 = vmax.f32 %v4175, 0.0
      %v4192 = vmax.f32 %v4176, 0.0
      %v4193 = vmax.f32 %v4177, 0.0
      %v4194 = vld [vmem:[%s8] sm:$0xff]
      %v4195 = vld [vmem:[%s8 + $0x8] sm:$0xff]
      %v4196 = vld [vmem:[%s8 + $0x10] sm:$0xff]
      %v4197 = vld [vmem:[%s8 + $0x18] sm:$0xff]
      %v4198 = vld [vmem:[%s8 + $0x20] sm:$0xff]
      %v4199 = vld [vmem:[%s8 + $0x28] sm:$0xff]
      %v4200 = vld [vmem:[%s8 + $0x30] sm:$0xff]
      %v4201 = vld [vmem:[%s8 + $0x38] sm:$0xff]
      %v4202 = vld [vmem:[%s8 + $0x40] sm:$0xff]
      %v4203 = vld [vmem:[%s8 + $0x48] sm:$0xff]
      %v4204 = vld [vmem:[%s8 + $0x50] sm:$0xff]
      %v4205 = vld [vmem:[%s8 + $0x58] sm:$0xff]
      %v4206 = vld [vmem:[%s8 + $0x60] sm:$0xff]
      %v4207 = vld [vmem:[%s8 + $0x68] sm:$0xff]
      %v4208 = vld [vmem:[%s8 + $0x70] sm:$0xff]
      %v4209 = vld [vmem:[%s8 + $0x78] sm:$0xff]
      %v4210 = vld [vmem:[%s9] sm:$0x1]
      %v4212 = vlaneseq
      %v4213 = vshrl.u32 %v4212, 7
      %v4214 = vsub.s32 0, %v4213
      %v4215 = vrot.slane %v4210, %v4214
      %4217 = vmatprep.subr.mxu0 0.0
      %4218 = vmatpush1.msra.mxu0 %v4194
      %4219 = vmatprep.subr.mxu0 0.0
      %4220 = vmatpush1.msra.mxu0 %v4195
      %4221 = vmatprep.subr.mxu0 0.0
      %4222 = vmatpush1.msra.mxu0 %v4196
      %4223 = vmatprep.subr.mxu0 0.0
      %4224 = vmatpush1.msra.mxu0 %v4197
      %4225 = vmatprep.subr.mxu0 0.0
      %4226 = vmatpush1.msra.mxu0 %v4198
      %4227 = vmatprep.subr.mxu0 0.0
      %4228 = vmatpush1.msra.mxu0 %v4199
      %4229 = vmatprep.subr.mxu0 0.0
      %4230 = vmatpush1.msra.mxu0 %v4200
      %4231 = vmatprep.subr.mxu0 0.0
      %4232 = vmatpush1.msra.mxu0 %v4201
      %4233 = vmatprep.subr.mxu0 0.0
      %4234 = vmatpush1.msra.mxu0 %v4202
      %4235 = vmatprep.subr.mxu0 0.0
      %4236 = vmatpush1.msra.mxu0 %v4203
      %4237 = vmatprep.subr.mxu0 0.0
      %4238 = vmatpush1.msra.mxu0 %v4204
      %4239 = vmatprep.subr.mxu0 0.0
      %4240 = vmatpush1.msra.mxu0 %v4205
      %4241 = vmatprep.subr.mxu0 0.0
      %4242 = vmatpush1.msra.mxu0 %v4206
      %4243 = vmatprep.subr.mxu0 0.0
      %4244 = vmatpush1.msra.mxu0 %v4207
      %4245 = vmatprep.subr.mxu0 0.0
      %4246 = vmatpush1.msra.mxu0 %v4208
      %4247 = vmatprep.subr.mxu0 0.0
      %4248 = vmatpush1.msra.mxu0 %v4209
      %4249 = vmatprep.subr.mxu0 0.0
      %4250 = vmatpush1.msra.mxu0 0.0
      %4251 = vmatprep.subr.mxu0 0.0
      %4252 = vmatpush1.msra.mxu0 0.0
      %4253 = vmatprep.subr.mxu0 0.0
      %4254 = vmatpush1.msra.mxu0 0.0
      %4255 = vmatprep.subr.mxu0 0.0
      %4256 = vmatpush1.msra.mxu0 0.0
      %4257 = vmatprep.subr.mxu0 0.0
      %4258 = vmatpush1.msra.mxu0 0.0
      %4259 = vmatprep.subr.mxu0 0.0
      %4260 = vmatpush1.msra.mxu0 0.0
      %4261 = vmatprep.subr.mxu0 0.0
      %4262 = vmatpush1.msra.mxu0 0.0
      %4263 = vmatprep.subr.mxu0 0.0
      %4264 = vmatpush1.msra.mxu0 0.0
      %4265 = vmatprep.subr.mxu0 0.0
      %4266 = vmatpush1.msra.mxu0 0.0
      %4267 = vmatprep.subr.mxu0 0.0
      %4268 = vmatpush1.msra.mxu0 0.0
      %4269 = vmatprep.subr.mxu0 0.0
      %4270 = vmatpush1.msra.mxu0 0.0
      %4271 = vmatprep.subr.mxu0 0.0
      %4272 = vmatpush1.msra.mxu0 0.0
      %4273 = vmatprep.subr.mxu0 0.0
      %4274 = vmatpush1.msra.mxu0 0.0
      %4275 = vmatprep.subr.mxu0 0.0
      %4276 = vmatpush1.msra.mxu0 0.0
      %4277 = vmatprep.subr.mxu0 0.0
      %4278 = vmatpush1.msra.mxu0 0.0
      %4279 = vmatprep.subr.mxu0 0.0
      %4280 = vmatpush1.msra.mxu0 0.0
      %4281 = vmatprep.mubr.f32.mxu0 0.0
      %4282 = vmatmul.mubr.f32.gmra.mrb[0].mxu0 %v4178
      %v4283 = vpop.f32.mrb[0].mxu0
      %v4284 = vadd.f32 %v4215, %v4283
      %v4285 = vpop.f32.mrb[0].mxu0
      %4286 = vmatprep.mubr.f32.mxu0 0.0
      %4287 = vmatmul.mubr.f32.gmra.mrb[0].mxu0 %v4179
      %v4288 = vpop.f32.mrb[0].mxu0
      %v4289 = vadd.f32 %v4215, %v4288
      %v4290 = vpop.f32.mrb[0].mxu0
      %4291 = vmatprep.mubr.f32.mxu0 0.0
      %4292 = vmatmul.mubr.f32.gmra.mrb[0].mxu0 %v4180
      %v4293 = vpop.f32.mrb[0].mxu0
      %v4294 = vadd.f32 %v4215, %v4293
      %v4295 = vpop.f32.mrb[0].mxu0
      %4296 = vmatprep.mubr.f32.mxu0 0.0
      %4297 = vmatmul.mubr.f32.gmra.mrb[0].mxu0 %v4181
      %v4298 = vpop.f32.mrb[0].mxu0
      %v4299 = vadd.f32 %v4215, %v4298
      %v4300 = vpop.f32.mrb[0].mxu0
      %4301 = vmatprep.mubr.f32.mxu0 0.0
      %4302 = vmatmul.mubr.f32.gmra.mrb[0].mxu0 %v4182
      %v4303 = vpop.f32.mrb[0].mxu0
      %v4304 = vadd.f32 %v4215, %v4303
      %v4305 = vpop.f32.mrb[0].mxu0
      %4306 = vmatprep.mubr.f32.mxu0 0.0
      %4307 = vmatmul.mubr.f32.gmra.mrb[0].mxu0 %v4183
      %v4308 = vpop.f32.mrb[0].mxu0
      %v4309 = vadd.f32 %v4215, %v4308
      %v4310 = vpop.f32.mrb[0].mxu0
      %4311 = vmatprep.mubr.f32.mxu0 0.0
      %4312 = vmatmul.mubr.f32.gmra.mrb[0].mxu0 %v4184
      %v4313 = vpop.f32.mrb[0].mxu0
      %v4314 = vadd.f32 %v4215, %v4313
      %v4315 = vpop.f32.mrb[0].mxu0
      %4316 = vmatprep.mubr.f32.mxu0 0.0
      %4317 = vmatmul.mubr.f32.gmra.mrb[0].mxu0 %v4185
      %v4318 = vpop.f32.mrb[0].mxu0
      %v4319 = vadd.f32 %v4215, %v4318
      %v4320 = vpop.f32.mrb[0].mxu0
      %4321 = vmatprep.mubr.f32.mxu0 0.0
      %4322 = vmatmul.mubr.f32.gmra.mrb[0].mxu0 %v4186
      %v4323 = vpop.f32.mrb[0].mxu0
      %v4324 = vadd.f32 %v4215, %v4323
      %v4325 = vpop.f32.mrb[0].mxu0
      %4326 = vmatprep.mubr.f32.mxu0 0.0
      %4327 = vmatmul.mubr.f32.gmra.mrb[0].mxu0 %v4187
      %v4328 = vpop.f32.mrb[0].mxu0
      %v4329 = vadd.f32 %v4215, %v4328
      %v4330 = vpop.f32.mrb[0].mxu0
      %4331 = vmatprep.mubr.f32.mxu0 0.0
      %4332 = vmatmul.mubr.f32.gmra.mrb[0].mxu0 %v4188
      %v4333 = vpop.f32.mrb[0].mxu0
      %v4334 = vadd.f32 %v4215, %v4333
      %v4335 = vpop.f32.mrb[0].mxu0
      %4336 = vmatprep.mubr.f32.mxu0 0.0
      %4337 = vmatmul.mubr.f32.gmra.mrb[0].mxu0 %v4189
      %v4338 = vpop.f32.mrb[0].mxu0
      %v4339 = vadd.f32 %v4215, %v4338
      %v4340 = vpop.f32.mrb[0].mxu0
      %4341 = vmatprep.mubr.f32.mxu0 0.0
      %4342 = vmatmul.mubr.f32.gmra.mrb[0].mxu0 %v4190
      %v4343 = vpop.f32.mrb[0].mxu0
      %v4344 = vadd.f32 %v4215, %v4343
      %v4345 = vpop.f32.mrb[0].mxu0
      %4346 = vmatprep.mubr.f32.mxu0 0.0
      %4347 = vmatmul.mubr.f32.gmra.mrb[0].mxu0 %v4191
      %v4348 = vpop.f32.mrb[0].mxu0
      %v4349 = vadd.f32 %v4215, %v4348
      %v4350 = vpop.f32.mrb[0].mxu0
      %4351 = vmatprep.mubr.f32.mxu0 0.0
      %4352 = vmatmul.mubr.f32.gmra.mrb[0].mxu0 %v4192
      %v4353 = vpop.f32.mrb[0].mxu0
      %v4354 = vadd.f32 %v4215, %v4353
      %v4355 = vpop.f32.mrb[0].mxu0
      %4356 = vmatprep.mubr.f32.mxu0 0.0
      %4357 = vmatmul.mubr.f32.gmra.mrb[0].mxu0 %v4193
      %v4358 = vpop.f32.mrb[0].mxu0
      %v4359 = vadd.f32 %v4215, %v4358
      %v4360 = vpop.f32.mrb[0].mxu0
      %4361 = vdwg.mxu0
      %4362 = vst [vmem:[%s401] sm:$0xff] %v4284
      %4363 = vst [vmem:[%s401 + $0x8] sm:$0xff] %v4289
      %4364 = vst [vmem:[%s401 + $0x10] sm:$0xff] %v4294
      %4365 = vst [vmem:[%s401 + $0x18] sm:$0xff] %v4299
      %4366 = vst [vmem:[%s401 + $0x20] sm:$0xff] %v4304
      %4367 = vst [vmem:[%s401 + $0x28] sm:$0xff] %v4309
      %4368 = vst [vmem:[%s401 + $0x30] sm:$0xff] %v4314
      %4369 = vst [vmem:[%s401 + $0x38] sm:$0xff] %v4319
      %4370 = vst [vmem:[%s401 + $0x40] sm:$0xff] %v4324
      %4371 = vst [vmem:[%s401 + $0x48] sm:$0xff] %v4329
      %4372 = vst [vmem:[%s401 + $0x50] sm:$0xff] %v4334
      %4373 = vst [vmem:[%s401 + $0x58] sm:$0xff] %v4339
      %4374 = vst [vmem:[%s401 + $0x60] sm:$0xff] %v4344
      %4375 = vst [vmem:[%s401 + $0x68] sm:$0xff] %v4349
      %4376 = vst [vmem:[%s401 + $0x70] sm:$0xff] %v4354
      %4377 = vst [vmem:[%s401 + $0x78] sm:$0xff] %v4359
      %s4378 = smul.u32 16, %s26
      %p4379 = scmp.lt.s32.totalorder %s25, 1
      %s4380 = scalar_select %p4379, %s25, 1
      %p4381 = scmp.lt.s32.totalorder %s4378, 31
      %s4382 = scalar_select %p4381, %s4378, 31
      %s4383 = smul.addr %s4380, 32
      %s4384 = sadd.s32 %s4382, %s4383
      %s4385 = smul.addr %s4384, 8
      %s4386 = scalar_lea.vmem %s10, %s4385
      // Predicated region
      $region61: #{unet_decoder_block_forward.1} parent=59 // pred_check
        %p4387 = pneg %p273
      $region62: #{unet_decoder_block_forward.1} parent=59 // pred_check_branch
        %4389 = sbr.rel (%p4387) target = $region64
      $region63: #{unet_decoder_block_forward.1} parent=59 // pred_region
        %s4390 = smul.u32 16, %s26
      $region64: #{unet_decoder_block_forward.1} parent=59 // pred_fallthru
        _
    $region60: #{unet_decoder_block_forward.1} parent=5 // pred_fallthru
      _
    %p4391 = scmp.le.s32.totalorder 2, %s16
    // Predicated region
    $region65: #{unet_decoder_block_forward.1} parent=5 // pred_check
      %p4392 = pneg %p4391
    $region66: #{unet_decoder_block_forward.1} parent=5 // pred_check_branch
      %4394 = sbr.rel (%p4392) target = $region68
    $region67: #{unet_decoder_block_forward.1} parent=5 // pred_region
      %s4395 = ssub.s32 %s16, 2
      // Predicated region
      $region69: #{unet_decoder_block_forward.1} parent=67 // pred_check
        %p4396 = pneg %p279
      $region70: #{unet_decoder_block_forward.1} parent=67 // pred_check_branch
        %4398 = sbr.rel (%p4396) target = $region72
      $region71: #{unet_decoder_block_forward.1} parent=67 // pred_region
        %s4399 = smul.u32 16, %s28
        %p4400 = scmp.lt.s32.totalorder %s27, 1
        %s4401 = scalar_select %p4400, %s27, 1
        %p4402 = scmp.lt.s32.totalorder %s4399, 31
        %s4403 = scalar_select %p4402, %s4399, 31
        %s4404 = smul.addr %s4401, 32
        %s4405 = sadd.s32 %s4403, %s4404
        %s4406 = smul.addr %s4405, 8
        %s4407 = scalar_lea.vmem %s10, %s4406
      $region72: #{unet_decoder_block_forward.1} parent=67 // pred_fallthru
        _
    $region68: #{unet_decoder_block_forward.1} parent=5 // pred_fallthru
      _
  $region6: #{unet_decoder_block_forward.1} parent=0 // loop_footer
    %s20 = sadd.s32 1, %s16
  $region7: #{unet_decoder_block_forward.1} parent=0 // loop_footer_branch
    %15 = sbr.rel target = $region3
  $region8: #{unet_decoder_block_forward.1} parent=0 // loop_exit
    _

</llo_original>
